<compile_context>
chip_gen: v6e
topology: v6e:2x2x1
jax: 0.10.0
libtpu: 0.0.40
codegen_flags: <defaults>
</compile_context>

<pallas_src>
import functools

import jax
import jax.numpy as jnp
from jax.experimental import pallas as pl
from jax.experimental.pallas import tpu as pltpu

_LN_EPS = 1e-5


def _cdiv(a, b):
    return -(-a // b)


def _round_up(x, m):
    return ((x + m - 1) // m) * m


def _pick_tm(m_total, hb, cout):
    """Voxel-tile width: a multiple of the lane-aligned halo width hb (so the
    halo BlockSpec stays block-aligned), targeting ~1024 lanes, capped so the
    f32 (Cout, tm) accumulator stays within ~32 vregs, and shrunk (down to hb)
    to keep >= 4 grid steps when there is enough data."""
    cap = max(hb, (32 * 1024) // max(cout, 8) // 128 * 128)
    tm = hb * max(1, min(cap, 1024) // hb)
    while tm > hb and _cdiv(m_total, tm) < 4:
        tm -= hb
    return tm


# ---------------------------------------------------------------------------
# Pallas kernel: 27-tap conv (9 K-stacked bf16 MXU matmuls, f32 accumulation)
# -> LayerNorm(C) -> PReLU -> validity mask, for one lane-dense voxel tile.
# ---------------------------------------------------------------------------
def _conv_ln_prelu_kernel(x_ref, halo_ref, w_ref, scal_ref, mask_ref, o_ref, *,
                          bases):
    tm = o_ref.shape[-1]

    # Stitch the main tile and its halo into one (Cin_p, tm + hb) window.
    win = jnp.concatenate([x_ref[...], halo_ref[...]], axis=-1)

    # 9 tap groups (kd, kh): the three kw taps are static tm-wide shifted
    # slices, K-stacked along the channel axis, then one bf16 MXU matmul
    # (K = 3*Cin_p) per group with f32 accumulation in registers.  This
    # replaces the previous 27 full-window XLU rolls + 27 K=Cin_p matmuls +
    # 27 f32 VPU accumulate adds.
    acc = jnp.zeros(o_ref.shape, jnp.float32)
    for g, base in enumerate(bases):
        x3 = jnp.concatenate(
            [win[:, base + kw: base + kw + tm] for kw in range(3)], axis=0)
        acc = acc + jnp.dot(w_ref[g], x3, preferred_element_type=jnp.float32)

    bias = scal_ref[:, 0:1]
    gamma = scal_ref[:, 1:2]
    beta = scal_ref[:, 2:3]
    alpha = scal_ref[:, 3:4]

    y = acc + bias

    # LayerNorm over the channel (sublane) axis — one voxel per lane.
    mean = jnp.mean(y, axis=0, keepdims=True)
    ctr = y - mean
    var = jnp.mean(ctr * ctr, axis=0, keepdims=True)
    y = ctr * jax.lax.rsqrt(var + _LN_EPS)
    y = y * gamma + beta

    # PReLU (single shared alpha, broadcast per channel), then zero every
    # non-valid canvas voxel so the next stage can consume this canvas
    # directly (its conv zero-padding ring is already in place).
    y = jnp.where(y >= 0, y, alpha * y)
    o_ref[...] = (y * mask_ref[...]).astype(o_ref.dtype)


# ---------------------------------------------------------------------------
# One fused Conv3d(3, 1, 1) -> LayerNorm(C) -> PReLU stage over a flattened,
# spatially padded (+2 per side) channels-first canvas.
# ---------------------------------------------------------------------------
def _conv_stage(xf, B, Dp, Hp, Wp, in_valid_start, weight, bias, gamma, beta,
                alpha, out_dtype):
    """xf: (Cin_p, >= B*Dp*Hp*Wp) bf16 canvas; valid data at per-axis canvas
    coords [in_valid_start, in_valid_start + (Dp-4 / Hp-4 / Wp-4)) with an
    exact-zero ring directly around it (acts as the conv's zero padding).
    Returns a (Cout, grid_cols) canvas of dtype `out_dtype` with valid data at
    coords [in_valid_start - 1, ...) and exact zeros everywhere else."""
    Cout, Cin = weight.shape[:2]
    cin_p = xf.shape[0]
    assert cin_p % 8 == 0 and cin_p >= Cin
    m_canvas = B * Dp * Hp * Wp

    # A 3x3x3 tap is a static lane offset in the flattened padded canvas.
    bases = tuple(kd * Hp * Wp + kh * Wp for kd in range(3) for kh in range(3))
    span = bases[-1] + 2
    hb = _round_up(span, 128)              # lane-aligned halo block width
    tm = _pick_tm(m_canvas, hb, Cout)      # tile width (multiple of hb and 128)
    n_tiles = _cdiv(m_canvas, tm)
    grid_cols = n_tiles * tm
    if xf.shape[1] < grid_cols:
        xf = jnp.pad(xf, ((0, 0), (0, grid_cols - xf.shape[1])))
    mult = tm // hb
    # Clamp the last tile's halo block in-bounds.  Safe: every surviving
    # (valid) output voxel sits more than `span` columns before the canvas
    # end, so it never reads the last tile's halo at all.
    halo_last = grid_cols // hb - 1

    # Weights as (9, Cout, 3*Cin_p): tap group (kd, kh), K-stacked over (kw, ci)
    # to match the in-kernel stacking order.
    K3 = 3 * cin_p
    w = jnp.transpose(weight, (2, 3, 4, 0, 1))                  # (3,3,3,Cout,Cin)
    w = jnp.pad(w, ((0, 0),) * 4 + ((0, cin_p - Cin),))
    w = jnp.transpose(w.reshape(9, 3, Cout, cin_p), (0, 2, 1, 3))
    w = w.reshape(9, Cout, K3).astype(jnp.bfloat16)

    # Conv bias / LN gamma / LN beta / PReLU alpha packed into one small block.
    scal = jnp.stack(
        [bias, gamma, beta, jnp.broadcast_to(alpha, (Cout,))],
        axis=1).astype(jnp.float32)                             # (Cout, 4)

    # Validity mask: 1 on the output's valid canvas voxels, 0 on the pad ring /
    # cross-batch / tail voxels (re-creates the zero ring for the next conv).
    Dv, Hv, Wv = Dp - 4, Hp - 4, Wp - 4
    o0 = in_valid_start - 1
    m3 = jnp.pad(jnp.ones((Dv, Hv, Wv), jnp.bfloat16),
                 ((o0, Dp - o0 - Dv), (o0, Hp - o0 - Hv), (o0, Wp - o0 - Wv)))
    mask = jnp.pad(jnp.tile(m3.reshape(-1), B), (0, grid_cols - m_canvas))
    mask = mask.reshape(1, grid_cols)

    kernel = functools.partial(_conv_ln_prelu_kernel, bases=bases)
    flops = 2 * grid_cols * 27 * cin_p * Cout
    bytes_accessed = int(2 * cin_p * (grid_cols + n_tiles * hb)   # bf16 activations
                         + 2 * w.size + 2 * grid_cols             # weights + mask
                         + jnp.dtype(out_dtype).itemsize * Cout * grid_cols)

    return pl.pallas_call(
        kernel,
        out_shape=jax.ShapeDtypeStruct((Cout, grid_cols), out_dtype),
        grid_spec=pltpu.PrefetchScalarGridSpec(
            num_scalar_prefetch=0,
            grid=(n_tiles,),
            in_specs=[
                pl.BlockSpec((cin_p, tm), lambda i: (0, i)),          # main tile
                pl.BlockSpec((cin_p, hb),
                             lambda i: (0, jnp.minimum((i + 1) * mult,
                                                       halo_last))),  # halo
                pl.BlockSpec((9, Cout, K3), lambda i: (0, 0, 0)),     # weights
                pl.BlockSpec((Cout, 4), lambda i: (0, 0)),            # scalars
                pl.BlockSpec((1, tm), lambda i: (0, i)),              # mask
            ],
            out_specs=pl.BlockSpec((Cout, tm), lambda i: (0, i)),
        ),
        compiler_params=pltpu.CompilerParams(
            dimension_semantics=("parallel",),
            vmem_limit_bytes=32 * 1024 * 1024),   # safe on v5e/v6e/v7x
        cost_estimate=pl.CostEstimate(flops=flops, transcendentals=grid_cols,
                                      bytes_accessed=bytes_accessed),
    )(xf, xf, w, scal, mask)


# ---------------------------------------------------------------------------
# Canvas <-> 5-D helpers.
# ---------------------------------------------------------------------------
def _canvas_from_5d(x):
    """(B, C, D, H, W) -> (Cin_p, B*Dp*Hp*Wp) bf16 flattened padded canvas.
    Spatial pad is 2 per side; valid data starts at canvas coordinate 2."""
    B, C, D, H, W = x.shape
    cin_p = _round_up(C, 8)                       # sublane-align channels
    xp = jnp.pad(x, ((0, 0), (0, cin_p - C), (2, 2), (2, 2), (2, 2)))
    Dp, Hp, Wp = D + 4, H + 4, W + 4
    xf = jnp.transpose(xp, (1, 0, 2, 3, 4)).reshape(cin_p, B * Dp * Hp * Wp)
    return xf.astype(jnp.bfloat16), B, Dp, Hp, Wp


def _canvas_to_5d(yf, B, Dp, Hp, Wp, valid_start, stride):
    """Crop a flattened canvas back to the (B, Cout, Do, Ho, Wo) valid output."""
    cout = yf.shape[0]
    m_canvas = B * Dp * Hp * Wp
    y = yf[:, :m_canvas].reshape(cout, B, Dp, Hp, Wp)
    y = jnp.transpose(y, (1, 0, 2, 3, 4))
    D, H, W = Dp - 4, Hp - 4, Wp - 4
    Do, Ho, Wo = [(n - 1) // stride + 1 for n in (D, H, W)]
    v = valid_start
    return y[:, :,
             v:v + stride * (Do - 1) + 1:stride,
             v:v + stride * (Ho - 1) + 1:stride,
             v:v + stride * (Wo - 1) + 1:stride]


def conv_twice_ln_forward(x, params, s=1):
    """conv_twice_LN forward: Conv3d(3,s,1)->LN(C)->PReLU -> Conv3d(3,1,1)->LN(C)->PReLU."""
    xf, B, Dp, Hp, Wp = _canvas_from_5d(x)
    h = _conv_stage(xf, B, Dp, Hp, Wp, 2, params["w1"], params["b1"],
                    params["g1"], params["beta1"], params["a1"], jnp.bfloat16)

    if s == 1:
        # Stage-1 output is already a correctly zero-ringed bf16 canvas: feed it
        # straight into stage 2 (no crop/transpose/re-pad HBM round trips).
        cout = params["w1"].shape[0]
        cin2_p = _round_up(cout, 8)
        if cin2_p != cout:
            h = jnp.pad(h, ((0, cin2_p - cout), (0, 0)))
        out = _conv_stage(h, B, Dp, Hp, Wp, 1, params["w2"], params["b2"],
                          params["g2"], params["beta2"], params["a2"],
                          jnp.float32)
        return _canvas_to_5d(out, B, Dp, Hp, Wp, valid_start=0, stride=1)

    # TODO(synk): strided stage 1 still computes the dense output and subsamples
    # in XLA; emit only the strided voxels per tile to save ~s^3 work.
    h5 = _canvas_to_5d(h, B, Dp, Hp, Wp, valid_start=1, stride=s)
    hf, B2, Dp2, Hp2, Wp2 = _canvas_from_5d(h5)
    out = _conv_stage(hf, B2, Dp2, Hp2, Wp2, 2, params["w2"], params["b2"],
                      params["g2"], params["beta2"], params["a2"], jnp.float32)
    return _canvas_to_5d(out, B2, Dp2, Hp2, Wp2, valid_start=1, stride=1)


# ---------------------------------------------------------------------------
# Pure-JAX reference.  Activations/weights are rounded to bf16 at the same
# points the kernel feeds the MXU in bf16 (with f32 accumulation); LayerNorm /
# PReLU stay in f32.
# ---------------------------------------------------------------------------
def _ref_forward(x, params, s):
    bf = lambda a: a.astype(jnp.bfloat16).astype(jnp.float32)

    def conv3d(x, w, b, stride):
        y = jax.lax.conv_general_dilated(
            bf(x), bf(w), window_strides=(stride,) * 3, padding=((1, 1),) * 3,
            dimension_numbers=("NCDHW", "OIDHW", "NCDHW"),
            precision=jax.lax.Precision.HIGHEST)
        return y + b[None, :, None, None, None]

    def ln(x, g, bt):
        mean = jnp.mean(x, axis=1, keepdims=True)
        var = jnp.mean((x - mean) ** 2, axis=1, keepdims=True)
        xh = (x - mean) * jax.lax.rsqrt(var + _LN_EPS)
        return xh * g[None, :, None, None, None] + bt[None, :, None, None, None]

    def prelu(x, a):
        return jnp.where(x >= 0, x, a * x)

    h = prelu(ln(conv3d(x, params["w1"], params["b1"], s),
                 params["g1"], params["beta1"]), params["a1"])
    return prelu(ln(conv3d(h, params["w2"], params["b2"], 1),
                    params["g2"], params["beta2"]), params["a2"])


if __name__ == "__main__":
    key = jax.random.PRNGKey(0)
    ks = jax.random.split(key, 9)

    in_ch, out_ch, s = 4, 8, 1
    B, D, H, W = 2, 8, 8, 8

    fan1 = float(in_ch * 27)
    fan2 = float(out_ch * 27)
    params = dict(
        w1=jax.random.normal(ks[0], (out_ch, in_ch, 3, 3, 3), jnp.float32) / jnp.sqrt(fan1),
        b1=0.01 * jax.random.normal(ks[1], (out_ch,), jnp.float32),
        g1=1.0 + 0.1 * jax.random.normal(ks[2], (out_ch,), jnp.float32),
        beta1=0.1 * jax.random.normal(ks[3], (out_ch,), jnp.float32),
        a1=jnp.array([0.25], jnp.float32),          # PReLU default init
        w2=jax.random.normal(ks[4], (out_ch, out_ch, 3, 3, 3), jnp.float32) / jnp.sqrt(fan2),
        b2=0.01 * jax.random.normal(ks[5], (out_ch,), jnp.float32),
        g2=1.0 + 0.1 * jax.random.normal(ks[6], (out_ch,), jnp.float32),
        beta2=0.1 * jax.random.normal(ks[7], (out_ch,), jnp.float32),
        a2=jnp.array([0.25], jnp.float32),
    )

    x = jax.random.normal(ks[8], (B, in_ch, D, H, W), jnp.float32)

    out = jax.jit(lambda x: conv_twice_ln_forward(x, params, s=s))(x)
    out = jax.block_until_ready(out)

    ref = _ref_forward(x, params, s)
    assert out.shape == ref.shape, (out.shape, ref.shape)
    max_err = float(jnp.max(jnp.abs(out - ref)))
    assert jnp.allclose(out, ref, rtol=1e-2, atol=1e-2), max_err

    print("KERNEL_OK")
</pallas_src>

<mosaic_0001>
module attributes {stable_mosaic.version = 11 : i64} {
  func.func @_conv_ln_prelu_kernel(%arg0: i32, %arg1: memref<8x768xbf16, #tpu.memory_space<vmem>>, %arg2: memref<8x384xbf16, #tpu.memory_space<vmem>>, %arg3: memref<9x8x24xbf16, #tpu.memory_space<vmem>>, %arg4: memref<8x4xf32, #tpu.memory_space<vmem>>, %arg5: memref<1x768xbf16, #tpu.memory_space<vmem>>, %arg6: memref<8x768xbf16, #tpu.memory_space<vmem>>) attributes {dimension_semantics = [#tpu.dimension_semantics<parallel>], iteration_bounds = array<i64: 5>, scalar_prefetch = 0 : i64, scratch_operands = 0 : i64, tpu.core_type = #tpu.core_type<tc>, window_params = [{transform_indices = @transform_0, window_bounds = array<i64: 8, 768>}, {transform_indices = @transform_1, window_bounds = array<i64: 8, 384>}, {pipeline_mode = #tpu.pipeline_mode<synchronous>, transform_indices = @transform_2, window_bounds = array<i64: 9, 8, 24>}, {pipeline_mode = #tpu.pipeline_mode<synchronous>, transform_indices = @transform_3, window_bounds = array<i64: 8, 4>}, {transform_indices = @transform_4, window_bounds = array<i64: 1, 768>}, {transform_indices = @transform_5, window_bounds = array<i64: 8, 768>}]} {
    %c0 = arith.constant 0 : index
    %c0_0 = arith.constant 0 : index
    %0 = vector.load %arg1[%c0, %c0_0] : memref<8x768xbf16, #tpu.memory_space<vmem>>, vector<8x768xbf16>
    %c0_1 = arith.constant 0 : index
    %c0_2 = arith.constant 0 : index
    %1 = vector.load %arg2[%c0_1, %c0_2] : memref<8x384xbf16, #tpu.memory_space<vmem>>, vector<8x384xbf16>
    %2 = tpu.concatenate %0, %1 in 1 : vector<8x768xbf16>, vector<8x384xbf16> -> vector<8x1152xbf16>
    %cst = arith.constant 0.000000e+00 : f32
    %3 = vector.broadcast %cst : f32 to vector<8x768xf32>
    %4 = vector.extract_strided_slice %2 {offsets = [0, 0], sizes = [8, 768], strides = [1, 1]} : vector<8x1152xbf16> to vector<8x768xbf16>
    %5 = vector.extract_strided_slice %2 {offsets = [0, 1], sizes = [8, 768], strides = [1, 1]} : vector<8x1152xbf16> to vector<8x768xbf16>
    %6 = vector.extract_strided_slice %2 {offsets = [0, 2], sizes = [8, 768], strides = [1, 1]} : vector<8x1152xbf16> to vector<8x768xbf16>
    %7 = tpu.concatenate %4, %5, %6 in 0 : vector<8x768xbf16>, vector<8x768xbf16>, vector<8x768xbf16> -> vector<24x768xbf16>
    %c0_3 = arith.constant 0 : index
    %c0_4 = arith.constant 0 : index
    %c0_5 = arith.constant 0 : index
    %8 = vector.load %arg3[%c0_3, %c0_4, %c0_5] : memref<9x8x24xbf16, #tpu.memory_space<vmem>>, vector<1x8x24xbf16>
    %9 = vector.shape_cast %8 : vector<1x8x24xbf16> to vector<8x24xbf16>
    %cst_6 = arith.constant dense<0.000000e+00> : vector<8x768xf32>
    %10 = tpu.matmul %9, %7, %cst_6 {dimension_numbers = #tpu.dot_dimension_numbers<[1], [0], [0], [1], [0, 0, 1, 1], [], []>} : vector<8x24xbf16>, vector<24x768xbf16>, vector<8x768xf32> -> vector<8x768xf32>
    %11 = arith.addf %3, %10 : vector<8x768xf32>
    %12 = vector.extract_strided_slice %2 {offsets = [0, 12], sizes = [8, 768], strides = [1, 1]} : vector<8x1152xbf16> to vector<8x768xbf16>
    %13 = vector.extract_strided_slice %2 {offsets = [0, 13], sizes = [8, 768], strides = [1, 1]} : vector<8x1152xbf16> to vector<8x768xbf16>
    %14 = vector.extract_strided_slice %2 {offsets = [0, 14], sizes = [8, 768], strides = [1, 1]} : vector<8x1152xbf16> to vector<8x768xbf16>
    %15 = tpu.concatenate %12, %13, %14 in 0 : vector<8x768xbf16>, vector<8x768xbf16>, vector<8x768xbf16> -> vector<24x768xbf16>
    %c1 = arith.constant 1 : index
    %c0_7 = arith.constant 0 : index
    %c0_8 = arith.constant 0 : index
    %16 = vector.load %arg3[%c1, %c0_7, %c0_8] : memref<9x8x24xbf16, #tpu.memory_space<vmem>>, vector<1x8x24xbf16>
    %17 = vector.shape_cast %16 : vector<1x8x24xbf16> to vector<8x24xbf16>
    %cst_9 = arith.constant dense<0.000000e+00> : vector<8x768xf32>
    %18 = tpu.matmul %17, %15, %cst_9 {dimension_numbers = #tpu.dot_dimension_numbers<[1], [0], [0], [1], [0, 0, 1, 1], [], []>} : vector<8x24xbf16>, vector<24x768xbf16>, vector<8x768xf32> -> vector<8x768xf32>
    %19 = arith.addf %11, %18 : vector<8x768xf32>
    %20 = vector.extract_strided_slice %2 {offsets = [0, 24], sizes = [8, 768], strides = [1, 1]} : vector<8x1152xbf16> to vector<8x768xbf16>
    %21 = vector.extract_strided_slice %2 {offsets = [0, 25], sizes = [8, 768], strides = [1, 1]} : vector<8x1152xbf16> to vector<8x768xbf16>
    %22 = vector.extract_strided_slice %2 {offsets = [0, 26], sizes = [8, 768], strides = [1, 1]} : vector<8x1152xbf16> to vector<8x768xbf16>
    %23 = tpu.concatenate %20, %21, %22 in 0 : vector<8x768xbf16>, vector<8x768xbf16>, vector<8x768xbf16> -> vector<24x768xbf16>
    %c2 = arith.constant 2 : index
    %c0_10 = arith.constant 0 : index
    %c0_11 = arith.constant 0 : index
    %24 = vector.load %arg3[%c2, %c0_10, %c0_11] : memref<9x8x24xbf16, #tpu.memory_space<vmem>>, vector<1x8x24xbf16>
    %25 = vector.shape_cast %24 : vector<1x8x24xbf16> to vector<8x24xbf16>
    %cst_12 = arith.constant dense<0.000000e+00> : vector<8x768xf32>
    %26 = tpu.matmul %25, %23, %cst_12 {dimension_numbers = #tpu.dot_dimension_numbers<[1], [0], [0], [1], [0, 0, 1, 1], [], []>} : vector<8x24xbf16>, vector<24x768xbf16>, vector<8x768xf32> -> vector<8x768xf32>
    %27 = arith.addf %19, %26 : vector<8x768xf32>
    %28 = vector.extract_strided_slice %2 {offsets = [0, 144], sizes = [8, 768], strides = [1, 1]} : vector<8x1152xbf16> to vector<8x768xbf16>
    %29 = vector.extract_strided_slice %2 {offsets = [0, 145], sizes = [8, 768], strides = [1, 1]} : vector<8x1152xbf16> to vector<8x768xbf16>
    %30 = vector.extract_strided_slice %2 {offsets = [0, 146], sizes = [8, 768], strides = [1, 1]} : vector<8x1152xbf16> to vector<8x768xbf16>
    %31 = tpu.concatenate %28, %29, %30 in 0 : vector<8x768xbf16>, vector<8x768xbf16>, vector<8x768xbf16> -> vector<24x768xbf16>
    %c3 = arith.constant 3 : index
    %c0_13 = arith.constant 0 : index
    %c0_14 = arith.constant 0 : index
    %32 = vector.load %arg3[%c3, %c0_13, %c0_14] : memref<9x8x24xbf16, #tpu.memory_space<vmem>>, vector<1x8x24xbf16>
    %33 = vector.shape_cast %32 : vector<1x8x24xbf16> to vector<8x24xbf16>
    %cst_15 = arith.constant dense<0.000000e+00> : vector<8x768xf32>
    %34 = tpu.matmul %33, %31, %cst_15 {dimension_numbers = #tpu.dot_dimension_numbers<[1], [0], [0], [1], [0, 0, 1, 1], [], []>} : vector<8x24xbf16>, vector<24x768xbf16>, vector<8x768xf32> -> vector<8x768xf32>
    %35 = arith.addf %27, %34 : vector<8x768xf32>
    %36 = vector.extract_strided_slice %2 {offsets = [0, 156], sizes = [8, 768], strides = [1, 1]} : vector<8x1152xbf16> to vector<8x768xbf16>
    %37 = vector.extract_strided_slice %2 {offsets = [0, 157], sizes = [8, 768], strides = [1, 1]} : vector<8x1152xbf16> to vector<8x768xbf16>
    %38 = vector.extract_strided_slice %2 {offsets = [0, 158], sizes = [8, 768], strides = [1, 1]} : vector<8x1152xbf16> to vector<8x768xbf16>
    %39 = tpu.concatenate %36, %37, %38 in 0 : vector<8x768xbf16>, vector<8x768xbf16>, vector<8x768xbf16> -> vector<24x768xbf16>
    %c4 = arith.constant 4 : index
    %c0_16 = arith.constant 0 : index
    %c0_17 = arith.constant 0 : index
    %40 = vector.load %arg3[%c4, %c0_16, %c0_17] : memref<9x8x24xbf16, #tpu.memory_space<vmem>>, vector<1x8x24xbf16>
    %41 = vector.shape_cast %40 : vector<1x8x24xbf16> to vector<8x24xbf16>
    %cst_18 = arith.constant dense<0.000000e+00> : vector<8x768xf32>
    %42 = tpu.matmul %41, %39, %cst_18 {dimension_numbers = #tpu.dot_dimension_numbers<[1], [0], [0], [1], [0, 0, 1, 1], [], []>} : vector<8x24xbf16>, vector<24x768xbf16>, vector<8x768xf32> -> vector<8x768xf32>
    %43 = arith.addf %35, %42 : vector<8x768xf32>
    %44 = vector.extract_strided_slice %2 {offsets = [0, 168], sizes = [8, 768], strides = [1, 1]} : vector<8x1152xbf16> to vector<8x768xbf16>
    %45 = vector.extract_strided_slice %2 {offsets = [0, 169], sizes = [8, 768], strides = [1, 1]} : vector<8x1152xbf16> to vector<8x768xbf16>
    %46 = vector.extract_strided_slice %2 {offsets = [0, 170], sizes = [8, 768], strides = [1, 1]} : vector<8x1152xbf16> to vector<8x768xbf16>
    %47 = tpu.concatenate %44, %45, %46 in 0 : vector<8x768xbf16>, vector<8x768xbf16>, vector<8x768xbf16> -> vector<24x768xbf16>
    %c5 = arith.constant 5 : index
    %c0_19 = arith.constant 0 : index
    %c0_20 = arith.constant 0 : index
    %48 = vector.load %arg3[%c5, %c0_19, %c0_20] : memref<9x8x24xbf16, #tpu.memory_space<vmem>>, vector<1x8x24xbf16>
    %49 = vector.shape_cast %48 : vector<1x8x24xbf16> to vector<8x24xbf16>
    %cst_21 = arith.constant dense<0.000000e+00> : vector<8x768xf32>
    %50 = tpu.matmul %49, %47, %cst_21 {dimension_numbers = #tpu.dot_dimension_numbers<[1], [0], [0], [1], [0, 0, 1, 1], [], []>} : vector<8x24xbf16>, vector<24x768xbf16>, vector<8x768xf32> -> vector<8x768xf32>
    %51 = arith.addf %43, %50 : vector<8x768xf32>
    %52 = vector.extract_strided_slice %2 {offsets = [0, 288], sizes = [8, 768], strides = [1, 1]} : vector<8x1152xbf16> to vector<8x768xbf16>
    %53 = vector.extract_strided_slice %2 {offsets = [0, 289], sizes = [8, 768], strides = [1, 1]} : vector<8x1152xbf16> to vector<8x768xbf16>
    %54 = vector.extract_strided_slice %2 {offsets = [0, 290], sizes = [8, 768], strides = [1, 1]} : vector<8x1152xbf16> to vector<8x768xbf16>
    %55 = tpu.concatenate %52, %53, %54 in 0 : vector<8x768xbf16>, vector<8x768xbf16>, vector<8x768xbf16> -> vector<24x768xbf16>
    %c6 = arith.constant 6 : index
    %c0_22 = arith.constant 0 : index
    %c0_23 = arith.constant 0 : index
    %56 = vector.load %arg3[%c6, %c0_22, %c0_23] : memref<9x8x24xbf16, #tpu.memory_space<vmem>>, vector<1x8x24xbf16>
    %57 = vector.shape_cast %56 : vector<1x8x24xbf16> to vector<8x24xbf16>
    %cst_24 = arith.constant dense<0.000000e+00> : vector<8x768xf32>
    %58 = tpu.matmul %57, %55, %cst_24 {dimension_numbers = #tpu.dot_dimension_numbers<[1], [0], [0], [1], [0, 0, 1, 1], [], []>} : vector<8x24xbf16>, vector<24x768xbf16>, vector<8x768xf32> -> vector<8x768xf32>
    %59 = arith.addf %51, %58 : vector<8x768xf32>
    %60 = vector.extract_strided_slice %2 {offsets = [0, 300], sizes = [8, 768], strides = [1, 1]} : vector<8x1152xbf16> to vector<8x768xbf16>
    %61 = vector.extract_strided_slice %2 {offsets = [0, 301], sizes = [8, 768], strides = [1, 1]} : vector<8x1152xbf16> to vector<8x768xbf16>
    %62 = vector.extract_strided_slice %2 {offsets = [0, 302], sizes = [8, 768], strides = [1, 1]} : vector<8x1152xbf16> to vector<8x768xbf16>
    %63 = tpu.concatenate %60, %61, %62 in 0 : vector<8x768xbf16>, vector<8x768xbf16>, vector<8x768xbf16> -> vector<24x768xbf16>
    %c7 = arith.constant 7 : index
    %c0_25 = arith.constant 0 : index
    %c0_26 = arith.constant 0 : index
    %64 = vector.load %arg3[%c7, %c0_25, %c0_26] : memref<9x8x24xbf16, #tpu.memory_space<vmem>>, vector<1x8x24xbf16>
    %65 = vector.shape_cast %64 : vector<1x8x24xbf16> to vector<8x24xbf16>
    %cst_27 = arith.constant dense<0.000000e+00> : vector<8x768xf32>
    %66 = tpu.matmul %65, %63, %cst_27 {dimension_numbers = #tpu.dot_dimension_numbers<[1], [0], [0], [1], [0, 0, 1, 1], [], []>} : vector<8x24xbf16>, vector<24x768xbf16>, vector<8x768xf32> -> vector<8x768xf32>
    %67 = arith.addf %59, %66 : vector<8x768xf32>
    %68 = vector.extract_strided_slice %2 {offsets = [0, 312], sizes = [8, 768], strides = [1, 1]} : vector<8x1152xbf16> to vector<8x768xbf16>
    %69 = vector.extract_strided_slice %2 {offsets = [0, 313], sizes = [8, 768], strides = [1, 1]} : vector<8x1152xbf16> to vector<8x768xbf16>
    %70 = vector.extract_strided_slice %2 {offsets = [0, 314], sizes = [8, 768], strides = [1, 1]} : vector<8x1152xbf16> to vector<8x768xbf16>
    %71 = tpu.concatenate %68, %69, %70 in 0 : vector<8x768xbf16>, vector<8x768xbf16>, vector<8x768xbf16> -> vector<24x768xbf16>
    %c8 = arith.constant 8 : index
    %c0_28 = arith.constant 0 : index
    %c0_29 = arith.constant 0 : index
    %72 = vector.load %arg3[%c8, %c0_28, %c0_29] : memref<9x8x24xbf16, #tpu.memory_space<vmem>>, vector<1x8x24xbf16>
    %73 = vector.shape_cast %72 : vector<1x8x24xbf16> to vector<8x24xbf16>
    %cst_30 = arith.constant dense<0.000000e+00> : vector<8x768xf32>
    %74 = tpu.matmul %73, %71, %cst_30 {dimension_numbers = #tpu.dot_dimension_numbers<[1], [0], [0], [1], [0, 0, 1, 1], [], []>} : vector<8x24xbf16>, vector<24x768xbf16>, vector<8x768xf32> -> vector<8x768xf32>
    %75 = arith.addf %67, %74 : vector<8x768xf32>
    %c0_31 = arith.constant 0 : index
    %c0_32 = arith.constant 0 : index
    %76 = vector.load %arg4[%c0_31, %c0_32] : memref<8x4xf32, #tpu.memory_space<vmem>>, vector<8x1xf32>
    %c0_33 = arith.constant 0 : index
    %c1_34 = arith.constant 1 : index
    %77 = vector.load %arg4[%c0_33, %c1_34] : memref<8x4xf32, #tpu.memory_space<vmem>>, vector<8x1xf32>
    %c0_35 = arith.constant 0 : index
    %c2_36 = arith.constant 2 : index
    %78 = vector.load %arg4[%c0_35, %c2_36] : memref<8x4xf32, #tpu.memory_space<vmem>>, vector<8x1xf32>
    %c0_37 = arith.constant 0 : index
    %c3_38 = arith.constant 3 : index
    %79 = vector.load %arg4[%c0_37, %c3_38] : memref<8x4xf32, #tpu.memory_space<vmem>>, vector<8x1xf32>
    %80 = vector.broadcast %76 : vector<8x1xf32> to vector<8x768xf32>
    %81 = arith.addf %75, %80 : vector<8x768xf32>
    %cst_39 = arith.constant dense<0.000000e+00> : vector<768xf32>
    %82 = vector.multi_reduction <add>, %81, %cst_39 [0] : vector<8x768xf32> to vector<768xf32>
    %83 = vector.shape_cast %82 : vector<768xf32> to vector<1x768xf32>
    %cst_40 = arith.constant 8.000000e+00 : f32
    %84 = vector.broadcast %cst_40 : f32 to vector<1x768xf32>
    %85 = arith.divf %83, %84 : vector<1x768xf32>
    %86 = vector.broadcast %85 : vector<1x768xf32> to vector<8x768xf32>
    %87 = arith.subf %81, %86 : vector<8x768xf32>
    %88 = arith.mulf %87, %87 : vector<8x768xf32>
    %cst_41 = arith.constant dense<0.000000e+00> : vector<768xf32>
    %89 = vector.multi_reduction <add>, %88, %cst_41 [0] : vector<8x768xf32> to vector<768xf32>
    %90 = vector.shape_cast %89 : vector<768xf32> to vector<1x768xf32>
    %cst_42 = arith.constant 8.000000e+00 : f32
    %91 = vector.broadcast %cst_42 : f32 to vector<1x768xf32>
    %92 = arith.divf %90, %91 : vector<1x768xf32>
    %cst_43 = arith.constant 9.99999974E-6 : f32
    %93 = vector.broadcast %cst_43 : f32 to vector<1x768xf32>
    %94 = arith.addf %92, %93 : vector<1x768xf32>
    %95 = math.rsqrt %94 : vector<1x768xf32>
    %96 = vector.broadcast %95 : vector<1x768xf32> to vector<8x768xf32>
    %97 = arith.mulf %87, %96 : vector<8x768xf32>
    %98 = vector.broadcast %77 : vector<8x1xf32> to vector<8x768xf32>
    %99 = arith.mulf %97, %98 : vector<8x768xf32>
    %100 = vector.broadcast %78 : vector<8x1xf32> to vector<8x768xf32>
    %101 = arith.addf %99, %100 : vector<8x768xf32>
    %cst_44 = arith.constant 0.000000e+00 : f32
    %102 = vector.broadcast %cst_44 : f32 to vector<8x768xf32>
    %103 = arith.cmpf oge, %101, %102 : vector<8x768xf32>
    %104 = vector.broadcast %79 : vector<8x1xf32> to vector<8x768xf32>
    %105 = arith.mulf %104, %101 : vector<8x768xf32>
    %106 = arith.select %103, %101, %105 : vector<8x768xi1>, vector<8x768xf32>
    %c0_45 = arith.constant 0 : index
    %c0_46 = arith.constant 0 : index
    %107 = vector.load %arg5[%c0_45, %c0_46] : memref<1x768xbf16, #tpu.memory_space<vmem>>, vector<1x768xbf16>
    %108 = arith.extf %107 : vector<1x768xbf16> to vector<1x768xf32>
    %109 = vector.broadcast %108 : vector<1x768xf32> to vector<8x768xf32>
    %110 = arith.mulf %106, %109 : vector<8x768xf32>
    %111 = arith.truncf %110 : vector<8x768xf32> to vector<8x768xbf16>
    %c0_47 = arith.constant 0 : index
    %c0_48 = arith.constant 0 : index
    %112 = vector.load %arg6[%c0_47, %c0_48] : memref<8x768xbf16, #tpu.memory_space<vmem>>, vector<8x768xbf16>
    tpu.vector_store %arg6[%c0_47, %c0_48], %111 {strides = array<i32>} : memref<8x768xbf16, #tpu.memory_space<vmem>>, vector<8x768xbf16>,
    return
  }
  func.func @transform_0(%arg0: i32) -> (i32, i32) {
    %c0_i32 = arith.constant 0 : i32
    %c0_i32_0 = arith.constant 0 : i32
    return %c0_i32, %arg0 : i32, i32
  }
  func.func @transform_1(%arg0: i32) -> (i32, i32) {
    %c1_i32 = arith.constant 1 : i32
    %0 = arith.addi %arg0, %c1_i32 : i32
    %c2_i32 = arith.constant 2 : i32
    %1 = arith.muli %0, %c2_i32 : i32
    %c9_i32 = arith.constant 9 : i32
    %2 = arith.minsi %1, %c9_i32 : i32
    %c0_i32 = arith.constant 0 : i32
    %c0_i32_0 = arith.constant 0 : i32
    return %c0_i32, %2 : i32, i32
  }
  func.func @transform_2(%arg0: i32) -> (i32, i32, i32) {
    %c0_i32 = arith.constant 0 : i32
    %c0_i32_0 = arith.constant 0 : i32
    %c0_i32_1 = arith.constant 0 : i32
    %c0_i32_2 = arith.constant 0 : i32
    return %c0_i32, %c0_i32_0, %c0_i32_1 : i32, i32, i32
  }
  func.func @transform_3(%arg0: i32) -> (i32, i32) {
    %c0_i32 = arith.constant 0 : i32
    %c0_i32_0 = arith.constant 0 : i32
    %c0_i32_1 = arith.constant 0 : i32
    return %c0_i32, %c0_i32_0 : i32, i32
  }
  func.func @transform_4(%arg0: i32) -> (i32, i32) {
    %c0_i32 = arith.constant 0 : i32
    %c0_i32_0 = arith.constant 0 : i32
    return %c0_i32, %arg0 : i32, i32
  }
  func.func @transform_5(%arg0: i32) -> (i32, i32) {
    %c0_i32 = arith.constant 0 : i32
    %c0_i32_0 = arith.constant 0 : i32
    return %c0_i32, %arg0 : i32, i32
  }
}

module attributes {stable_mosaic.version = 11 : i64} {
  func.func @_conv_ln_prelu_kernel(%arg0: i32, %arg1: memref<8x768xbf16, #tpu.memory_space<vmem>>, %arg2: memref<8x384xbf16, #tpu.memory_space<vmem>>, %arg3: memref<9x8x24xbf16, #tpu.memory_space<vmem>>, %arg4: memref<8x4xf32, #tpu.memory_space<vmem>>, %arg5: memref<1x768xbf16, #tpu.memory_space<vmem>>, %arg6: memref<8x768xf32, #tpu.memory_space<vmem>>) attributes {dimension_semantics = [#tpu.dimension_semantics<parallel>], iteration_bounds = array<i64: 5>, scalar_prefetch = 0 : i64, scratch_operands = 0 : i64, tpu.core_type = #tpu.core_type<tc>, window_params = [{transform_indices = @transform_0, window_bounds = array<i64: 8, 768>}, {transform_indices = @transform_1, window_bounds = array<i64: 8, 384>}, {pipeline_mode = #tpu.pipeline_mode<synchronous>, transform_indices = @transform_2, window_bounds = array<i64: 9, 8, 24>}, {pipeline_mode = #tpu.pipeline_mode<synchronous>, transform_indices = @transform_3, window_bounds = array<i64: 8, 4>}, {transform_indices = @transform_4, window_bounds = array<i64: 1, 768>}, {transform_indices = @transform_5, window_bounds = array<i64: 8, 768>}]} {
    %c0 = arith.constant 0 : index
    %c0_0 = arith.constant 0 : index
    %0 = vector.load %arg1[%c0, %c0_0] : memref<8x768xbf16, #tpu.memory_space<vmem>>, vector<8x768xbf16>
    %c0_1 = arith.constant 0 : index
    %c0_2 = arith.constant 0 : index
    %1 = vector.load %arg2[%c0_1, %c0_2] : memref<8x384xbf16, #tpu.memory_space<vmem>>, vector<8x384xbf16>
    %2 = tpu.concatenate %0, %1 in 1 : vector<8x768xbf16>, vector<8x384xbf16> -> vector<8x1152xbf16>
    %cst = arith.constant 0.000000e+00 : f32
    %3 = vector.broadcast %cst : f32 to vector<8x768xf32>
    %4 = vector.extract_strided_slice %2 {offsets = [0, 0], sizes = [8, 768], strides = [1, 1]} : vector<8x1152xbf16> to vector<8x768xbf16>
    %5 = vector.extract_strided_slice %2 {offsets = [0, 1], sizes = [8, 768], strides = [1, 1]} : vector<8x1152xbf16> to vector<8x768xbf16>
    %6 = vector.extract_strided_slice %2 {offsets = [0, 2], sizes = [8, 768], strides = [1, 1]} : vector<8x1152xbf16> to vector<8x768xbf16>
    %7 = tpu.concatenate %4, %5, %6 in 0 : vector<8x768xbf16>, vector<8x768xbf16>, vector<8x768xbf16> -> vector<24x768xbf16>
    %c0_3 = arith.constant 0 : index
    %c0_4 = arith.constant 0 : index
    %c0_5 = arith.constant 0 : index
    %8 = vector.load %arg3[%c0_3, %c0_4, %c0_5] : memref<9x8x24xbf16, #tpu.memory_space<vmem>>, vector<1x8x24xbf16>
    %9 = vector.shape_cast %8 : vector<1x8x24xbf16> to vector<8x24xbf16>
    %cst_6 = arith.constant dense<0.000000e+00> : vector<8x768xf32>
    %10 = tpu.matmul %9, %7, %cst_6 {dimension_numbers = #tpu.dot_dimension_numbers<[1], [0], [0], [1], [0, 0, 1, 1], [], []>} : vector<8x24xbf16>, vector<24x768xbf16>, vector<8x768xf32> -> vector<8x768xf32>
    %11 = arith.addf %3, %10 : vector<8x768xf32>
    %12 = vector.extract_strided_slice %2 {offsets = [0, 12], sizes = [8, 768], strides = [1, 1]} : vector<8x1152xbf16> to vector<8x768xbf16>
    %13 = vector.extract_strided_slice %2 {offsets = [0, 13], sizes = [8, 768], strides = [1, 1]} : vector<8x1152xbf16> to vector<8x768xbf16>
    %14 = vector.extract_strided_slice %2 {offsets = [0, 14], sizes = [8, 768], strides = [1, 1]} : vector<8x1152xbf16> to vector<8x768xbf16>
    %15 = tpu.concatenate %12, %13, %14 in 0 : vector<8x768xbf16>, vector<8x768xbf16>, vector<8x768xbf16> -> vector<24x768xbf16>
    %c1 = arith.constant 1 : index
    %c0_7 = arith.constant 0 : index
    %c0_8 = arith.constant 0 : index
    %16 = vector.load %arg3[%c1, %c0_7, %c0_8] : memref<9x8x24xbf16, #tpu.memory_space<vmem>>, vector<1x8x24xbf16>
    %17 = vector.shape_cast %16 : vector<1x8x24xbf16> to vector<8x24xbf16>
    %cst_9 = arith.constant dense<0.000000e+00> : vector<8x768xf32>
    %18 = tpu.matmul %17, %15, %cst_9 {dimension_numbers = #tpu.dot_dimension_numbers<[1], [0], [0], [1], [0, 0, 1, 1], [], []>} : vector<8x24xbf16>, vector<24x768xbf16>, vector<8x768xf32> -> vector<8x768xf32>
    %19 = arith.addf %11, %18 : vector<8x768xf32>
    %20 = vector.extract_strided_slice %2 {offsets = [0, 24], sizes = [8, 768], strides = [1, 1]} : vector<8x1152xbf16> to vector<8x768xbf16>
    %21 = vector.extract_strided_slice %2 {offsets = [0, 25], sizes = [8, 768], strides = [1, 1]} : vector<8x1152xbf16> to vector<8x768xbf16>
    %22 = vector.extract_strided_slice %2 {offsets = [0, 26], sizes = [8, 768], strides = [1, 1]} : vector<8x1152xbf16> to vector<8x768xbf16>
    %23 = tpu.concatenate %20, %21, %22 in 0 : vector<8x768xbf16>, vector<8x768xbf16>, vector<8x768xbf16> -> vector<24x768xbf16>
    %c2 = arith.constant 2 : index
    %c0_10 = arith.constant 0 : index
    %c0_11 = arith.constant 0 : index
    %24 = vector.load %arg3[%c2, %c0_10, %c0_11] : memref<9x8x24xbf16, #tpu.memory_space<vmem>>, vector<1x8x24xbf16>
    %25 = vector.shape_cast %24 : vector<1x8x24xbf16> to vector<8x24xbf16>
    %cst_12 = arith.constant dense<0.000000e+00> : vector<8x768xf32>
    %26 = tpu.matmul %25, %23, %cst_12 {dimension_numbers = #tpu.dot_dimension_numbers<[1], [0], [0], [1], [0, 0, 1, 1], [], []>} : vector<8x24xbf16>, vector<24x768xbf16>, vector<8x768xf32> -> vector<8x768xf32>
    %27 = arith.addf %19, %26 : vector<8x768xf32>
    %28 = vector.extract_strided_slice %2 {offsets = [0, 144], sizes = [8, 768], strides = [1, 1]} : vector<8x1152xbf16> to vector<8x768xbf16>
    %29 = vector.extract_strided_slice %2 {offsets = [0, 145], sizes = [8, 768], strides = [1, 1]} : vector<8x1152xbf16> to vector<8x768xbf16>
    %30 = vector.extract_strided_slice %2 {offsets = [0, 146], sizes = [8, 768], strides = [1, 1]} : vector<8x1152xbf16> to vector<8x768xbf16>
    %31 = tpu.concatenate %28, %29, %30 in 0 : vector<8x768xbf16>, vector<8x768xbf16>, vector<8x768xbf16> -> vector<24x768xbf16>
    %c3 = arith.constant 3 : index
    %c0_13 = arith.constant 0 : index
    %c0_14 = arith.constant 0 : index
    %32 = vector.load %arg3[%c3, %c0_13, %c0_14] : memref<9x8x24xbf16, #tpu.memory_space<vmem>>, vector<1x8x24xbf16>
    %33 = vector.shape_cast %32 : vector<1x8x24xbf16> to vector<8x24xbf16>
    %cst_15 = arith.constant dense<0.000000e+00> : vector<8x768xf32>
    %34 = tpu.matmul %33, %31, %cst_15 {dimension_numbers = #tpu.dot_dimension_numbers<[1], [0], [0], [1], [0, 0, 1, 1], [], []>} : vector<8x24xbf16>, vector<24x768xbf16>, vector<8x768xf32> -> vector<8x768xf32>
    %35 = arith.addf %27, %34 : vector<8x768xf32>
    %36 = vector.extract_strided_slice %2 {offsets = [0, 156], sizes = [8, 768], strides = [1, 1]} : vector<8x1152xbf16> to vector<8x768xbf16>
    %37 = vector.extract_strided_slice %2 {offsets = [0, 157], sizes = [8, 768], strides = [1, 1]} : vector<8x1152xbf16> to vector<8x768xbf16>
    %38 = vector.extract_strided_slice %2 {offsets = [0, 158], sizes = [8, 768], strides = [1, 1]} : vector<8x1152xbf16> to vector<8x768xbf16>
    %39 = tpu.concatenate %36, %37, %38 in 0 : vector<8x768xbf16>, vector<8x768xbf16>, vector<8x768xbf16> -> vector<24x768xbf16>
    %c4 = arith.constant 4 : index
    %c0_16 = arith.constant 0 : index
    %c0_17 = arith.constant 0 : index
    %40 = vector.load %arg3[%c4, %c0_16, %c0_17] : memref<9x8x24xbf16, #tpu.memory_space<vmem>>, vector<1x8x24xbf16>
    %41 = vector.shape_cast %40 : vector<1x8x24xbf16> to vector<8x24xbf16>
    %cst_18 = arith.constant dense<0.000000e+00> : vector<8x768xf32>
    %42 = tpu.matmul %41, %39, %cst_18 {dimension_numbers = #tpu.dot_dimension_numbers<[1], [0], [0], [1], [0, 0, 1, 1], [], []>} : vector<8x24xbf16>, vector<24x768xbf16>, vector<8x768xf32> -> vector<8x768xf32>
    %43 = arith.addf %35, %42 : vector<8x768xf32>
    %44 = vector.extract_strided_slice %2 {offsets = [0, 168], sizes = [8, 768], strides = [1, 1]} : vector<8x1152xbf16> to vector<8x768xbf16>
    %45 = vector.extract_strided_slice %2 {offsets = [0, 169], sizes = [8, 768], strides = [1, 1]} : vector<8x1152xbf16> to vector<8x768xbf16>
    %46 = vector.extract_strided_slice %2 {offsets = [0, 170], sizes = [8, 768], strides = [1, 1]} : vector<8x1152xbf16> to vector<8x768xbf16>
    %47 = tpu.concatenate %44, %45, %46 in 0 : vector<8x768xbf16>, vector<8x768xbf16>, vector<8x768xbf16> -> vector<24x768xbf16>
    %c5 = arith.constant 5 : index
    %c0_19 = arith.constant 0 : index
    %c0_20 = arith.constant 0 : index
    %48 = vector.load %arg3[%c5, %c0_19, %c0_20] : memref<9x8x24xbf16, #tpu.memory_space<vmem>>, vector<1x8x24xbf16>
    %49 = vector.shape_cast %48 : vector<1x8x24xbf16> to vector<8x24xbf16>
    %cst_21 = arith.constant dense<0.000000e+00> : vector<8x768xf32>
    %50 = tpu.matmul %49, %47, %cst_21 {dimension_numbers = #tpu.dot_dimension_numbers<[1], [0], [0], [1], [0, 0, 1, 1], [], []>} : vector<8x24xbf16>, vector<24x768xbf16>, vector<8x768xf32> -> vector<8x768xf32>
    %51 = arith.addf %43, %50 : vector<8x768xf32>
    %52 = vector.extract_strided_slice %2 {offsets = [0, 288], sizes = [8, 768], strides = [1, 1]} : vector<8x1152xbf16> to vector<8x768xbf16>
    %53 = vector.extract_strided_slice %2 {offsets = [0, 289], sizes = [8, 768], strides = [1, 1]} : vector<8x1152xbf16> to vector<8x768xbf16>
    %54 = vector.extract_strided_slice %2 {offsets = [0, 290], sizes = [8, 768], strides = [1, 1]} : vector<8x1152xbf16> to vector<8x768xbf16>
    %55 = tpu.concatenate %52, %53, %54 in 0 : vector<8x768xbf16>, vector<8x768xbf16>, vector<8x768xbf16> -> vector<24x768xbf16>
    %c6 = arith.constant 6 : index
    %c0_22 = arith.constant 0 : index
    %c0_23 = arith.constant 0 : index
    %56 = vector.load %arg3[%c6, %c0_22, %c0_23] : memref<9x8x24xbf16, #tpu.memory_space<vmem>>, vector<1x8x24xbf16>
    %57 = vector.shape_cast %56 : vector<1x8x24xbf16> to vector<8x24xbf16>
    %cst_24 = arith.constant dense<0.000000e+00> : vector<8x768xf32>
    %58 = tpu.matmul %57, %55, %cst_24 {dimension_numbers = #tpu.dot_dimension_numbers<[1], [0], [0], [1], [0, 0, 1, 1], [], []>} : vector<8x24xbf16>, vector<24x768xbf16>, vector<8x768xf32> -> vector<8x768xf32>
    %59 = arith.addf %51, %58 : vector<8x768xf32>
    %60 = vector.extract_strided_slice %2 {offsets = [0, 300], sizes = [8, 768], strides = [1, 1]} : vector<8x1152xbf16> to vector<8x768xbf16>
    %61 = vector.extract_strided_slice %2 {offsets = [0, 301], sizes = [8, 768], strides = [1, 1]} : vector<8x1152xbf16> to vector<8x768xbf16>
    %62 = vector.extract_strided_slice %2 {offsets = [0, 302], sizes = [8, 768], strides = [1, 1]} : vector<8x1152xbf16> to vector<8x768xbf16>
    %63 = tpu.concatenate %60, %61, %62 in 0 : vector<8x768xbf16>, vector<8x768xbf16>, vector<8x768xbf16> -> vector<24x768xbf16>
    %c7 = arith.constant 7 : index
    %c0_25 = arith.constant 0 : index
    %c0_26 = arith.constant 0 : index
    %64 = vector.load %arg3[%c7, %c0_25, %c0_26] : memref<9x8x24xbf16, #tpu.memory_space<vmem>>, vector<1x8x24xbf16>
    %65 = vector.shape_cast %64 : vector<1x8x24xbf16> to vector<8x24xbf16>
    %cst_27 = arith.constant dense<0.000000e+00> : vector<8x768xf32>
    %66 = tpu.matmul %65, %63, %cst_27 {dimension_numbers = #tpu.dot_dimension_numbers<[1], [0], [0], [1], [0, 0, 1, 1], [], []>} : vector<8x24xbf16>, vector<24x768xbf16>, vector<8x768xf32> -> vector<8x768xf32>
    %67 = arith.addf %59, %66 : vector<8x768xf32>
    %68 = vector.extract_strided_slice %2 {offsets = [0, 312], sizes = [8, 768], strides = [1, 1]} : vector<8x1152xbf16> to vector<8x768xbf16>
    %69 = vector.extract_strided_slice %2 {offsets = [0, 313], sizes = [8, 768], strides = [1, 1]} : vector<8x1152xbf16> to vector<8x768xbf16>
    %70 = vector.extract_strided_slice %2 {offsets = [0, 314], sizes = [8, 768], strides = [1, 1]} : vector<8x1152xbf16> to vector<8x768xbf16>
    %71 = tpu.concatenate %68, %69, %70 in 0 : vector<8x768xbf16>, vector<8x768xbf16>, vector<8x768xbf16> -> vector<24x768xbf16>
    %c8 = arith.constant 8 : index
    %c0_28 = arith.constant 0 : index
    %c0_29 = arith.constant 0 : index
    %72 = vector.load %arg3[%c8, %c0_28, %c0_29] : memref<9x8x24xbf16, #tpu.memory_space<vmem>>, vector<1x8x24xbf16>
    %73 = vector.shape_cast %72 : vector<1x8x24xbf16> to vector<8x24xbf16>
    %cst_30 = arith.constant dense<0.000000e+00> : vector<8x768xf32>
    %74 = tpu.matmul %73, %71, %cst_30 {dimension_numbers = #tpu.dot_dimension_numbers<[1], [0], [0], [1], [0, 0, 1, 1], [], []>} : vector<8x24xbf16>, vector<24x768xbf16>, vector<8x768xf32> -> vector<8x768xf32>
    %75 = arith.addf %67, %74 : vector<8x768xf32>
    %c0_31 = arith.constant 0 : index
    %c0_32 = arith.constant 0 : index
    %76 = vector.load %arg4[%c0_31, %c0_32] : memref<8x4xf32, #tpu.memory_space<vmem>>, vector<8x1xf32>
    %c0_33 = arith.constant 0 : index
    %c1_34 = arith.constant 1 : index
    %77 = vector.load %arg4[%c0_33, %c1_34] : memref<8x4xf32, #tpu.memory_space<vmem>>, vector<8x1xf32>
    %c0_35 = arith.constant 0 : index
    %c2_36 = arith.constant 2 : index
    %78 = vector.load %arg4[%c0_35, %c2_36] : memref<8x4xf32, #tpu.memory_space<vmem>>, vector<8x1xf32>
    %c0_37 = arith.constant 0 : index
    %c3_38 = arith.constant 3 : index
    %79 = vector.load %arg4[%c0_37, %c3_38] : memref<8x4xf32, #tpu.memory_space<vmem>>, vector<8x1xf32>
    %80 = vector.broadcast %76 : vector<8x1xf32> to vector<8x768xf32>
    %81 = arith.addf %75, %80 : vector<8x768xf32>
    %cst_39 = arith.constant dense<0.000000e+00> : vector<768xf32>
    %82 = vector.multi_reduction <add>, %81, %cst_39 [0] : vector<8x768xf32> to vector<768xf32>
    %83 = vector.shape_cast %82 : vector<768xf32> to vector<1x768xf32>
    %cst_40 = arith.constant 8.000000e+00 : f32
    %84 = vector.broadcast %cst_40 : f32 to vector<1x768xf32>
    %85 = arith.divf %83, %84 : vector<1x768xf32>
    %86 = vector.broadcast %85 : vector<1x768xf32> to vector<8x768xf32>
    %87 = arith.subf %81, %86 : vector<8x768xf32>
    %88 = arith.mulf %87, %87 : vector<8x768xf32>
    %cst_41 = arith.constant dense<0.000000e+00> : vector<768xf32>
    %89 = vector.multi_reduction <add>, %88, %cst_41 [0] : vector<8x768xf32> to vector<768xf32>
    %90 = vector.shape_cast %89 : vector<768xf32> to vector<1x768xf32>
    %cst_42 = arith.constant 8.000000e+00 : f32
    %91 = vector.broadcast %cst_42 : f32 to vector<1x768xf32>
    %92 = arith.divf %90, %91 : vector<1x768xf32>
    %cst_43 = arith.constant 9.99999974E-6 : f32
    %93 = vector.broadcast %cst_43 : f32 to vector<1x768xf32>
    %94 = arith.addf %92, %93 : vector<1x768xf32>
    %95 = math.rsqrt %94 : vector<1x768xf32>
    %96 = vector.broadcast %95 : vector<1x768xf32> to vector<8x768xf32>
    %97 = arith.mulf %87, %96 : vector<8x768xf32>
    %98 = vector.broadcast %77 : vector<8x1xf32> to vector<8x768xf32>
    %99 = arith.mulf %97, %98 : vector<8x768xf32>
    %100 = vector.broadcast %78 : vector<8x1xf32> to vector<8x768xf32>
    %101 = arith.addf %99, %100 : vector<8x768xf32>
    %cst_44 = arith.constant 0.000000e+00 : f32
    %102 = vector.broadcast %cst_44 : f32 to vector<8x768xf32>
    %103 = arith.cmpf oge, %101, %102 : vector<8x768xf32>
    %104 = vector.broadcast %79 : vector<8x1xf32> to vector<8x768xf32>
    %105 = arith.mulf %104, %101 : vector<8x768xf32>
    %106 = arith.select %103, %101, %105 : vector<8x768xi1>, vector<8x768xf32>
    %c0_45 = arith.constant 0 : index
    %c0_46 = arith.constant 0 : index
    %107 = vector.load %arg5[%c0_45, %c0_46] : memref<1x768xbf16, #tpu.memory_space<vmem>>, vector<1x768xbf16>
    %108 = arith.extf %107 : vector<1x768xbf16> to vector<1x768xf32>
    %109 = vector.broadcast %108 : vector<1x768xf32> to vector<8x768xf32>
    %110 = arith.mulf %106, %109 : vector<8x768xf32>
    %c0_47 = arith.constant 0 : index
    %c0_48 = arith.constant 0 : index
    %111 = vector.load %arg6[%c0_47, %c0_48] : memref<8x768xf32, #tpu.memory_space<vmem>>, vector<8x768xf32>
    tpu.vector_store %arg6[%c0_47, %c0_48], %110 {strides = array<i32>} : memref<8x768xf32, #tpu.memory_space<vmem>>, vector<8x768xf32>,
    return
  }
  func.func @transform_0(%arg0: i32) -> (i32, i32) {
    %c0_i32 = arith.constant 0 : i32
    %c0_i32_0 = arith.constant 0 : i32
    return %c0_i32, %arg0 : i32, i32
  }
  func.func @transform_1(%arg0: i32) -> (i32, i32) {
    %c1_i32 = arith.constant 1 : i32
    %0 = arith.addi %arg0, %c1_i32 : i32
    %c2_i32 = arith.constant 2 : i32
    %1 = arith.muli %0, %c2_i32 : i32
    %c9_i32 = arith.constant 9 : i32
    %2 = arith.minsi %1, %c9_i32 : i32
    %c0_i32 = arith.constant 0 : i32
    %c0_i32_0 = arith.constant 0 : i32
    return %c0_i32, %2 : i32, i32
  }
  func.func @transform_2(%arg0: i32) -> (i32, i32, i32) {
    %c0_i32 = arith.constant 0 : i32
    %c0_i32_0 = arith.constant 0 : i32
    %c0_i32_1 = arith.constant 0 : i32
    %c0_i32_2 = arith.constant 0 : i32
    return %c0_i32, %c0_i32_0, %c0_i32_1 : i32, i32, i32
  }
  func.func @transform_3(%arg0: i32) -> (i32, i32) {
    %c0_i32 = arith.constant 0 : i32
    %c0_i32_0 = arith.constant 0 : i32
    %c0_i32_1 = arith.constant 0 : i32
    return %c0_i32, %c0_i32_0 : i32, i32
  }
  func.func @transform_4(%arg0: i32) -> (i32, i32) {
    %c0_i32 = arith.constant 0 : i32
    %c0_i32_0 = arith.constant 0 : i32
    return %c0_i32, %arg0 : i32, i32
  }
  func.func @transform_5(%arg0: i32) -> (i32, i32) {
    %c0_i32 = arith.constant 0 : i32
    %c0_i32_0 = arith.constant 0 : i32
    return %c0_i32, %arg0 : i32, i32
  }
}

</mosaic_0001>

<llo_original>
// kernel: tile.14
$region0: #{tile.14}
  #allocation0 [shape = 's32[1]{0}', space=sflag, size = 0x4, scoped, tag = 'scoped memory for tile.14']
  %s0 = inlined_call_operand.vmem [shape: bf16[1728], index: 0, kind: input, shape index: {}]
  %s1 = inlined_call_operand.vmem [shape: bf16[2,1728], index: 1, kind: output, shape index: {}]
  // Predicated region
  $region2: #{tile.14} parent=0 // pred_check
    _
  $region3: #{tile.14} parent=0 // pred_check_branch
    %3 = sbr.rel (0) target = $region5
  $region4: #{tile.14} parent=0 // pred_region
    _
  $region5: #{tile.14} parent=0 // pred_fallthru
    _
  %v4 = vld [vmem:[%s0] ss:$0 sm:$0xff]
  %v5 = vunpack.i.l.bf16 %v4
  %v7 = vunpack.i.h.bf16 %v4
  %v9 = vpack.c.bf16 0.0, %v5
  %10 = vst [vmem:[%s1] sm:$0x1] %v9
  %v11 = vld [vmem:[%s0] ss:$0 sm:$0xff]
  %v12 = vunpack.i.l.bf16 %v11
  %v14 = vunpack.i.h.bf16 %v11
  %s16 = scalar_lea.vmem %s1, 1
  %v17 = vpack.c.bf16 0.0, %v14
  %18 = vst [vmem:[%s16] sm:$0x1] %v17
  %s19 = scalar_lea.vmem %s0, 1
  %v20 = vld [vmem:[%s19] ss:$0 sm:$0xff]
  %v21 = vunpack.i.l.bf16 %v20
  %v23 = vunpack.i.h.bf16 %v20
  %s25 = scalar_lea.vmem %s1, 2
  %v26 = vpack.c.bf16 0.0, %v21
  %27 = vst [vmem:[%s25] sm:$0x1] %v26
  %s28 = scalar_lea.vmem %s0, 1
  %v29 = vld [vmem:[%s28] ss:$0 sm:$0xff]
  %v30 = vunpack.i.l.bf16 %v29
  %v32 = vunpack.i.h.bf16 %v29
  %s34 = scalar_lea.vmem %s1, 3
  %v35 = vpack.c.bf16 0.0, %v32
  %36 = vst [vmem:[%s34] sm:$0x1] %v35
  %s37 = scalar_lea.vmem %s0, 2
  %v38 = vld [vmem:[%s37] ss:$0 sm:$0xff]
  %v39 = vunpack.i.l.bf16 %v38
  %v41 = vunpack.i.h.bf16 %v38
  %s43 = scalar_lea.vmem %s1, 4
  %v44 = vpack.c.bf16 0.0, %v39
  %45 = vst [vmem:[%s43] sm:$0x1] %v44
  %s46 = scalar_lea.vmem %s0, 2
  %v47 = vld [vmem:[%s46] ss:$0 sm:$0xff]
  %v48 = vunpack.i.l.bf16 %v47
  %v50 = vunpack.i.h.bf16 %v47
  %s52 = scalar_lea.vmem %s1, 5
  %v53 = vpack.c.bf16 0.0, %v50
  %54 = vst [vmem:[%s52] sm:$0x1] %v53
  %s55 = scalar_lea.vmem %s0, 3
  %v56 = vld [vmem:[%s55] ss:$0 sm:$0xff]
  %v57 = vunpack.i.l.bf16 %v56
  %v59 = vunpack.i.h.bf16 %v56
  %s61 = scalar_lea.vmem %s1, 6
  %v62 = vpack.c.bf16 0.0, %v57
  %63 = vst [vmem:[%s61] sm:$0x1] %v62
  %s64 = scalar_lea.vmem %s0, 3
  %v65 = vld [vmem:[%s64] ss:$0 sm:$0xff]
  %v66 = vunpack.i.l.bf16 %v65
  %v68 = vunpack.i.h.bf16 %v65
  %s70 = scalar_lea.vmem %s1, 7
  %v71 = vpack.c.bf16 0.0, %v68
  %72 = vst [vmem:[%s70] sm:$0x1] %v71
  %s73 = scalar_lea.vmem %s0, 4
  %v74 = vld [vmem:[%s73] ss:$0 sm:$0xff]
  %v75 = vunpack.i.l.bf16 %v74
  %v77 = vunpack.i.h.bf16 %v74
  %s79 = scalar_lea.vmem %s1, 8
  %v80 = vpack.c.bf16 0.0, %v75
  %81 = vst [vmem:[%s79] sm:$0x1] %v80
  %s82 = scalar_lea.vmem %s0, 4
  %v83 = vld [vmem:[%s82] ss:$0 sm:$0xff]
  %v84 = vunpack.i.l.bf16 %v83
  %v86 = vunpack.i.h.bf16 %v83
  %s88 = scalar_lea.vmem %s1, 9
  %v89 = vpack.c.bf16 0.0, %v86
  %90 = vst [vmem:[%s88] sm:$0x1] %v89
  %s91 = scalar_lea.vmem %s0, 4
  %s92 = scalar_lea.vmem %s91, 1
  %v93 = vld [vmem:[%s92] ss:$0 sm:$0xff]
  %v94 = vunpack.i.l.bf16 %v93
  %v96 = vunpack.i.h.bf16 %v93
  %s98 = scalar_lea.vmem %s1, 10
  %v99 = vpack.c.bf16 0.0, %v94
  %100 = vst [vmem:[%s98] sm:$0x1] %v99
  %s101 = scalar_lea.vmem %s0, 4
  %s102 = scalar_lea.vmem %s101, 1
  %v103 = vld [vmem:[%s102] ss:$0 sm:$0xff]
  %v104 = vunpack.i.l.bf16 %v103
  %v106 = vunpack.i.h.bf16 %v103
  %s108 = scalar_lea.vmem %s1, 11
  %v109 = vpack.c.bf16 0.0, %v106
  %110 = vst [vmem:[%s108] sm:$0x1] %v109
  %s111 = scalar_lea.vmem %s0, 4
  %s112 = scalar_lea.vmem %s111, 2
  %v113 = vld [vmem:[%s112] ss:$0 sm:$0xff]
  %v114 = vunpack.i.l.bf16 %v113
  %v116 = vunpack.i.h.bf16 %v113
  %s118 = scalar_lea.vmem %s1, 12
  %v119 = vpack.c.bf16 0.0, %v114
  %120 = vst [vmem:[%s118] sm:$0x1] %v119
  %s121 = scalar_lea.vmem %s0, 4
  %s122 = scalar_lea.vmem %s121, 2
  %v123 = vld [vmem:[%s122] ss:$0 sm:$0xff]
  %v124 = vunpack.i.l.bf16 %v123
  %v126 = vunpack.i.h.bf16 %v123
  %s128 = scalar_lea.vmem %s1, 13
  %v129 = vpack.c.bf16 0.0, %v126
  %130 = vst [vmem:[%s128] sm:$0x1] %v129

// kernel: tile.13
$region0: #{tile.13}
  %s0 = inlined_call_operand.vmem [shape: bf16[12,12,12], index: 0, kind: input, shape index: {}]
  %s1 = inlined_call_operand.vmem [shape: bf16[1728], index: 1, kind: output, shape index: {}]
  $region1: #{tile.13} parent=0
    #allocation0 [shape = 'u8[8192]{0}', space=vmem, size = 0x2000, scoped, tag = 'scoped mem for output reshape']
    #allocation1 [shape = 'u8[98304]{0}', space=vmem, size = 0x18000, scoped, tag = 'scoped mem for input reshape']
    %s3 = smul.u32 4, 2
    %s4 = sshll.u32 1, %s3
    %s5 = ssub.s32 %s4, 1
    %s6 = smul.addr 4, 23
    %s7 = scalar_lea.vmem %s0, %s6
    %s8 = sshrl.u32 %s5, 1
    %s9 = sor.u32 %s5, %s8
    %s10 = sand.u32 %s9, 85
    %s11 = sshrl.u32 %s10, 1
    %s12 = sor.u32 %s10, %s11
    %s13 = sand.u32 51, %s12
    %s14 = sshrl.u32 %s13, 2
    %s15 = sor.u32 %s13, %s14
    %s16 = sand.u32 15, %s15
    %v17 = vld [vmem:[%s7] sm:%s16]
    %v18 = vunpack.c.l.bf16 %v17
    %v19 = vunpack.c.h.bf16 %v17
    %s20 = scalar_lea.vmem [#allocation1], 184
    %21 = vst [vmem:[%s20] sm:%s5] %v18
    %s22 = smul.addr 4, 22
    %s23 = scalar_lea.vmem %s0, %s22
    %s24 = sshrl.u32 %s5, 1
    %s25 = sor.u32 %s5, %s24
    %s26 = sand.u32 %s25, 85
    %s27 = sshrl.u32 %s26, 1
    %s28 = sor.u32 %s26, %s27
    %s29 = sand.u32 51, %s28
    %s30 = sshrl.u32 %s29, 2
    %s31 = sor.u32 %s29, %s30
    %s32 = sand.u32 15, %s31
    %v33 = vld [vmem:[%s23] sm:%s32]
    %v34 = vunpack.c.l.bf16 %v33
    %v35 = vunpack.c.h.bf16 %v33
    %s36 = scalar_lea.vmem [#allocation1], 176
    %37 = vst [vmem:[%s36] sm:%s5] %v34
    %s38 = smul.addr 4, 21
    %s39 = scalar_lea.vmem %s0, %s38
    %s40 = sshrl.u32 %s5, 1
    %s41 = sor.u32 %s5, %s40
    %s42 = sand.u32 %s41, 85
    %s43 = sshrl.u32 %s42, 1
    %s44 = sor.u32 %s42, %s43
    %s45 = sand.u32 51, %s44
    %s46 = sshrl.u32 %s45, 2
    %s47 = sor.u32 %s45, %s46
    %s48 = sand.u32 15, %s47
    %v49 = vld [vmem:[%s39] sm:%s48]
    %v50 = vunpack.c.l.bf16 %v49
    %v51 = vunpack.c.h.bf16 %v49
    %s52 = scalar_lea.vmem [#allocation1], 168
    %53 = vst [vmem:[%s52] sm:%s5] %v50
    %s54 = smul.addr 4, 20
    %s55 = scalar_lea.vmem %s0, %s54
    %s56 = sshrl.u32 %s5, 1
    %s57 = sor.u32 %s5, %s56
    %s58 = sand.u32 %s57, 85
    %s59 = sshrl.u32 %s58, 1
    %s60 = sor.u32 %s58, %s59
    %s61 = sand.u32 51, %s60
    %s62 = sshrl.u32 %s61, 2
    %s63 = sor.u32 %s61, %s62
    %s64 = sand.u32 15, %s63
    %v65 = vld [vmem:[%s55] sm:%s64]
    %v66 = vunpack.c.l.bf16 %v65
    %v67 = vunpack.c.h.bf16 %v65
    %s68 = scalar_lea.vmem [#allocation1], 160
    %69 = vst [vmem:[%s68] sm:%s5] %v66
    %s70 = smul.addr 4, 19
    %s71 = scalar_lea.vmem %s0, %s70
    %s72 = sshrl.u32 %s5, 1
    %s73 = sor.u32 %s5, %s72
    %s74 = sand.u32 %s73, 85
    %s75 = sshrl.u32 %s74, 1
    %s76 = sor.u32 %s74, %s75
    %s77 = sand.u32 51, %s76
    %s78 = sshrl.u32 %s77, 2
    %s79 = sor.u32 %s77, %s78
    %s80 = sand.u32 15, %s79
    %v81 = vld [vmem:[%s71] sm:%s80]
    %v82 = vunpack.c.l.bf16 %v81
    %v83 = vunpack.c.h.bf16 %v81
    %s84 = scalar_lea.vmem [#allocation1], 152
    %85 = vst [vmem:[%s84] sm:%s5] %v82
    %s86 = smul.addr 4, 18
    %s87 = scalar_lea.vmem %s0, %s86
    %s88 = sshrl.u32 %s5, 1
    %s89 = sor.u32 %s5, %s88
    %s90 = sand.u32 %s89, 85
    %s91 = sshrl.u32 %s90, 1
    %s92 = sor.u32 %s90, %s91
    %s93 = sand.u32 51, %s92
    %s94 = sshrl.u32 %s93, 2
    %s95 = sor.u32 %s93, %s94
    %s96 = sand.u32 15, %s95
    %v97 = vld [vmem:[%s87] sm:%s96]
    %v98 = vunpack.c.l.bf16 %v97
    %v99 = vunpack.c.h.bf16 %v97
    %s100 = scalar_lea.vmem [#allocation1], 144
    %101 = vst [vmem:[%s100] sm:%s5] %v98
    %s102 = smul.addr 4, 17
    %s103 = scalar_lea.vmem %s0, %s102
    %s104 = sshrl.u32 %s5, 1
    %s105 = sor.u32 %s5, %s104
    %s106 = sand.u32 %s105, 85
    %s107 = sshrl.u32 %s106, 1
    %s108 = sor.u32 %s106, %s107
    %s109 = sand.u32 51, %s108
    %s110 = sshrl.u32 %s109, 2
    %s111 = sor.u32 %s109, %s110
    %s112 = sand.u32 15, %s111
    %v113 = vld [vmem:[%s103] sm:%s112]
    %v114 = vunpack.c.l.bf16 %v113
    %v115 = vunpack.c.h.bf16 %v113
    %s116 = scalar_lea.vmem [#allocation1], 136
    %117 = vst [vmem:[%s116] sm:%s5] %v114
    %s118 = smul.addr 4, 16
    %s119 = scalar_lea.vmem %s0, %s118
    %s120 = sshrl.u32 %s5, 1
    %s121 = sor.u32 %s5, %s120
    %s122 = sand.u32 %s121, 85
    %s123 = sshrl.u32 %s122, 1
    %s124 = sor.u32 %s122, %s123
    %s125 = sand.u32 51, %s124
    %s126 = sshrl.u32 %s125, 2
    %s127 = sor.u32 %s125, %s126
    %s128 = sand.u32 15, %s127
    %v129 = vld [vmem:[%s119] sm:%s128]
    %v130 = vunpack.c.l.bf16 %v129
    %v131 = vunpack.c.h.bf16 %v129
    %s132 = scalar_lea.vmem [#allocation1], 128
    %133 = vst [vmem:[%s132] sm:%s5] %v130
    %s134 = smul.addr 4, 15
    %s135 = scalar_lea.vmem %s0, %s134
    %s136 = sshrl.u32 %s5, 1
    %s137 = sor.u32 %s5, %s136
    %s138 = sand.u32 %s137, 85
    %s139 = sshrl.u32 %s138, 1
    %s140 = sor.u32 %s138, %s139
    %s141 = sand.u32 51, %s140
    %s142 = sshrl.u32 %s141, 2
    %s143 = sor.u32 %s141, %s142
    %s144 = sand.u32 15, %s143
    %v145 = vld [vmem:[%s135] sm:%s144]
    %v146 = vunpack.c.l.bf16 %v145
    %v147 = vunpack.c.h.bf16 %v145
    %s148 = scalar_lea.vmem [#allocation1], 120
    %149 = vst [vmem:[%s148] sm:%s5] %v146
    %s150 = smul.addr 4, 14
    %s151 = scalar_lea.vmem %s0, %s150
    %s152 = sshrl.u32 %s5, 1
    %s153 = sor.u32 %s5, %s152
    %s154 = sand.u32 %s153, 85
    %s155 = sshrl.u32 %s154, 1
    %s156 = sor.u32 %s154, %s155
    %s157 = sand.u32 51, %s156
    %s158 = sshrl.u32 %s157, 2
    %s159 = sor.u32 %s157, %s158
    %s160 = sand.u32 15, %s159
    %v161 = vld [vmem:[%s151] sm:%s160]
    %v162 = vunpack.c.l.bf16 %v161
    %v163 = vunpack.c.h.bf16 %v161
    %s164 = scalar_lea.vmem [#allocation1], 112
    %165 = vst [vmem:[%s164] sm:%s5] %v162
    %s166 = smul.addr 4, 13
    %s167 = scalar_lea.vmem %s0, %s166
    %s168 = sshrl.u32 %s5, 1
    %s169 = sor.u32 %s5, %s168
    %s170 = sand.u32 %s169, 85
    %s171 = sshrl.u32 %s170, 1
    %s172 = sor.u32 %s170, %s171
    %s173 = sand.u32 51, %s172
    %s174 = sshrl.u32 %s173, 2
    %s175 = sor.u32 %s173, %s174
    %s176 = sand.u32 15, %s175
    %v177 = vld [vmem:[%s167] sm:%s176]
    %v178 = vunpack.c.l.bf16 %v177
    %v179 = vunpack.c.h.bf16 %v177
    %s180 = scalar_lea.vmem [#allocation1], 104
    %181 = vst [vmem:[%s180] sm:%s5] %v178
    %s182 = smul.addr 4, 12
    %s183 = scalar_lea.vmem %s0, %s182
    %s184 = sshrl.u32 %s5, 1
    %s185 = sor.u32 %s5, %s184
    %s186 = sand.u32 %s185, 85
    %s187 = sshrl.u32 %s186, 1
    %s188 = sor.u32 %s186, %s187
    %s189 = sand.u32 51, %s188
    %s190 = sshrl.u32 %s189, 2
    %s191 = sor.u32 %s189, %s190
    %s192 = sand.u32 15, %s191
    %v193 = vld [vmem:[%s183] sm:%s192]
    %v194 = vunpack.c.l.bf16 %v193
    %v195 = vunpack.c.h.bf16 %v193
    %s196 = scalar_lea.vmem [#allocation1], 96
    %197 = vst [vmem:[%s196] sm:%s5] %v194
    %s198 = smul.addr 4, 11
    %s199 = scalar_lea.vmem %s0, %s198
    %s200 = sshrl.u32 %s5, 1
    %s201 = sor.u32 %s5, %s200
    %s202 = sand.u32 %s201, 85
    %s203 = sshrl.u32 %s202, 1
    %s204 = sor.u32 %s202, %s203
    %s205 = sand.u32 51, %s204
    %s206 = sshrl.u32 %s205, 2
    %s207 = sor.u32 %s205, %s206
    %s208 = sand.u32 15, %s207
    %v209 = vld [vmem:[%s199] sm:%s208]
    %v210 = vunpack.c.l.bf16 %v209
    %v211 = vunpack.c.h.bf16 %v209
    %s212 = scalar_lea.vmem [#allocation1], 88
    %213 = vst [vmem:[%s212] sm:%s5] %v210
    %s214 = smul.addr 4, 10
    %s215 = scalar_lea.vmem %s0, %s214
    %s216 = sshrl.u32 %s5, 1
    %s217 = sor.u32 %s5, %s216
    %s218 = sand.u32 %s217, 85
    %s219 = sshrl.u32 %s218, 1
    %s220 = sor.u32 %s218, %s219
    %s221 = sand.u32 51, %s220
    %s222 = sshrl.u32 %s221, 2
    %s223 = sor.u32 %s221, %s222
    %s224 = sand.u32 15, %s223
    %v225 = vld [vmem:[%s215] sm:%s224]
    %v226 = vunpack.c.l.bf16 %v225
    %v227 = vunpack.c.h.bf16 %v225
    %s228 = scalar_lea.vmem [#allocation1], 80
    %229 = vst [vmem:[%s228] sm:%s5] %v226
    %s230 = smul.addr 4, 9
    %s231 = scalar_lea.vmem %s0, %s230
    %s232 = sshrl.u32 %s5, 1
    %s233 = sor.u32 %s5, %s232
    %s234 = sand.u32 %s233, 85
    %s235 = sshrl.u32 %s234, 1
    %s236 = sor.u32 %s234, %s235
    %s237 = sand.u32 51, %s236
    %s238 = sshrl.u32 %s237, 2
    %s239 = sor.u32 %s237, %s238
    %s240 = sand.u32 15, %s239
    %v241 = vld [vmem:[%s231] sm:%s240]
    %v242 = vunpack.c.l.bf16 %v241
    %v243 = vunpack.c.h.bf16 %v241
    %s244 = scalar_lea.vmem [#allocation1], 72
    %245 = vst [vmem:[%s244] sm:%s5] %v242
    %s246 = smul.addr 4, 8
    %s247 = scalar_lea.vmem %s0, %s246
    %s248 = sshrl.u32 %s5, 1
    %s249 = sor.u32 %s5, %s248
    %s250 = sand.u32 %s249, 85
    %s251 = sshrl.u32 %s250, 1
    %s252 = sor.u32 %s250, %s251
    %s253 = sand.u32 51, %s252
    %s254 = sshrl.u32 %s253, 2
    %s255 = sor.u32 %s253, %s254
    %s256 = sand.u32 15, %s255
    %v257 = vld [vmem:[%s247] sm:%s256]
    %v258 = vunpack.c.l.bf16 %v257
    %v259 = vunpack.c.h.bf16 %v257
    %s260 = scalar_lea.vmem [#allocation1], 64
    %261 = vst [vmem:[%s260] sm:%s5] %v258
    %s262 = smul.addr 4, 7
    %s263 = scalar_lea.vmem %s0, %s262
    %s264 = sshrl.u32 %s5, 1
    %s265 = sor.u32 %s5, %s264
    %s266 = sand.u32 %s265, 85
    %s267 = sshrl.u32 %s266, 1
    %s268 = sor.u32 %s266, %s267
    %s269 = sand.u32 51, %s268
    %s270 = sshrl.u32 %s269, 2
    %s271 = sor.u32 %s269, %s270
    %s272 = sand.u32 15, %s271
    %v273 = vld [vmem:[%s263] sm:%s272]
    %v274 = vunpack.c.l.bf16 %v273
    %v275 = vunpack.c.h.bf16 %v273
    %s276 = scalar_lea.vmem [#allocation1], 56
    %277 = vst [vmem:[%s276] sm:%s5] %v274
    %s278 = smul.addr 4, 6
    %s279 = scalar_lea.vmem %s0, %s278
    %s280 = sshrl.u32 %s5, 1
    %s281 = sor.u32 %s5, %s280
    %s282 = sand.u32 %s281, 85
    %s283 = sshrl.u32 %s282, 1
    %s284 = sor.u32 %s282, %s283
    %s285 = sand.u32 51, %s284
    %s286 = sshrl.u32 %s285, 2
    %s287 = sor.u32 %s285, %s286
    %s288 = sand.u32 15, %s287
    %v289 = vld [vmem:[%s279] sm:%s288]
    %v290 = vunpack.c.l.bf16 %v289
    %v291 = vunpack.c.h.bf16 %v289
    %s292 = scalar_lea.vmem [#allocation1], 48
    %293 = vst [vmem:[%s292] sm:%s5] %v290
    %s294 = smul.addr 4, 5
    %s295 = scalar_lea.vmem %s0, %s294
    %s296 = sshrl.u32 %s5, 1
    %s297 = sor.u32 %s5, %s296
    %s298 = sand.u32 %s297, 85
    %s299 = sshrl.u32 %s298, 1
    %s300 = sor.u32 %s298, %s299
    %s301 = sand.u32 51, %s300
    %s302 = sshrl.u32 %s301, 2
    %s303 = sor.u32 %s301, %s302
    %s304 = sand.u32 15, %s303
    %v305 = vld [vmem:[%s295] sm:%s304]
    %v306 = vunpack.c.l.bf16 %v305
    %v307 = vunpack.c.h.bf16 %v305
    %s308 = scalar_lea.vmem [#allocation1], 40
    %309 = vst [vmem:[%s308] sm:%s5] %v306
    %s310 = smul.addr 4, 4
    %s311 = scalar_lea.vmem %s0, %s310
    %s312 = sshrl.u32 %s5, 1
    %s313 = sor.u32 %s5, %s312
    %s314 = sand.u32 %s313, 85
    %s315 = sshrl.u32 %s314, 1
    %s316 = sor.u32 %s314, %s315
    %s317 = sand.u32 51, %s316
    %s318 = sshrl.u32 %s317, 2
    %s319 = sor.u32 %s317, %s318
    %s320 = sand.u32 15, %s319
    %v321 = vld [vmem:[%s311] sm:%s320]
    %v322 = vunpack.c.l.bf16 %v321
    %v323 = vunpack.c.h.bf16 %v321
    %s324 = scalar_lea.vmem [#allocation1], 32
    %325 = vst [vmem:[%s324] sm:%s5] %v322
    %s326 = smul.addr 4, 3
    %s327 = scalar_lea.vmem %s0, %s326
    %s328 = sshrl.u32 %s5, 1
    %s329 = sor.u32 %s5, %s328
    %s330 = sand.u32 %s329, 85
    %s331 = sshrl.u32 %s330, 1
    %s332 = sor.u32 %s330, %s331
    %s333 = sand.u32 51, %s332
    %s334 = sshrl.u32 %s333, 2
    %s335 = sor.u32 %s333, %s334
    %s336 = sand.u32 15, %s335
    %v337 = vld [vmem:[%s327] sm:%s336]
    %v338 = vunpack.c.l.bf16 %v337
    %v339 = vunpack.c.h.bf16 %v337
    %s340 = scalar_lea.vmem [#allocation1], 24
    %341 = vst [vmem:[%s340] sm:%s5] %v338
    %s342 = smul.addr 4, 2
    %s343 = scalar_lea.vmem %s0, %s342
    %s344 = sshrl.u32 %s5, 1
    %s345 = sor.u32 %s5, %s344
    %s346 = sand.u32 %s345, 85
    %s347 = sshrl.u32 %s346, 1
    %s348 = sor.u32 %s346, %s347
    %s349 = sand.u32 51, %s348
    %s350 = sshrl.u32 %s349, 2
    %s351 = sor.u32 %s349, %s350
    %s352 = sand.u32 15, %s351
    %v353 = vld [vmem:[%s343] sm:%s352]
    %v354 = vunpack.c.l.bf16 %v353
    %v355 = vunpack.c.h.bf16 %v353
    %s356 = scalar_lea.vmem [#allocation1], 16
    %357 = vst [vmem:[%s356] sm:%s5] %v354
    %s358 = scalar_lea.vmem %s0, 4
    %s359 = sshrl.u32 %s5, 1
    %s360 = sor.u32 %s5, %s359
    %s361 = sand.u32 %s360, 85
    %s362 = sshrl.u32 %s361, 1
    %s363 = sor.u32 %s361, %s362
    %s364 = sand.u32 51, %s363
    %s365 = sshrl.u32 %s364, 2
    %s366 = sor.u32 %s364, %s365
    %s367 = sand.u32 15, %s366
    %v368 = vld [vmem:[%s358] sm:%s367]
    %v369 = vunpack.c.l.bf16 %v368
    %v370 = vunpack.c.h.bf16 %v368
    %s371 = scalar_lea.vmem [#allocation1], 8
    %372 = vst [vmem:[%s371] sm:%s5] %v369
    %s373 = sshrl.u32 %s5, 1
    %s374 = sor.u32 %s5, %s373
    %s375 = sand.u32 %s374, 85
    %s376 = sshrl.u32 %s375, 1
    %s377 = sor.u32 %s375, %s376
    %s378 = sand.u32 51, %s377
    %s379 = sshrl.u32 %s378, 2
    %s380 = sor.u32 %s378, %s379
    %s381 = sand.u32 15, %s380
    %v382 = vld [vmem:[%s0] sm:%s381]
    %v383 = vunpack.c.l.bf16 %v382
    %v384 = vunpack.c.h.bf16 %v382
    %385 = vst [vmem:[#allocation1] sm:%s5] %v383
    %s386 = smov 3
    %v387 = vld [vmem:[#allocation1] ss:$40 sm:%s386]
    %vm388 = vcmask 97280
    %389 = vst.msk [vmem:[#allocation0] ss:$3 sm:$0x3] %vm388, %v387
    %s390 = scalar_lea.vmem [#allocation1], 84
    %s391 = smov 3
    %v392 = vld [vmem:[%s390] ss:$44 sm:%s391]
    %vm393 = vcmask 97280
    %s394 = scalar_lea.vmem [#allocation0], 6
    %395 = vst.msk [vmem:[%s394] ss:$3 sm:$0x3] %vm393, %v392
    %s396 = scalar_lea.vmem [#allocation1], 168
    %v397 = vld [vmem:[%s396] sm:$0x1]
    %vm398 = vcmask 97280
    %s399 = scalar_lea.vmem [#allocation0], 12
    %400 = vst.msk [vmem:[%s399] sm:$0x1] %vm398, %v397
    %s401 = scalar_lea.vmem [#allocation1], 25
    %v402 = vld [vmem:[%s401] ss:$44 sm:$0x7]
    %s403 = scalar_lea.vmem [#allocation1], 150
    %v404 = vld [vmem:[%s403] sm:$0x8]
    %vm405 = vcmask 1043459
    %v406 = vsel %vm405, %v404, %v402
    %s407 = scalar_lea.vmem [#allocation1], 25
    %v408 = vld [vmem:[%s407] ss:$44 sm:$0x7]
    %s409 = scalar_lea.vmem [#allocation1], 150
    %v410 = vld [vmem:[%s409] sm:$0x8]
    %vm411 = vcmask 1043459
    %v412 = vsel %vm411, %v410, %v408
    %vm413 = vcmask 31744
    %v414 = vsel %vm413, %v412, %v406
    %415 = vrot.lane.b32.xlu0 %v414, 124
    %v416 = vpop.permute.xlu0 %415
    %vm417 = vcmask 64512
    %s418 = scalar_lea.vmem [#allocation0], 2
    %419 = vst.msk [vmem:[%s418] ss:$3 sm:$0xf] %vm417, %v416
    %vm420 = vcmask 1048544
    %s421 = scalar_lea.vmem [#allocation0], 1
    %422 = vst.msk [vmem:[%s421] ss:$3 sm:$0xf] %vm420, %v416
    %s423 = scalar_lea.vmem [#allocation1], 10
    %v424 = vld [vmem:[%s423] ss:$44 sm:$0x7]
    %s425 = scalar_lea.vmem [#allocation1], 6
    %s426 = smov 24
    %v427 = vld [vmem:[%s425] ss:$44 sm:%s426]
    %vm428 = vcmask 1044483
    %v429 = vsel %vm428, %v427, %v424
    %s430 = scalar_lea.vmem [#allocation1], 10
    %v431 = vld [vmem:[%s430] ss:$44 sm:$0x7]
    %s432 = scalar_lea.vmem [#allocation1], 6
    %s433 = smov 24
    %v434 = vld [vmem:[%s432] ss:$44 sm:%s433]
    %vm435 = vcmask 1044483
    %v436 = vsel %vm435, %v434, %v431
    %vm437 = vcmask 64512
    %v438 = vsel %vm437, %v436, %v429
    %439 = vrot.lane.b32.xlu0 %v438, 120
    %v440 = vpop.permute.xlu0 %439
    %vm441 = vcmask 31744
    %s442 = scalar_lea.vmem [#allocation0], 1
    %443 = vst.msk [vmem:[%s442] ss:$3 sm:$0x1f] %vm441, %v440
    %vm444 = vcmask 1048512
    %445 = vst.msk [vmem:[#allocation0] ss:$3 sm:$0x1f] %vm444, %v440
    %s446 = scalar_lea.vmem [#allocation1], 39
    %s447 = smov 3
    %v448 = vld [vmem:[%s446] ss:$44 sm:%s447]
    %s449 = scalar_lea.vmem [#allocation1], 35
    %s450 = smov 12
    %v451 = vld [vmem:[%s449] ss:$44 sm:%s450]
    %vm452 = vcmask 1043458
    %v453 = vsel %vm452, %v451, %v448
    %454 = vrot.lane.b32.xlu0 %v453, 116
    %v455 = vpop.permute.xlu0 %454
    %vm456 = vcmask 1048480
    %s457 = scalar_lea.vmem [#allocation0], 2
    %458 = vst.msk [vmem:[%s457] ss:$3 sm:$0xf] %vm456, %v455
    %s459 = scalar_lea.vmem [#allocation1], 24
    %v460 = vld [vmem:[%s459] ss:$44 sm:$0x7]
    %s461 = scalar_lea.vmem [#allocation1], 149
    %v462 = vld [vmem:[%s461] sm:$0x8]
    %vm463 = vcmask 1043459
    %v464 = vsel %vm463, %v462, %v460
    %465 = vrot.lane.b32.xlu0 %v464, 112
    %v466 = vpop.permute.xlu0 %465
    %vm467 = vcmask 1015680
    %s468 = scalar_lea.vmem [#allocation0], 1
    %469 = vst.msk [vmem:[%s468] ss:$3 sm:$0xf] %vm467, %v466
    %s470 = scalar_lea.vmem [#allocation1], 9
    %v471 = vld [vmem:[%s470] ss:$44 sm:$0x7]
    %s472 = scalar_lea.vmem [#allocation1], 5
    %s473 = smov 24
    %v474 = vld [vmem:[%s472] ss:$44 sm:%s473]
    %vm475 = vcmask 1044483
    %v476 = vsel %vm475, %v474, %v471
    %477 = vrot.lane.b32.xlu0 %v476, 108
    %v478 = vpop.permute.xlu0 %477
    %vm479 = vcmask 982880
    %480 = vst.msk [vmem:[#allocation0] ss:$3 sm:$0x1f] %vm479, %v478
    %s481 = scalar_lea.vmem [#allocation1], 38
    %s482 = smov 3
    %v483 = vld [vmem:[%s481] ss:$44 sm:%s482]
    %s484 = scalar_lea.vmem [#allocation1], 34
    %s485 = smov 12
    %v486 = vld [vmem:[%s484] ss:$44 sm:%s485]
    %vm487 = vcmask 1043458
    %v488 = vsel %vm487, %v486, %v483
    %489 = vrot.lane.b32.xlu0 %v488, 104
    %v490 = vpop.permute.xlu0 %489
    %vm491 = vcmask 950080
    %s492 = scalar_lea.vmem [#allocation0], 2
    %493 = vst.msk [vmem:[%s492] ss:$3 sm:$0xf] %vm491, %v490
    %s494 = scalar_lea.vmem [#allocation1], 23
    %s495 = smov 3
    %v496 = vld [vmem:[%s494] ss:$44 sm:%s495]
    %s497 = scalar_lea.vmem [#allocation1], 19
    %s498 = smov 12
    %v499 = vld [vmem:[%s497] ss:$44 sm:%s498]
    %vm500 = vcmask 1043458
    %v501 = vsel %vm500, %v499, %v496
    %502 = vrot.lane.b32.xlu0 %v501, 100
    %v503 = vpop.permute.xlu0 %502
    %vm504 = vcmask 917280
    %s505 = scalar_lea.vmem [#allocation0], 1
    %506 = vst.msk [vmem:[%s505] ss:$3 sm:$0xf] %vm504, %v503
    %s507 = scalar_lea.vmem [#allocation1], 8
    %v508 = vld [vmem:[%s507] ss:$44 sm:$0x7]
    %s509 = scalar_lea.vmem [#allocation1], 4
    %s510 = smov 24
    %v511 = vld [vmem:[%s509] ss:$44 sm:%s510]
    %vm512 = vcmask 1044483
    %v513 = vsel %vm512, %v511, %v508
    %514 = vrot.lane.b32.xlu0 %v513, 96
    %v515 = vpop.permute.xlu0 %514
    %vm516 = vcmask 884480
    %517 = vst.msk [vmem:[#allocation0] ss:$3 sm:$0x1f] %vm516, %v515
    %s518 = scalar_lea.vmem [#allocation1], 37
    %s519 = smov 3
    %v520 = vld [vmem:[%s518] ss:$44 sm:%s519]
    %s521 = scalar_lea.vmem [#allocation1], 33
    %s522 = smov 12
    %v523 = vld [vmem:[%s521] ss:$44 sm:%s522]
    %vm524 = vcmask 1043458
    %v525 = vsel %vm524, %v523, %v520
    %526 = vrot.lane.b32.xlu0 %v525, 92
    %v527 = vpop.permute.xlu0 %526
    %vm528 = vcmask 851680
    %s529 = scalar_lea.vmem [#allocation0], 2
    %530 = vst.msk [vmem:[%s529] ss:$3 sm:$0xf] %vm528, %v527
    %s531 = scalar_lea.vmem [#allocation1], 22
    %s532 = smov 3
    %v533 = vld [vmem:[%s531] ss:$44 sm:%s532]
    %s534 = scalar_lea.vmem [#allocation1], 18
    %s535 = smov 12
    %v536 = vld [vmem:[%s534] ss:$44 sm:%s535]
    %vm537 = vcmask 1043458
    %v538 = vsel %vm537, %v536, %v533
    %539 = vrot.lane.b32.xlu0 %v538, 88
    %v540 = vpop.permute.xlu0 %539
    %vm541 = vcmask 818880
    %s542 = scalar_lea.vmem [#allocation0], 1
    %543 = vst.msk [vmem:[%s542] ss:$3 sm:$0xf] %vm541, %v540
    %s544 = scalar_lea.vmem [#allocation1], 7
    %s545 = smov 3
    %v546 = vld [vmem:[%s544] ss:$44 sm:%s545]
    %s547 = scalar_lea.vmem [#allocation1], 3
    %v548 = vld [vmem:[%s547] ss:$44 sm:$0x1c]
    %vm549 = vcmask 1044482
    %v550 = vsel %vm549, %v548, %v546
    %551 = vrot.lane.b32.xlu0 %v550, 84
    %v552 = vpop.permute.xlu0 %551
    %vm553 = vcmask 786080
    %554 = vst.msk [vmem:[#allocation0] ss:$3 sm:$0x1f] %vm553, %v552
    %s555 = scalar_lea.vmem [#allocation1], 36
    %s556 = smov 3
    %v557 = vld [vmem:[%s555] ss:$44 sm:%s556]
    %s558 = scalar_lea.vmem [#allocation1], 32
    %s559 = smov 12
    %v560 = vld [vmem:[%s558] ss:$44 sm:%s559]
    %vm561 = vcmask 1043458
    %v562 = vsel %vm561, %v560, %v557
    %563 = vrot.lane.b32.xlu0 %v562, 80
    %v564 = vpop.permute.xlu0 %563
    %vm565 = vcmask 753280
    %s566 = scalar_lea.vmem [#allocation0], 2
    %567 = vst.msk [vmem:[%s566] ss:$3 sm:$0xf] %vm565, %v564
    %s568 = scalar_lea.vmem [#allocation1], 21
    %s569 = smov 3
    %v570 = vld [vmem:[%s568] ss:$44 sm:%s569]
    %s571 = scalar_lea.vmem [#allocation1], 17
    %s572 = smov 12
    %v573 = vld [vmem:[%s571] ss:$44 sm:%s572]
    %vm574 = vcmask 1043458
    %v575 = vsel %vm574, %v573, %v570
    %576 = vrot.lane.b32.xlu0 %v575, 76
    %v577 = vpop.permute.xlu0 %576
    %vm578 = vcmask 720480
    %s579 = scalar_lea.vmem [#allocation0], 1
    %580 = vst.msk [vmem:[%s579] ss:$3 sm:$0xf] %vm578, %v577
    %s581 = scalar_lea.vmem [#allocation1], 6
    %s582 = smov 3
    %v583 = vld [vmem:[%s581] ss:$44 sm:%s582]
    %s584 = scalar_lea.vmem [#allocation1], 2
    %v585 = vld [vmem:[%s584] ss:$44 sm:$0x1c]
    %vm586 = vcmask 1044482
    %v587 = vsel %vm586, %v585, %v583
    %588 = vrot.lane.b32.xlu0 %v587, 72
    %v589 = vpop.permute.xlu0 %588
    %vm590 = vcmask 687680
    %591 = vst.msk [vmem:[#allocation0] ss:$3 sm:$0x1f] %vm590, %v589
    %s592 = scalar_lea.vmem [#allocation1], 35
    %s593 = smov 3
    %v594 = vld [vmem:[%s592] ss:$40 sm:%s593]
    %s595 = scalar_lea.vmem [#allocation1], 31
    %s596 = smov 12
    %v597 = vld [vmem:[%s595] ss:$44 sm:%s596]
    %vm598 = vcmask 1043458
    %v599 = vsel %vm598, %v597, %v594
    %600 = vrot.lane.b32.xlu0 %v599, 68
    %v601 = vpop.permute.xlu0 %600
    %vm602 = vcmask 654880
    %s603 = scalar_lea.vmem [#allocation0], 2
    %604 = vst.msk [vmem:[%s603] ss:$3 sm:$0xf] %vm602, %v601
    %s605 = scalar_lea.vmem [#allocation1], 20
    %s606 = smov 3
    %v607 = vld [vmem:[%s605] ss:$44 sm:%s606]
    %s608 = scalar_lea.vmem [#allocation1], 16
    %s609 = smov 12
    %v610 = vld [vmem:[%s608] ss:$44 sm:%s609]
    %vm611 = vcmask 1043458
    %v612 = vsel %vm611, %v610, %v607
    %613 = vrot.lane.b32.xlu0 %v612, 64
    %v614 = vpop.permute.xlu0 %613
    %vm615 = vcmask 622080
    %s616 = scalar_lea.vmem [#allocation0], 1
    %617 = vst.msk [vmem:[%s616] ss:$3 sm:$0xf] %vm615, %v614
    %s618 = scalar_lea.vmem [#allocation1], 5
    %s619 = smov 3
    %v620 = vld [vmem:[%s618] ss:$44 sm:%s619]
    %s621 = scalar_lea.vmem [#allocation1], 1
    %v622 = vld [vmem:[%s621] ss:$44 sm:$0x1c]
    %vm623 = vcmask 1044482
    %v624 = vsel %vm623, %v622, %v620
    %625 = vrot.lane.b32.xlu0 %v624, 60
    %v626 = vpop.permute.xlu0 %625
    %vm627 = vcmask 589280
    %628 = vst.msk [vmem:[#allocation0] ss:$3 sm:$0x1f] %vm627, %v626
    %s629 = scalar_lea.vmem [#allocation1], 34
    %s630 = smov 3
    %v631 = vld [vmem:[%s629] ss:$40 sm:%s630]
    %s632 = scalar_lea.vmem [#allocation1], 30
    %s633 = smov 12
    %v634 = vld [vmem:[%s632] ss:$44 sm:%s633]
    %vm635 = vcmask 1043458
    %v636 = vsel %vm635, %v634, %v631
    %637 = vrot.lane.b32.xlu0 %v636, 56
    %v638 = vpop.permute.xlu0 %637
    %vm639 = vcmask 556480
    %s640 = scalar_lea.vmem [#allocation0], 2
    %641 = vst.msk [vmem:[%s640] ss:$3 sm:$0xf] %vm639, %v638
    %s642 = scalar_lea.vmem [#allocation1], 19
    %s643 = smov 3
    %v644 = vld [vmem:[%s642] ss:$40 sm:%s643]
    %s645 = scalar_lea.vmem [#allocation1], 15
    %s646 = smov 12
    %v647 = vld [vmem:[%s645] ss:$44 sm:%s646]
    %vm648 = vcmask 1043458
    %v649 = vsel %vm648, %v647, %v644
    %s650 = scalar_lea.vmem [#allocation1], 183
    %v651 = vld [vmem:[%s650] sm:$0x10]
    %vm652 = vcmask 1044484
    %v653 = vsel %vm652, %v651, %v649
    %654 = vrot.lane.b32.xlu0 %v653, 52
    %v655 = vpop.permute.xlu0 %654
    %vm656 = vcmask 523680
    %s657 = scalar_lea.vmem [#allocation0], 1
    %658 = vst.msk [vmem:[%s657] ss:$3 sm:$0x1f] %vm656, %v655
    %s659 = scalar_lea.vmem [#allocation1], 4
    %s660 = smov 3
    %v661 = vld [vmem:[%s659] ss:$44 sm:%s660]
    %v662 = vld [vmem:[#allocation1] ss:$44 sm:$0x1c]
    %vm663 = vcmask 1044482
    %v664 = vsel %vm663, %v662, %v661
    %665 = vrot.lane.b32.xlu0 %v664, 48
    %v666 = vpop.permute.xlu0 %665
    %vm667 = vcmask 490880
    %668 = vst.msk [vmem:[#allocation0] ss:$3 sm:$0x1f] %vm667, %v666
    %s669 = scalar_lea.vmem [#allocation1], 33
    %s670 = smov 3
    %v671 = vld [vmem:[%s669] ss:$40 sm:%s670]
    %s672 = scalar_lea.vmem [#allocation1], 29
    %s673 = smov 12
    %v674 = vld [vmem:[%s672] ss:$44 sm:%s673]
    %vm675 = vcmask 1043458
    %v676 = vsel %vm675, %v674, %v671
    %677 = vrot.lane.b32.xlu0 %v676, 44
    %v678 = vpop.permute.xlu0 %677
    %vm679 = vcmask 458080
    %s680 = scalar_lea.vmem [#allocation0], 2
    %681 = vst.msk [vmem:[%s680] ss:$3 sm:$0xf] %vm679, %v678
    %s682 = scalar_lea.vmem [#allocation1], 18
    %s683 = smov 3
    %v684 = vld [vmem:[%s682] ss:$40 sm:%s683]
    %s685 = scalar_lea.vmem [#allocation1], 14
    %s686 = smov 12
    %v687 = vld [vmem:[%s685] ss:$44 sm:%s686]
    %vm688 = vcmask 1043458
    %v689 = vsel %vm688, %v687, %v684
    %s690 = scalar_lea.vmem [#allocation1], 182
    %v691 = vld [vmem:[%s690] sm:$0x10]
    %vm692 = vcmask 1044484
    %v693 = vsel %vm692, %v691, %v689
    %694 = vrot.lane.b32.xlu0 %v693, 40
    %v695 = vpop.permute.xlu0 %694
    %vm696 = vcmask 425280
    %s697 = scalar_lea.vmem [#allocation0], 1
    %698 = vst.msk [vmem:[%s697] ss:$3 sm:$0x1f] %vm696, %v695
    %s699 = scalar_lea.vmem [#allocation1], 3
    %s700 = smov 3
    %v701 = vld [vmem:[%s699] ss:$40 sm:%s700]
    %s702 = scalar_lea.vmem [#allocation1], 4294967295
    %s703 = smov 12
    %v704 = vld [vmem:[%s702] ss:$44 sm:%s703]
    %vm705 = vcmask 1043458
    %v706 = vsel %vm705, %v704, %v701
    %s707 = scalar_lea.vmem [#allocation1], 167
    %v708 = vld [vmem:[%s707] sm:$0x10]
    %vm709 = vcmask 1044484
    %v710 = vsel %vm709, %v708, %v706
    %711 = vrot.lane.b32.xlu0 %v710, 36
    %v712 = vpop.permute.xlu0 %711
    %vm713 = vcmask 392480
    %714 = vst.msk [vmem:[#allocation0] ss:$3 sm:$0x1f] %vm713, %v712
    %s715 = scalar_lea.vmem [#allocation1], 32
    %s716 = smov 3
    %v717 = vld [vmem:[%s715] ss:$40 sm:%s716]
    %s718 = scalar_lea.vmem [#allocation1], 28
    %s719 = smov 12
    %v720 = vld [vmem:[%s718] ss:$44 sm:%s719]
    %vm721 = vcmask 1043458
    %v722 = vsel %vm721, %v720, %v717
    %723 = vrot.lane.b32.xlu0 %v722, 32
    %v724 = vpop.permute.xlu0 %723
    %vm725 = vcmask 359680
    %s726 = scalar_lea.vmem [#allocation0], 2
    %727 = vst.msk [vmem:[%s726] ss:$3 sm:$0xf] %vm725, %v724
    %s728 = scalar_lea.vmem [#allocation1], 17
    %s729 = smov 3
    %v730 = vld [vmem:[%s728] ss:$40 sm:%s729]
    %s731 = scalar_lea.vmem [#allocation1], 13
    %s732 = smov 12
    %v733 = vld [vmem:[%s731] ss:$44 sm:%s732]
    %vm734 = vcmask 1043458
    %v735 = vsel %vm734, %v733, %v730
    %s736 = scalar_lea.vmem [#allocation1], 181
    %v737 = vld [vmem:[%s736] sm:$0x10]
    %vm738 = vcmask 1044484
    %v739 = vsel %vm738, %v737, %v735
    %740 = vrot.lane.b32.xlu0 %v739, 28
    %v741 = vpop.permute.xlu0 %740
    %vm742 = vcmask 326880
    %s743 = scalar_lea.vmem [#allocation0], 1
    %744 = vst.msk [vmem:[%s743] ss:$3 sm:$0x1f] %vm742, %v741
    %s745 = scalar_lea.vmem [#allocation1], 2
    %s746 = smov 3
    %v747 = vld [vmem:[%s745] ss:$40 sm:%s746]
    %s748 = scalar_lea.vmem [#allocation1], 4294967294
    %s749 = smov 12
    %v750 = vld [vmem:[%s748] ss:$44 sm:%s749]
    %vm751 = vcmask 1043458
    %v752 = vsel %vm751, %v750, %v747
    %s753 = scalar_lea.vmem [#allocation1], 166
    %v754 = vld [vmem:[%s753] sm:$0x10]
    %vm755 = vcmask 1044484
    %v756 = vsel %vm755, %v754, %v752
    %757 = vrot.lane.b32.xlu0 %v756, 24
    %v758 = vpop.permute.xlu0 %757
    %vm759 = vcmask 294080
    %760 = vst.msk [vmem:[#allocation0] ss:$3 sm:$0x1f] %vm759, %v758
    %s761 = scalar_lea.vmem [#allocation1], 27
    %v762 = vld [vmem:[%s761] ss:$44 sm:$0x7]
    %s763 = scalar_lea.vmem [#allocation1], 152
    %v764 = vld [vmem:[%s763] sm:$0x8]
    %vm765 = vcmask 1043459
    %v766 = vsel %vm765, %v764, %v762
    %767 = vrot.lane.b32.xlu0 %v766, 20
    %v768 = vpop.permute.xlu0 %767
    %vm769 = vcmask 261280
    %s770 = scalar_lea.vmem [#allocation0], 2
    %771 = vst.msk [vmem:[%s770] ss:$3 sm:$0xf] %vm769, %v768
    %s772 = scalar_lea.vmem [#allocation1], 16
    %s773 = smov 3
    %v774 = vld [vmem:[%s772] ss:$40 sm:%s773]
    %s775 = scalar_lea.vmem [#allocation1], 12
    %s776 = smov 12
    %v777 = vld [vmem:[%s775] ss:$44 sm:%s776]
    %vm778 = vcmask 1043458
    %v779 = vsel %vm778, %v777, %v774
    %s780 = scalar_lea.vmem [#allocation1], 180
    %v781 = vld [vmem:[%s780] sm:$0x10]
    %vm782 = vcmask 1044484
    %v783 = vsel %vm782, %v781, %v779
    %784 = vrot.lane.b32.xlu0 %v783, 16
    %v785 = vpop.permute.xlu0 %784
    %vm786 = vcmask 228480
    %s787 = scalar_lea.vmem [#allocation0], 1
    %788 = vst.msk [vmem:[%s787] ss:$3 sm:$0x1f] %vm786, %v785
    %s789 = scalar_lea.vmem [#allocation1], 1
    %s790 = smov 3
    %v791 = vld [vmem:[%s789] ss:$40 sm:%s790]
    %s792 = scalar_lea.vmem [#allocation1], 4294967293
    %s793 = smov 12
    %v794 = vld [vmem:[%s792] ss:$44 sm:%s793]
    %vm795 = vcmask 1043458
    %v796 = vsel %vm795, %v794, %v791
    %s797 = scalar_lea.vmem [#allocation1], 165
    %v798 = vld [vmem:[%s797] sm:$0x10]
    %vm799 = vcmask 1044484
    %v800 = vsel %vm799, %v798, %v796
    %801 = vrot.lane.b32.xlu0 %v800, 12
    %v802 = vpop.permute.xlu0 %801
    %vm803 = vcmask 195680
    %804 = vst.msk [vmem:[#allocation0] ss:$3 sm:$0x1f] %vm803, %v802
    %s805 = scalar_lea.vmem [#allocation1], 26
    %v806 = vld [vmem:[%s805] ss:$44 sm:$0x7]
    %s807 = scalar_lea.vmem [#allocation1], 151
    %v808 = vld [vmem:[%s807] sm:$0x8]
    %vm809 = vcmask 1043459
    %v810 = vsel %vm809, %v808, %v806
    %811 = vrot.lane.b32.xlu0 %v810, 8
    %v812 = vpop.permute.xlu0 %811
    %vm813 = vcmask 162880
    %s814 = scalar_lea.vmem [#allocation0], 2
    %815 = vst.msk [vmem:[%s814] ss:$3 sm:$0xf] %vm813, %v812
    %s816 = scalar_lea.vmem [#allocation1], 11
    %v817 = vld [vmem:[%s816] ss:$44 sm:$0x7]
    %s818 = scalar_lea.vmem [#allocation1], 7
    %s819 = smov 24
    %v820 = vld [vmem:[%s818] ss:$44 sm:%s819]
    %vm821 = vcmask 1044483
    %v822 = vsel %vm821, %v820, %v817
    %823 = vrot.lane.b32.xlu0 %v822, 4
    %v824 = vpop.permute.xlu0 %823
    %vm825 = vcmask 130080
    %s826 = scalar_lea.vmem [#allocation0], 1
    %827 = vst.msk [vmem:[%s826] ss:$3 sm:$0x1f] %vm825, %v824
    %s829 = smul.u32 4, 2
    %s830 = sshll.u32 1, %s829
    %s831 = ssub.s32 %s830, 1
    %s832 = sshrl.u32 %s829, 1
    %v833 = vld [vmem:[#allocation0] sm:%s831]
    %v834 = vpack.c.bf16 0.0, %v833
    %s835 = sshll.u32 1, %s832
    %s836 = ssub.s32 %s835, 1
    %837 = vst [vmem:[%s1] sm:%s836] %v834
    %s838 = scalar_lea.vmem [#allocation0], 8
    %v839 = vld [vmem:[%s838] sm:%s831]
    %v840 = vpack.c.bf16 0.0, %v839
    %s841 = sshll.u32 1, %s832
    %s842 = ssub.s32 %s841, 1
    %s843 = scalar_lea.vmem %s1, 4
    %844 = vst [vmem:[%s843] sm:%s842] %v840

// kernel: tile.15
$region0: #{tile.15}
  %s0 = inlined_call_operand.vmem [shape: bf16[2,1728], index: 0, kind: input, shape index: {}]
  %s1 = inlined_call_operand.vmem [shape: bf16[3456], index: 1, kind: output, shape index: {}]
  $region1: #{tile.15} parent=0
    #allocation0 [shape = 'u8[16384]{0}', space=vmem, size = 0x4000, scoped, tag = 'scoped mem for output reshape']
    #allocation1 [shape = 'u8[57344]{0}', space=vmem, size = 0xe000, scoped, tag = 'scoped mem for input reshape']
    %s3 = smul.u32 1, 2
    %s4 = sshll.u32 1, %s3
    %s5 = ssub.s32 %s4, 1
    %s6 = smul.addr 1, 13
    %s7 = scalar_lea.vmem %s0, %s6
    %s8 = sshrl.u32 %s5, 1
    %s9 = sor.u32 %s5, %s8
    %s10 = sand.u32 %s9, 85
    %s11 = sshrl.u32 %s10, 1
    %s12 = sor.u32 %s10, %s11
    %s13 = sand.u32 51, %s12
    %s14 = sshrl.u32 %s13, 2
    %s15 = sor.u32 %s13, %s14
    %s16 = sand.u32 15, %s15
    %v17 = vld [vmem:[%s7] sm:%s16]
    %v18 = vunpack.c.l.bf16 %v17
    %v19 = vunpack.c.h.bf16 %v17
    %s20 = scalar_lea.vmem [#allocation1], 104
    %21 = vst [vmem:[%s20] sm:%s5] %v18
    %s22 = smul.addr 1, 12
    %s23 = scalar_lea.vmem %s0, %s22
    %s24 = sshrl.u32 %s5, 1
    %s25 = sor.u32 %s5, %s24
    %s26 = sand.u32 %s25, 85
    %s27 = sshrl.u32 %s26, 1
    %s28 = sor.u32 %s26, %s27
    %s29 = sand.u32 51, %s28
    %s30 = sshrl.u32 %s29, 2
    %s31 = sor.u32 %s29, %s30
    %s32 = sand.u32 15, %s31
    %v33 = vld [vmem:[%s23] sm:%s32]
    %v34 = vunpack.c.l.bf16 %v33
    %v35 = vunpack.c.h.bf16 %v33
    %s36 = scalar_lea.vmem [#allocation1], 96
    %37 = vst [vmem:[%s36] sm:%s5] %v34
    %s38 = smul.addr 1, 11
    %s39 = scalar_lea.vmem %s0, %s38
    %s40 = sshrl.u32 %s5, 1
    %s41 = sor.u32 %s5, %s40
    %s42 = sand.u32 %s41, 85
    %s43 = sshrl.u32 %s42, 1
    %s44 = sor.u32 %s42, %s43
    %s45 = sand.u32 51, %s44
    %s46 = sshrl.u32 %s45, 2
    %s47 = sor.u32 %s45, %s46
    %s48 = sand.u32 15, %s47
    %v49 = vld [vmem:[%s39] sm:%s48]
    %v50 = vunpack.c.l.bf16 %v49
    %v51 = vunpack.c.h.bf16 %v49
    %s52 = scalar_lea.vmem [#allocation1], 88
    %53 = vst [vmem:[%s52] sm:%s5] %v50
    %s54 = smul.addr 1, 10
    %s55 = scalar_lea.vmem %s0, %s54
    %s56 = sshrl.u32 %s5, 1
    %s57 = sor.u32 %s5, %s56
    %s58 = sand.u32 %s57, 85
    %s59 = sshrl.u32 %s58, 1
    %s60 = sor.u32 %s58, %s59
    %s61 = sand.u32 51, %s60
    %s62 = sshrl.u32 %s61, 2
    %s63 = sor.u32 %s61, %s62
    %s64 = sand.u32 15, %s63
    %v65 = vld [vmem:[%s55] sm:%s64]
    %v66 = vunpack.c.l.bf16 %v65
    %v67 = vunpack.c.h.bf16 %v65
    %s68 = scalar_lea.vmem [#allocation1], 80
    %69 = vst [vmem:[%s68] sm:%s5] %v66
    %s70 = smul.addr 1, 9
    %s71 = scalar_lea.vmem %s0, %s70
    %s72 = sshrl.u32 %s5, 1
    %s73 = sor.u32 %s5, %s72
    %s74 = sand.u32 %s73, 85
    %s75 = sshrl.u32 %s74, 1
    %s76 = sor.u32 %s74, %s75
    %s77 = sand.u32 51, %s76
    %s78 = sshrl.u32 %s77, 2
    %s79 = sor.u32 %s77, %s78
    %s80 = sand.u32 15, %s79
    %v81 = vld [vmem:[%s71] sm:%s80]
    %v82 = vunpack.c.l.bf16 %v81
    %v83 = vunpack.c.h.bf16 %v81
    %s84 = scalar_lea.vmem [#allocation1], 72
    %85 = vst [vmem:[%s84] sm:%s5] %v82
    %s86 = smul.addr 1, 8
    %s87 = scalar_lea.vmem %s0, %s86
    %s88 = sshrl.u32 %s5, 1
    %s89 = sor.u32 %s5, %s88
    %s90 = sand.u32 %s89, 85
    %s91 = sshrl.u32 %s90, 1
    %s92 = sor.u32 %s90, %s91
    %s93 = sand.u32 51, %s92
    %s94 = sshrl.u32 %s93, 2
    %s95 = sor.u32 %s93, %s94
    %s96 = sand.u32 15, %s95
    %v97 = vld [vmem:[%s87] sm:%s96]
    %v98 = vunpack.c.l.bf16 %v97
    %v99 = vunpack.c.h.bf16 %v97
    %s100 = scalar_lea.vmem [#allocation1], 64
    %101 = vst [vmem:[%s100] sm:%s5] %v98
    %s102 = smul.addr 1, 7
    %s103 = scalar_lea.vmem %s0, %s102
    %s104 = sshrl.u32 %s5, 1
    %s105 = sor.u32 %s5, %s104
    %s106 = sand.u32 %s105, 85
    %s107 = sshrl.u32 %s106, 1
    %s108 = sor.u32 %s106, %s107
    %s109 = sand.u32 51, %s108
    %s110 = sshrl.u32 %s109, 2
    %s111 = sor.u32 %s109, %s110
    %s112 = sand.u32 15, %s111
    %v113 = vld [vmem:[%s103] sm:%s112]
    %v114 = vunpack.c.l.bf16 %v113
    %v115 = vunpack.c.h.bf16 %v113
    %s116 = scalar_lea.vmem [#allocation1], 56
    %117 = vst [vmem:[%s116] sm:%s5] %v114
    %s118 = smul.addr 1, 6
    %s119 = scalar_lea.vmem %s0, %s118
    %s120 = sshrl.u32 %s5, 1
    %s121 = sor.u32 %s5, %s120
    %s122 = sand.u32 %s121, 85
    %s123 = sshrl.u32 %s122, 1
    %s124 = sor.u32 %s122, %s123
    %s125 = sand.u32 51, %s124
    %s126 = sshrl.u32 %s125, 2
    %s127 = sor.u32 %s125, %s126
    %s128 = sand.u32 15, %s127
    %v129 = vld [vmem:[%s119] sm:%s128]
    %v130 = vunpack.c.l.bf16 %v129
    %v131 = vunpack.c.h.bf16 %v129
    %s132 = scalar_lea.vmem [#allocation1], 48
    %133 = vst [vmem:[%s132] sm:%s5] %v130
    %s134 = smul.addr 1, 5
    %s135 = scalar_lea.vmem %s0, %s134
    %s136 = sshrl.u32 %s5, 1
    %s137 = sor.u32 %s5, %s136
    %s138 = sand.u32 %s137, 85
    %s139 = sshrl.u32 %s138, 1
    %s140 = sor.u32 %s138, %s139
    %s141 = sand.u32 51, %s140
    %s142 = sshrl.u32 %s141, 2
    %s143 = sor.u32 %s141, %s142
    %s144 = sand.u32 15, %s143
    %v145 = vld [vmem:[%s135] sm:%s144]
    %v146 = vunpack.c.l.bf16 %v145
    %v147 = vunpack.c.h.bf16 %v145
    %s148 = scalar_lea.vmem [#allocation1], 40
    %149 = vst [vmem:[%s148] sm:%s5] %v146
    %s150 = smul.addr 1, 4
    %s151 = scalar_lea.vmem %s0, %s150
    %s152 = sshrl.u32 %s5, 1
    %s153 = sor.u32 %s5, %s152
    %s154 = sand.u32 %s153, 85
    %s155 = sshrl.u32 %s154, 1
    %s156 = sor.u32 %s154, %s155
    %s157 = sand.u32 51, %s156
    %s158 = sshrl.u32 %s157, 2
    %s159 = sor.u32 %s157, %s158
    %s160 = sand.u32 15, %s159
    %v161 = vld [vmem:[%s151] sm:%s160]
    %v162 = vunpack.c.l.bf16 %v161
    %v163 = vunpack.c.h.bf16 %v161
    %s164 = scalar_lea.vmem [#allocation1], 32
    %165 = vst [vmem:[%s164] sm:%s5] %v162
    %s166 = smul.addr 1, 3
    %s167 = scalar_lea.vmem %s0, %s166
    %s168 = sshrl.u32 %s5, 1
    %s169 = sor.u32 %s5, %s168
    %s170 = sand.u32 %s169, 85
    %s171 = sshrl.u32 %s170, 1
    %s172 = sor.u32 %s170, %s171
    %s173 = sand.u32 51, %s172
    %s174 = sshrl.u32 %s173, 2
    %s175 = sor.u32 %s173, %s174
    %s176 = sand.u32 15, %s175
    %v177 = vld [vmem:[%s167] sm:%s176]
    %v178 = vunpack.c.l.bf16 %v177
    %v179 = vunpack.c.h.bf16 %v177
    %s180 = scalar_lea.vmem [#allocation1], 24
    %181 = vst [vmem:[%s180] sm:%s5] %v178
    %s182 = smul.addr 1, 2
    %s183 = scalar_lea.vmem %s0, %s182
    %s184 = sshrl.u32 %s5, 1
    %s185 = sor.u32 %s5, %s184
    %s186 = sand.u32 %s185, 85
    %s187 = sshrl.u32 %s186, 1
    %s188 = sor.u32 %s186, %s187
    %s189 = sand.u32 51, %s188
    %s190 = sshrl.u32 %s189, 2
    %s191 = sor.u32 %s189, %s190
    %s192 = sand.u32 15, %s191
    %v193 = vld [vmem:[%s183] sm:%s192]
    %v194 = vunpack.c.l.bf16 %v193
    %v195 = vunpack.c.h.bf16 %v193
    %s196 = scalar_lea.vmem [#allocation1], 16
    %197 = vst [vmem:[%s196] sm:%s5] %v194
    %s198 = scalar_lea.vmem %s0, 1
    %s199 = sshrl.u32 %s5, 1
    %s200 = sor.u32 %s5, %s199
    %s201 = sand.u32 %s200, 85
    %s202 = sshrl.u32 %s201, 1
    %s203 = sor.u32 %s201, %s202
    %s204 = sand.u32 51, %s203
    %s205 = sshrl.u32 %s204, 2
    %s206 = sor.u32 %s204, %s205
    %s207 = sand.u32 15, %s206
    %v208 = vld [vmem:[%s198] sm:%s207]
    %v209 = vunpack.c.l.bf16 %v208
    %v210 = vunpack.c.h.bf16 %v208
    %s211 = scalar_lea.vmem [#allocation1], 8
    %212 = vst [vmem:[%s211] sm:%s5] %v209
    %s213 = sshrl.u32 %s5, 1
    %s214 = sor.u32 %s5, %s213
    %s215 = sand.u32 %s214, 85
    %s216 = sshrl.u32 %s215, 1
    %s217 = sor.u32 %s215, %s216
    %s218 = sand.u32 51, %s217
    %s219 = sshrl.u32 %s218, 2
    %s220 = sor.u32 %s218, %s219
    %s221 = sand.u32 15, %s220
    %v222 = vld [vmem:[%s0] sm:%s221]
    %v223 = vunpack.c.l.bf16 %v222
    %v224 = vunpack.c.h.bf16 %v222
    %225 = vst [vmem:[#allocation1] sm:%s5] %v223
    %s226 = scalar_lea.vmem [#allocation1], 104
    %v227 = vld [vmem:[%s226] sm:$0x1]
    %vm228 = vcmask 523264
    %s229 = scalar_lea.vmem [#allocation0], 13
    %230 = vst.msk [vmem:[%s229] sm:$0x1] %vm228, %v227
    %v231 = vld [vmem:[#allocation1] ss:$8 sm:$0xf]
    %v232 = vld [vmem:[#allocation1] ss:$8 sm:$0xf0]
    %vm233 = vcmask 1047556
    %v234 = vsel %vm233, %v232, %v231
    %235 = vst [vmem:[#allocation0] sm:$0xff] %v234
    %s236 = scalar_lea.vmem [#allocation1], 64
    %v237 = vld [vmem:[%s236] ss:$8 sm:$0xf]
    %s238 = scalar_lea.vmem [#allocation1], 92
    %v239 = vld [vmem:[%s238] sm:$0x10]
    %vm240 = vcmask 1044484
    %v241 = vsel %vm240, %v239, %v237
    %s242 = scalar_lea.vmem [#allocation0], 8
    %243 = vst [vmem:[%s242] sm:$0x1f] %v241
    %s244 = scalar_lea.vmem [#allocation1], 1
    %v245 = vld [vmem:[%s244] ss:$8 sm:$0xf]
    %s246 = scalar_lea.vmem [#allocation1], 1
    %v247 = vld [vmem:[%s246] ss:$8 sm:$0xf0]
    %vm248 = vcmask 1047556
    %v249 = vsel %vm248, %v247, %v245
    %s250 = scalar_lea.vmem [#allocation1], 1
    %v251 = vld [vmem:[%s250] ss:$8 sm:$0xf]
    %s252 = scalar_lea.vmem [#allocation1], 1
    %v253 = vld [vmem:[%s252] ss:$8 sm:$0xf0]
    %vm254 = vcmask 1047556
    %v255 = vsel %vm254, %v253, %v251
    %vm256 = vcmask 523264
    %v257 = vsel %vm256, %v255, %v249
    %258 = vrot.lane.b32.xlu0 %v257, 64
    %v259 = vpop.permute.xlu0 %258
    %vm260 = vcmask 523264
    %s261 = scalar_lea.vmem [#allocation0], 14
    %262 = vst.msk [vmem:[%s261] sm:$0xff] %vm260, %v259
    %vm263 = vcmask 1048064
    %s264 = scalar_lea.vmem [#allocation0], 13
    %265 = vst.msk [vmem:[%s264] sm:$0xff] %vm263, %v259
    %s266 = scalar_lea.vmem [#allocation1], 65
    %v267 = vld [vmem:[%s266] ss:$8 sm:$0xf]
    %s268 = scalar_lea.vmem [#allocation1], 93
    %v269 = vld [vmem:[%s268] sm:$0x10]
    %vm270 = vcmask 1044484
    %v271 = vsel %vm270, %v269, %v267
    %s272 = scalar_lea.vmem [#allocation1], 65
    %v273 = vld [vmem:[%s272] ss:$8 sm:$0xf]
    %s274 = scalar_lea.vmem [#allocation1], 65
    %s275 = smov 48
    %v276 = vld [vmem:[%s274] ss:$8 sm:%s275]
    %vm277 = vcmask 1045508
    %v278 = vsel %vm277, %v276, %v273
    %vm279 = vcmask 523264
    %v280 = vsel %vm279, %v278, %v271
    %281 = vrot.lane.b32.xlu0 %v280, 64
    %v282 = vpop.permute.xlu0 %281
    %vm283 = vcmask 523264
    %s284 = scalar_lea.vmem [#allocation0], 22
    %285 = vst.msk [vmem:[%s284] sm:$0x1f] %vm283, %v282
    %vm286 = vcmask 1048064
    %s287 = scalar_lea.vmem [#allocation0], 21
    %288 = vst.msk [vmem:[%s287] sm:$0x3f] %vm286, %v282
    %s290 = smul.u32 4, 2
    %s291 = sshll.u32 1, %s290
    %s292 = ssub.s32 %s291, 1
    %s293 = sshrl.u32 %s290, 1
    %v294 = vld [vmem:[#allocation0] sm:%s292]
    %v295 = vpack.c.bf16 0.0, %v294
    %s296 = sshll.u32 1, %s293
    %s297 = ssub.s32 %s296, 1
    %298 = vst [vmem:[%s1] sm:%s297] %v295
    %s299 = scalar_lea.vmem [#allocation0], 8
    %v300 = vld [vmem:[%s299] sm:%s292]
    %v301 = vpack.c.bf16 0.0, %v300
    %s302 = sshll.u32 1, %s293
    %s303 = ssub.s32 %s302, 1
    %s304 = scalar_lea.vmem %s1, 4
    %305 = vst [vmem:[%s304] sm:%s303] %v301
    %s306 = scalar_lea.vmem [#allocation0], 16
    %v307 = vld [vmem:[%s306] sm:%s292]
    %v308 = vpack.c.bf16 0.0, %v307
    %s309 = sshll.u32 1, %s293
    %s310 = ssub.s32 %s309, 1
    %s311 = smul.addr 4, 2
    %s312 = scalar_lea.vmem %s1, %s311
    %313 = vst [vmem:[%s312] sm:%s310] %v308
    %s314 = scalar_lea.vmem [#allocation0], 24
    %v315 = vld [vmem:[%s314] sm:%s292]
    %v316 = vpack.c.bf16 0.0, %v315
    %s317 = sshll.u32 1, %s293
    %s318 = ssub.s32 %s317, 1
    %s319 = smul.addr 4, 3
    %s320 = scalar_lea.vmem %s1, %s319
    %321 = vst [vmem:[%s320] sm:%s318] %v316

// kernel: _lambda_.2
$region0: #{_lambda_.2}
  #allocation0 [shape = 'u32[]', space=smem, size = 0x4, offset = 0x4, fixed_abs, tag = 'smem constant byte address 0x4 - core index']
  #allocation1 [shape = 'u32[144,128]{1,0:T(1,128)}', space=vmem, size = 0x12000, scoped, tag = 'internal scratch']
  %s0 = inlined_call_operand.vmem [shape: bf16[8,3840], index: 0, kind: input, shape index: {}, may-alias: {0,1}]
  %s1 = inlined_call_operand.vmem [shape: bf16[8,3840], index: 1, kind: input, shape index: {}, may-alias: {0,1}]
  %s2 = inlined_call_operand.vmem [shape: bf16[9,8,24], index: 2, kind: input, shape index: {}]
  %s3 = inlined_call_operand.vmem [shape: f32[8,4], index: 3, kind: input, shape index: {}]
  %s4 = inlined_call_operand.vmem [shape: bf16[1,3840], index: 4, kind: input, shape index: {}]
  %s5 = inlined_call_operand.vmem [shape: bf16[8,3840], index: 5, kind: output, shape index: {}]
  %s6 = sld [smem:[#allocation0]]
  $region53: #{_lambda_.2} parent=0
    _
  %s8 = ssub.s32 1, %s6
  %s9 = scalar_select 0, %s8, %s6
  loop: start=0, step=1, limit=7
  $region2: #{_lambda_.2} parent=0 // loop_pre_header
    _
  $region3: #{_lambda_.2} parent=0 // loop_header
    %s11 = sphi 0, %s15
    %p12 = scmp.ge.s32.totalorder %s11, 7
    %s21 = sphi 0, %s23
    %s24 = sphi 0, %s21
    %s25 = sphi 0, %s24
    %s41 = sphi 0, %s25
    %s55 = sphi 0, %s57
    %s58 = sphi 0, %s55
    %s59 = sphi 0, %s58
    %s75 = sphi 0, %s59
    %s79 = sphi 0, %s79
    %s81 = sphi 0, %s79
    %s82 = sphi 0, %s81
    %s96 = sphi 0, %s82
    %s100 = sphi 0, %s100
    %s102 = sphi 0, %s100
    %s103 = sphi 0, %s102
    %s117 = sphi 0, %s103
    %s123 = sphi 0, %s125
    %s126 = sphi 0, %s123
    %s127 = sphi 0, %s126
    %s143 = sphi 0, %s127
    %s149 = sphi 0, %s151
    %s152 = sphi 0, %s149
    %s153 = sphi 0, %s152
    %s169 = sphi 0, %s153
  $region4: #{_lambda_.2} parent=0 // loop_header_branch
    %14 = sbr.rel (%p12) target = $region8
  $region5: #{_lambda_.2} parent=0 // loop_body
    %s16 = ssub.s32 %s11, 1
    %s17 = ssub.s32 %s11, 2
    %s18 = sadd.s32 %s11, 1
    %s19 = ssub.s32 %s11, %s18
    %p20 = scmp.eq.s32.totalorder %s19, 0
    %s22 = sadd.s32 %s21, 1
    %s23 = scalar_select %p20, %s21, %s22
    %p26 = pneg %p20
    %p27 = scmp.eq.s32.totalorder %s11, 4
    %p28 = por %p26, %p27
    %p29 = scmp.ne.s32.totalorder %s21, %s24
    %p30 = scmp.eq.s32.totalorder %s11, 0
    %p31 = por %p29, %p30
    %p32 = scmp.ne.s32.totalorder %s21, %s24
    %p33 = scmp.eq.s32.totalorder %s16, 4
    %p34 = por %p32, %p33
    %p35 = scmp.ne.s32.totalorder %s24, %s25
    %p36 = scmp.eq.s32.totalorder %s16, 0
    %p37 = por %p35, %p36
    %p38 = scmp.ne.s32.totalorder %s24, %s25
    %p39 = scmp.eq.s32.totalorder %s17, 4
    %p40 = por %p38, %p39
    %p42 = scmp.ne.s32.totalorder %s25, %s41
    %p43 = scmp.eq.s32.totalorder %s17, 0
    %p44 = por %p42, %p43
    %s45 = sadd.s32 %s11, 1
    %s46 = smul.u32 %s45, 2
    %p47 = scmp.lt.s32.totalorder %s46, 9
    %s48 = scalar_select %p47, %s46, 9
    %s49 = sadd.s32 %s18, 1
    %s50 = smul.u32 %s49, 2
    %p51 = scmp.lt.s32.totalorder %s50, 9
    %s52 = scalar_select %p51, %s50, 9
    %s53 = ssub.s32 %s48, %s52
    %p54 = scmp.eq.s32.totalorder %s53, 0
    %s56 = sadd.s32 %s55, 1
    %s57 = scalar_select %p54, %s55, %s56
    %p60 = pneg %p54
    %p61 = scmp.eq.s32.totalorder %s11, 4
    %p62 = por %p60, %p61
    %p63 = scmp.ne.s32.totalorder %s55, %s58
    %p64 = scmp.eq.s32.totalorder %s11, 0
    %p65 = por %p63, %p64
    %p66 = scmp.ne.s32.totalorder %s55, %s58
    %p67 = scmp.eq.s32.totalorder %s16, 4
    %p68 = por %p66, %p67
    %p69 = scmp.ne.s32.totalorder %s58, %s59
    %p70 = scmp.eq.s32.totalorder %s16, 0
    %p71 = por %p69, %p70
    %p72 = scmp.ne.s32.totalorder %s58, %s59
    %p73 = scmp.eq.s32.totalorder %s17, 4
    %p74 = por %p72, %p73
    %p76 = scmp.ne.s32.totalorder %s59, %s75
    %p77 = scmp.eq.s32.totalorder %s17, 0
    %p78 = por %p76, %p77
    %s80 = sadd.s32 %s79, 1
    %p83 = scmp.eq.s32.totalorder %s11, 4
    %p84 = scmp.ne.s32.totalorder %s79, %s81
    %p85 = scmp.eq.s32.totalorder %s11, 0
    %p86 = por %p84, %p85
    %p87 = scmp.ne.s32.totalorder %s79, %s81
    %p88 = scmp.eq.s32.totalorder %s16, 4
    %p89 = por %p87, %p88
    %p90 = scmp.ne.s32.totalorder %s81, %s82
    %p91 = scmp.eq.s32.totalorder %s16, 0
    %p92 = por %p90, %p91
    %p93 = scmp.ne.s32.totalorder %s81, %s82
    %p94 = scmp.eq.s32.totalorder %s17, 4
    %p95 = por %p93, %p94
    %p97 = scmp.ne.s32.totalorder %s82, %s96
    %p98 = scmp.eq.s32.totalorder %s17, 0
    %p99 = por %p97, %p98
    %s101 = sadd.s32 %s100, 1
    %p104 = scmp.eq.s32.totalorder %s11, 4
    %p105 = scmp.ne.s32.totalorder %s100, %s102
    %p106 = scmp.eq.s32.totalorder %s11, 0
    %p107 = por %p105, %p106
    %p108 = scmp.ne.s32.totalorder %s100, %s102
    %p109 = scmp.eq.s32.totalorder %s16, 4
    %p110 = por %p108, %p109
    %p111 = scmp.ne.s32.totalorder %s102, %s103
    %p112 = scmp.eq.s32.totalorder %s16, 0
    %p113 = por %p111, %p112
    %p114 = scmp.ne.s32.totalorder %s102, %s103
    %p115 = scmp.eq.s32.totalorder %s17, 4
    %p116 = por %p114, %p115
    %p118 = scmp.ne.s32.totalorder %s103, %s117
    %p119 = scmp.eq.s32.totalorder %s17, 0
    %p120 = por %p118, %p119
    %s121 = ssub.s32 %s11, %s18
    %p122 = scmp.eq.s32.totalorder %s121, 0
    %s124 = sadd.s32 %s123, 1
    %s125 = scalar_select %p122, %s123, %s124
    %p128 = pneg %p122
    %p129 = scmp.eq.s32.totalorder %s11, 4
    %p130 = por %p128, %p129
    %p131 = scmp.ne.s32.totalorder %s123, %s126
    %p132 = scmp.eq.s32.totalorder %s11, 0
    %p133 = por %p131, %p132
    %p134 = scmp.ne.s32.totalorder %s123, %s126
    %p135 = scmp.eq.s32.totalorder %s16, 4
    %p136 = por %p134, %p135
    %p137 = scmp.ne.s32.totalorder %s126, %s127
    %p138 = scmp.eq.s32.totalorder %s16, 0
    %p139 = por %p137, %p138
    %p140 = scmp.ne.s32.totalorder %s126, %s127
    %p141 = scmp.eq.s32.totalorder %s17, 4
    %p142 = por %p140, %p141
    %p144 = scmp.ne.s32.totalorder %s127, %s143
    %p145 = scmp.eq.s32.totalorder %s17, 0
    %p146 = por %p144, %p145
    %s147 = ssub.s32 %s11, %s18
    %p148 = scmp.eq.s32.totalorder %s147, 0
    %s150 = sadd.s32 %s149, 1
    %s151 = scalar_select %p148, %s149, %s150
    %p154 = pneg %p148
    %p155 = scmp.eq.s32.totalorder %s11, 4
    %p156 = por %p154, %p155
    %p157 = scmp.ne.s32.totalorder %s149, %s152
    %p158 = scmp.eq.s32.totalorder %s11, 0
    %p159 = por %p157, %p158
    %p160 = scmp.ne.s32.totalorder %s149, %s152
    %p161 = scmp.eq.s32.totalorder %s16, 4
    %p162 = por %p160, %p161
    %p163 = scmp.ne.s32.totalorder %s152, %s153
    %p164 = scmp.eq.s32.totalorder %s16, 0
    %p165 = por %p163, %p164
    %p166 = scmp.ne.s32.totalorder %s152, %s153
    %p167 = scmp.eq.s32.totalorder %s17, 4
    %p168 = por %p166, %p167
    %p170 = scmp.ne.s32.totalorder %s153, %s169
    %p171 = scmp.eq.s32.totalorder %s17, 0
    %p172 = por %p170, %p171
    %p173 = scmp.le.s32.totalorder 1, %s11
    %p174 = scmp.lt.s32.totalorder %s11, 6
    %p175 = pnand %p173, %p174
    %p176 = pneg %p175
    // Predicated region
    $region9: #{_lambda_.2} parent=5 // pred_check
      _
    $region10: #{_lambda_.2} parent=5 // pred_check_branch
      %178 = sbr.rel (%p175) target = $region12
    $region11: #{_lambda_.2} parent=5 // pred_region
      %s179 = ssub.s32 %s11, 1
      // Predicated region
      $region13: #{_lambda_.2} parent=11 // pred_check
        %p180 = pneg %p92
      $region14: #{_lambda_.2} parent=11 // pred_check_branch
        %182 = sbr.rel (%p180) target = $region16
      $region15: #{_lambda_.2} parent=11 // pred_region
        _
      $region16: #{_lambda_.2} parent=11 // pred_fallthru
        _
      // Predicated region
      $region17: #{_lambda_.2} parent=11 // pred_check
        %p183 = pneg %p113
      $region18: #{_lambda_.2} parent=11 // pred_check_branch
        %185 = sbr.rel (%p183) target = $region20
      $region19: #{_lambda_.2} parent=11 // pred_region
        _
      $region20: #{_lambda_.2} parent=11 // pred_fallthru
        _
    $region12: #{_lambda_.2} parent=5 // pred_fallthru
      _
    %p186 = scmp.lt.s32.totalorder %s11, 5
    // Predicated region
    $region21: #{_lambda_.2} parent=5 // pred_check
      %p187 = pneg %p186
    $region22: #{_lambda_.2} parent=5 // pred_check_branch
      %189 = sbr.rel (%p187) target = $region24
    $region23: #{_lambda_.2} parent=5 // pred_region
      // Predicated region
      $region25: #{_lambda_.2} parent=23 // pred_check
        %p190 = pneg %p31
      $region26: #{_lambda_.2} parent=23 // pred_check_branch
        %192 = sbr.rel (%p190) target = $region28
      $region27: #{_lambda_.2} parent=23 // pred_region
        %s193 = smul.u32 6, %s11
        %p194 = scmp.lt.s32.totalorder %s193, 29
        %s195 = scalar_select %p194, %s193, 29
        %s196 = smul.addr %s195, 4
        %s197 = scalar_lea.vmem %s0, %s196
        %s198 = smul.u32 6, %s11
      $region28: #{_lambda_.2} parent=23 // pred_fallthru
        _
      // Predicated region
      $region29: #{_lambda_.2} parent=23 // pred_check
        %p199 = pneg %p65
      $region30: #{_lambda_.2} parent=23 // pred_check_branch
        %201 = sbr.rel (%p199) target = $region32
      $region31: #{_lambda_.2} parent=23 // pred_region
        %s202 = sadd.s32 %s11, 1
        %s203 = smul.u32 %s202, 2
        %p204 = scmp.lt.s32.totalorder %s203, 9
        %s205 = scalar_select %p204, %s203, 9
        %s206 = smul.u32 3, %s205
        %p207 = scmp.lt.s32.totalorder %s206, 29
        %s208 = scalar_select %p207, %s206, 29
        %s209 = smul.addr %s208, 4
        %s210 = scalar_lea.vmem %s1, %s209
        %s211 = sadd.s32 %s11, 1
        %s212 = smul.u32 %s211, 2
        %p213 = scmp.lt.s32.totalorder %s212, 9
        %s214 = scalar_select %p213, %s212, 9
        %s215 = smul.u32 3, %s214
      $region32: #{_lambda_.2} parent=23 // pred_fallthru
        _
      // Predicated region
      $region33: #{_lambda_.2} parent=23 // pred_check
        %p216 = pneg %p133
      $region34: #{_lambda_.2} parent=23 // pred_check_branch
        %218 = sbr.rel (%p216) target = $region36
      $region35: #{_lambda_.2} parent=23 // pred_region
        %s219 = smul.u32 6, %s11
        %p220 = scmp.lt.s32.totalorder %s219, 29
        %s221 = scalar_select %p220, %s219, 29
        %s222 = scalar_lea.vmem %s4, %s221
        %s223 = smul.u32 6, %s11
      $region36: #{_lambda_.2} parent=23 // pred_fallthru
        _
    $region24: #{_lambda_.2} parent=5 // pred_fallthru
      _
    %p224 = scmp.le.s32.totalorder 1, %s11
    %p225 = scmp.lt.s32.totalorder %s11, 6
    %p226 = pnand %p224, %p225
    %p227 = pneg %p226
    // Predicated region
    $region37: #{_lambda_.2} parent=5 // pred_check
      _
    $region38: #{_lambda_.2} parent=5 // pred_check_branch
      %229 = sbr.rel (%p226) target = $region40
    $region39: #{_lambda_.2} parent=5 // pred_region
      %s230 = ssub.s32 %s11, 1
      %s231 = smul.u32 6, %s16
      %p232 = scmp.lt.s32.totalorder %s231, 29
      %s233 = scalar_select %p232, %s231, 29
      %s234 = smul.addr %s233, 4
      %s235 = scalar_lea.vmem %s0, %s234
      %p236 = pneg %p37
      %p237 = pneg %p34
      %s238 = sadd.s32 %s16, 1
      %s239 = smul.u32 %s238, 2
      %p240 = scmp.lt.s32.totalorder %s239, 9
      %s241 = scalar_select %p240, %s239, 9
      %s242 = smul.u32 3, %s241
      %p243 = scmp.lt.s32.totalorder %s242, 29
      %s244 = scalar_select %p243, %s242, 29
      %s245 = smul.addr %s244, 4
      %s246 = scalar_lea.vmem %s1, %s245
      %p247 = pneg %p71
      %p248 = pneg %p68
      %p249 = pneg %p92
      %p250 = pneg %p89
      %p251 = pneg %p113
      %p252 = pneg %p110
      %s253 = smul.u32 6, %s16
      %p254 = scmp.lt.s32.totalorder %s253, 29
      %s255 = scalar_select %p254, %s253, 29
      %s256 = scalar_lea.vmem %s4, %s255
      %p257 = pneg %p139
      %p258 = pneg %p136
      %p259 = pneg %p165
      %p260 = pneg %p162
      %s261 = smul.u32 6, %s16
      %p262 = scmp.lt.s32.totalorder %s261, 29
      %s263 = scalar_select %p262, %s261, 29
      %s264 = smul.addr %s263, 4
      %s265 = scalar_lea.vmem %s5, %s264
      %s266 = smul.u32 6, %s16
      %p267 = scmp.lt.s32.totalorder %s266, 29
      %s268 = scalar_select %p267, %s266, 29
      %s269 = smul.addr %s268, 4
      %s270 = scalar_lea.vmem %s0, %s269
      %s271 = smul.u32 6, %s16
      %s272 = sadd.s32 %s16, 1
      %s273 = smul.u32 %s272, 2
      %p274 = scmp.lt.s32.totalorder %s273, 9
      %s275 = scalar_select %p274, %s273, 9
      %s276 = smul.u32 3, %s275
      %p277 = scmp.lt.s32.totalorder %s276, 29
      %s278 = scalar_select %p277, %s276, 29
      %s279 = smul.addr %s278, 4
      %s280 = scalar_lea.vmem %s1, %s279
      %s281 = sadd.s32 %s16, 1
      %s282 = smul.u32 %s281, 2
      %p283 = scmp.lt.s32.totalorder %s282, 9
      %s284 = scalar_select %p283, %s282, 9
      %s285 = smul.u32 3, %s284
      %s286 = smul.u32 6, %s16
      %p287 = scmp.lt.s32.totalorder %s286, 29
      %s288 = scalar_select %p287, %s286, 29
      %s289 = scalar_lea.vmem %s4, %s288
      %s290 = smul.u32 6, %s16
      %s291 = smul.u32 6, %s16
      %p292 = scmp.lt.s32.totalorder %s291, 29
      %s293 = scalar_select %p292, %s291, 29
      %s294 = smul.addr %s293, 4
      %s295 = scalar_lea.vmem %s5, %s294
      %s296 = smul.u32 6, %s16
      %v298 = vld [vmem:[%s270] sm:$0xff]
      %v299 = vld [vmem:[%s270 + $0x8] sm:$0xff]
      %v300 = vld [vmem:[%s270 + $0x10] sm:$0xff]
      %v301 = vld [vmem:[%s280] sm:$0xff]
      %v302 = vld [vmem:[%s280 + $0x8] sm:$0xf]
      %v306 = vunpack.c.l.b16 %v298
      %v307 = vunpack.c.h.b16 %v298
      %v308 = vunpack.c.l.b16 %v299
      %v309 = vunpack.c.h.b16 %v299
      %v310 = vunpack.c.l.b16 %v300
      %v311 = vunpack.c.h.b16 %v300
      %v312 = vpack.c.b16 %v306, %v306
      %v313 = vpack.c.b16 %v307, %v307
      %v314 = vpack.c.b16 %v308, %v308
      %v315 = vpack.c.b16 %v309, %v309
      %v316 = vpack.c.b16 %v310, %v310
      %v317 = vpack.c.b16 %v311, %v311
      %v320 = vunpack.c.l.b16 %v301
      %v321 = vunpack.c.h.b16 %v301
      %v322 = vunpack.c.l.b16 %v302
      %v323 = vpack.c.b16 %v320, %v320
      %v324 = vpack.c.b16 %v321, %v321
      %v325 = vpack.c.b16 %v322, %v322
      %v326 = vrot.slane %v312, 4
      %v327 = vrot.slane %v313, 4
      %v328 = vrot.slane %v314, 4
      %v329 = vrot.slane %v315, 4
      %v330 = vrot.slane %v316, 4
      %v331 = vrot.slane %v317, 4
      %v332 = vrot.slane %v323, 4
      %333 = vrot.lane.b32.xlu0 %v326, 127
      %v334 = vpop.permute.xlu0 %333
      %335 = vrot.lane.b32.xlu0 %v327, 127
      %v336 = vpop.permute.xlu0 %335
      %337 = vrot.lane.b32.xlu0 %v328, 127
      %v338 = vpop.permute.xlu0 %337
      %339 = vrot.lane.b32.xlu0 %v329, 127
      %v340 = vpop.permute.xlu0 %339
      %341 = vrot.lane.b32.xlu0 %v330, 127
      %v342 = vpop.permute.xlu0 %341
      %343 = vrot.lane.b32.xlu0 %v331, 127
      %v344 = vpop.permute.xlu0 %343
      %345 = vrot.lane.b32.xlu0 %v332, 127
      %v346 = vpop.permute.xlu0 %345
      %vm347 = vcmask 1039360
      %v348 = vsel %vm347, %v334, %v336
      %v349 = vsel %vm347, %v336, %v338
      %v350 = vsel %vm347, %v338, %v340
      %v351 = vsel %vm347, %v340, %v342
      %v352 = vsel %vm347, %v342, %v344
      %v353 = vsel %vm347, %v344, %v346
      %354 = vrot.lane.b32.xlu0 %v312, 126
      %v355 = vpop.permute.xlu0 %354
      %356 = vrot.lane.b32.xlu0 %v313, 126
      %v357 = vpop.permute.xlu0 %356
      %358 = vrot.lane.b32.xlu0 %v314, 126
      %v359 = vpop.permute.xlu0 %358
      %360 = vrot.lane.b32.xlu0 %v315, 126
      %v361 = vpop.permute.xlu0 %360
      %362 = vrot.lane.b32.xlu0 %v316, 126
      %v363 = vpop.permute.xlu0 %362
      %364 = vrot.lane.b32.xlu0 %v317, 126
      %v365 = vpop.permute.xlu0 %364
      %366 = vrot.lane.b32.xlu0 %v323, 126
      %v367 = vpop.permute.xlu0 %366
      %vm368 = vcmask 1031168
      %v369 = vsel %vm368, %v355, %v357
      %v370 = vsel %vm368, %v357, %v359
      %v371 = vsel %vm368, %v359, %v361
      %v372 = vsel %vm368, %v361, %v363
      %v373 = vsel %vm368, %v363, %v365
      %v374 = vsel %vm368, %v365, %v367
      %vm375 = vcmask 1043456
      %v378 = vsel %vm375, %v312, %v348
      %v382 = vsel %vm375, %v313, %v349
      %v386 = vsel %vm375, %v314, %v350
      %v390 = vsel %vm375, %v315, %v351
      %v394 = vsel %vm375, %v316, %v352
      %v398 = vsel %vm375, %v317, %v353
      %v400 = vld [vmem:[%s2] sm:$0xf]
      %v403 = vsel %vm375, %v323, %v346
      %s404 = scalar_lea.vmem %s2, 4
      %v405 = vld [vmem:[%s404] sm:$0xf]
      %413 = vrot.lane.b32.xlu0 %v378, 116
      %v414 = vpop.permute.xlu0 %413
      %415 = vrot.lane.b32.xlu0 %v382, 116
      %v416 = vpop.permute.xlu0 %415
      %417 = vrot.lane.b32.xlu0 %v386, 116
      %v418 = vpop.permute.xlu0 %417
      %419 = vrot.lane.b32.xlu0 %v390, 116
      %v420 = vpop.permute.xlu0 %419
      %421 = vrot.lane.b32.xlu0 %v394, 116
      %v422 = vpop.permute.xlu0 %421
      %423 = vrot.lane.b32.xlu0 %v398, 116
      %v424 = vpop.permute.xlu0 %423
      %425 = vrot.lane.b32.xlu0 %v403, 116
      %v426 = vpop.permute.xlu0 %425
      %427 = vrot.lane.b32.xlu0 %v369, 116
      %v428 = vpop.permute.xlu0 %427
      %429 = vrot.lane.b32.xlu0 %v370, 116
      %v430 = vpop.permute.xlu0 %429
      %431 = vrot.lane.b32.xlu0 %v371, 116
      %v432 = vpop.permute.xlu0 %431
      %433 = vrot.lane.b32.xlu0 %v372, 116
      %v434 = vpop.permute.xlu0 %433
      %435 = vrot.lane.b32.xlu0 %v373, 116
      %v436 = vpop.permute.xlu0 %435
      %437 = vrot.lane.b32.xlu0 %v374, 116
      %v438 = vpop.permute.xlu0 %437
      %439 = vrot.lane.b32.xlu0 %v367, 116
      %v440 = vpop.permute.xlu0 %439
      %vm441 = vcmask 949248
      %v442 = vsel %vm441, %v414, %v416
      %v443 = vsel %vm441, %v416, %v418
      %v444 = vsel %vm441, %v418, %v420
      %v445 = vsel %vm441, %v420, %v422
      %v446 = vsel %vm441, %v422, %v424
      %v447 = vsel %vm441, %v424, %v426
      %v448 = vsel %vm441, %v428, %v430
      %v449 = vsel %vm441, %v430, %v432
      %v450 = vsel %vm441, %v432, %v434
      %v451 = vsel %vm441, %v434, %v436
      %v452 = vsel %vm441, %v436, %v438
      %v453 = vsel %vm441, %v438, %v440
      %vm460 = vcmask 195584
      %v462 = vsel %vm460, %v405, 0
      %v465 = vsel %vm375, %v448, 0
      %v468 = vsel %vm375, %v449, 0
      %v471 = vsel %vm375, %v450, 0
      %v474 = vsel %vm375, %v451, 0
      %v477 = vsel %vm375, %v452, 0
      %v480 = vsel %vm375, %v453, 0
      %482 = vmatprep.subr.bf16.mxu0 0
      %483 = vmatpush1.bf16.msra.mxu0 0
      %484 = vmatprep.subr.bf16.mxu0 0
      %485 = vmatpush1.bf16.msra.mxu0 0
      %486 = vmatprep.subr.bf16.mxu0 0
      %487 = vmatpush1.bf16.msra.mxu0 0
      %488 = vmatprep.subr.bf16.mxu0 0
      %489 = vmatpush1.bf16.msra.mxu0 0
      %490 = vmatprep.subr.bf16.mxu0 0
      %491 = vmatpush1.bf16.msra.mxu0 0
      %492 = vmatprep.subr.bf16.mxu0 0
      %493 = vmatpush1.bf16.msra.mxu0 0
      %494 = vmatprep.subr.bf16.mxu0 %v468
      %495 = vmatpush1.bf16.msra.mxu0 %v465
      %496 = vmatprep.subr.bf16.mxu0 %v443
      %497 = vmatpush1.bf16.msra.mxu0 %v442
      %498 = vmatprep.subr.bf16.mxu0 0
      %499 = vmatpush2.bf16.msra.mxu0 0
      %500 = vmatprep.subr.bf16.mxu0 0
      %501 = vmatpush2.bf16.msra.mxu0 0
      %502 = vmatprep.subr.bf16.mxu0 0
      %503 = vmatpush2.bf16.msra.mxu0 0
      %504 = vmatprep.subr.bf16.mxu0 0
      %505 = vmatpush2.bf16.msra.mxu0 0
      %506 = vmatprep.subr.bf16.mxu0 0
      %507 = vmatpush2.bf16.msra.mxu0 0
      %508 = vmatprep.subr.bf16.mxu0 0
      %509 = vmatpush2.bf16.msra.mxu0 0
      %510 = vmatprep.subr.bf16.mxu0 0
      %511 = vmatpush2.bf16.msra.mxu0 0
      %512 = vmatprep.subr.bf16.mxu0 0
      %513 = vmatpush2.bf16.msra.mxu0 0
      %514 = vmatprep.mubr.bf16.mxu0 0
      %515 = vmatmul.mubr.bf16.gmra.mxu0 %v462
      %v516 = vpop.f32.mrf.mxu0
      %v517 = vadd.f32 0.0, %v516
      %v518 = vpop.f32.mrf.mxu0
      %v519 = vadd.f32 0.0, %v518
      %v520 = vpop.f32.mrf.mxu0
      %v521 = vpop.f32.mrf.mxu0
      %522 = vdwg.mxu0
      %523 = vmatprep.subr.bf16.mxu0 0
      %524 = vmatpush1.bf16.msra.mxu0 0
      %525 = vmatprep.subr.bf16.mxu0 0
      %526 = vmatpush1.bf16.msra.mxu0 0
      %527 = vmatprep.subr.bf16.mxu0 0
      %528 = vmatpush1.bf16.msra.mxu0 0
      %529 = vmatprep.subr.bf16.mxu0 0
      %530 = vmatpush1.bf16.msra.mxu0 0
      %531 = vmatprep.subr.bf16.mxu0 0
      %532 = vmatpush1.bf16.msra.mxu0 0
      %533 = vmatprep.subr.bf16.mxu0 0
      %534 = vmatpush1.bf16.msra.mxu0 0
      %535 = vmatprep.subr.bf16.mxu0 %v474
      %536 = vmatpush1.bf16.msra.mxu0 %v471
      %537 = vmatprep.subr.bf16.mxu0 %v445
      %538 = vmatpush1.bf16.msra.mxu0 %v444
      %539 = vmatprep.subr.bf16.mxu0 0
      %540 = vmatpush2.bf16.msra.mxu0 0
      %541 = vmatprep.subr.bf16.mxu0 0
      %542 = vmatpush2.bf16.msra.mxu0 0
      %543 = vmatprep.subr.bf16.mxu0 0
      %544 = vmatpush2.bf16.msra.mxu0 0
      %545 = vmatprep.subr.bf16.mxu0 0
      %546 = vmatpush2.bf16.msra.mxu0 0
      %547 = vmatprep.subr.bf16.mxu0 0
      %548 = vmatpush2.bf16.msra.mxu0 0
      %549 = vmatprep.subr.bf16.mxu0 0
      %550 = vmatpush2.bf16.msra.mxu0 0
      %551 = vmatprep.subr.bf16.mxu0 0
      %552 = vmatpush2.bf16.msra.mxu0 0
      %553 = vmatprep.subr.bf16.mxu0 0
      %554 = vmatpush2.bf16.msra.mxu0 0
      %555 = vmatprep.mubr.bf16.mxu0 0
      %556 = vmatmul.mubr.bf16.gmra.mxu0 %v462
      %v557 = vpop.f32.mrf.mxu0
      %v558 = vadd.f32 0.0, %v557
      %v559 = vpop.f32.mrf.mxu0
      %v560 = vadd.f32 0.0, %v559
      %v561 = vpop.f32.mrf.mxu0
      %v562 = vpop.f32.mrf.mxu0
      %563 = vdwg.mxu0
      %564 = vmatprep.subr.bf16.mxu0 0
      %565 = vmatpush1.bf16.msra.mxu0 0
      %566 = vmatprep.subr.bf16.mxu0 0
      %567 = vmatpush1.bf16.msra.mxu0 0
      %568 = vmatprep.subr.bf16.mxu0 0
      %569 = vmatpush1.bf16.msra.mxu0 0
      %570 = vmatprep.subr.bf16.mxu0 0
      %571 = vmatpush1.bf16.msra.mxu0 0
      %572 = vmatprep.subr.bf16.mxu0 0
      %573 = vmatpush1.bf16.msra.mxu0 0
      %574 = vmatprep.subr.bf16.mxu0 0
      %575 = vmatpush1.bf16.msra.mxu0 0
      %576 = vmatprep.subr.bf16.mxu0 %v480
      %577 = vmatpush1.bf16.msra.mxu0 %v477
      %578 = vmatprep.subr.bf16.mxu0 %v447
      %579 = vmatpush1.bf16.msra.mxu0 %v446
      %580 = vmatprep.subr.bf16.mxu0 0
      %581 = vmatpush2.bf16.msra.mxu0 0
      %582 = vmatprep.subr.bf16.mxu0 0
      %583 = vmatpush2.bf16.msra.mxu0 0
      %584 = vmatprep.subr.bf16.mxu0 0
      %585 = vmatpush2.bf16.msra.mxu0 0
      %586 = vmatprep.subr.bf16.mxu0 0
      %587 = vmatpush2.bf16.msra.mxu0 0
      %588 = vmatprep.subr.bf16.mxu0 0
      %589 = vmatpush2.bf16.msra.mxu0 0
      %590 = vmatprep.subr.bf16.mxu0 0
      %591 = vmatpush2.bf16.msra.mxu0 0
      %592 = vmatprep.subr.bf16.mxu0 0
      %593 = vmatpush2.bf16.msra.mxu0 0
      %594 = vmatprep.subr.bf16.mxu0 0
      %595 = vmatpush2.bf16.msra.mxu0 0
      %596 = vmatprep.mubr.bf16.mxu0 0
      %597 = vmatmul.mubr.bf16.gmra.mxu0 %v462
      %v598 = vpop.f32.mrf.mxu0
      %v599 = vadd.f32 0.0, %v598
      %v600 = vpop.f32.mrf.mxu0
      %v601 = vadd.f32 0.0, %v600
      %v602 = vpop.f32.mrf.mxu0
      %v603 = vpop.f32.mrf.mxu0
      %604 = vdwg.mxu0
      %v606 = vsel %vm460, %v400, 0
      %v609 = vsel %vm375, %v369, 0
      %v612 = vsel %vm375, %v370, 0
      %v615 = vsel %vm375, %v371, 0
      %v618 = vsel %vm375, %v372, 0
      %v621 = vsel %vm375, %v373, 0
      %v624 = vsel %vm375, %v374, 0
      %626 = vmatprep.subr.bf16.mxu0 0
      %627 = vmatpush1.bf16.msra.mxu0 0
      %628 = vmatprep.subr.bf16.mxu0 0
      %629 = vmatpush1.bf16.msra.mxu0 0
      %630 = vmatprep.subr.bf16.mxu0 0
      %631 = vmatpush1.bf16.msra.mxu0 0
      %632 = vmatprep.subr.bf16.mxu0 0
      %633 = vmatpush1.bf16.msra.mxu0 0
      %634 = vmatprep.subr.bf16.mxu0 0
      %635 = vmatpush1.bf16.msra.mxu0 0
      %636 = vmatprep.subr.bf16.mxu0 0
      %637 = vmatpush1.bf16.msra.mxu0 0
      %638 = vmatprep.subr.bf16.mxu0 %v612
      %639 = vmatpush1.bf16.msra.mxu0 %v609
      %640 = vmatprep.subr.bf16.mxu0 %v382
      %641 = vmatpush1.bf16.msra.mxu0 %v378
      %642 = vmatprep.subr.bf16.mxu0 0
      %643 = vmatpush2.bf16.msra.mxu0 0
      %644 = vmatprep.subr.bf16.mxu0 0
      %645 = vmatpush2.bf16.msra.mxu0 0
      %646 = vmatprep.subr.bf16.mxu0 0
      %647 = vmatpush2.bf16.msra.mxu0 0
      %648 = vmatprep.subr.bf16.mxu0 0
      %649 = vmatpush2.bf16.msra.mxu0 0
      %650 = vmatprep.subr.bf16.mxu0 0
      %651 = vmatpush2.bf16.msra.mxu0 0
      %652 = vmatprep.subr.bf16.mxu0 0
      %653 = vmatpush2.bf16.msra.mxu0 0
      %654 = vmatprep.subr.bf16.mxu0 0
      %655 = vmatpush2.bf16.msra.mxu0 0
      %656 = vmatprep.subr.bf16.mxu0 0
      %657 = vmatpush2.bf16.msra.mxu0 0
      %658 = vmatprep.mubr.bf16.mxu0 0
      %659 = vmatmul.mubr.bf16.gmra.mxu0 %v606
      %v660 = vpop.f32.mrf.mxu0
      %v661 = vadd.f32 %v517, %v660
      %v662 = vpop.f32.mrf.mxu0
      %v663 = vadd.f32 %v519, %v662
      %v664 = vpop.f32.mrf.mxu0
      %v665 = vpop.f32.mrf.mxu0
      %666 = vdwg.mxu0
      %667 = vmatprep.subr.bf16.mxu0 0
      %668 = vmatpush1.bf16.msra.mxu0 0
      %669 = vmatprep.subr.bf16.mxu0 0
      %670 = vmatpush1.bf16.msra.mxu0 0
      %671 = vmatprep.subr.bf16.mxu0 0
      %672 = vmatpush1.bf16.msra.mxu0 0
      %673 = vmatprep.subr.bf16.mxu0 0
      %674 = vmatpush1.bf16.msra.mxu0 0
      %675 = vmatprep.subr.bf16.mxu0 0
      %676 = vmatpush1.bf16.msra.mxu0 0
      %677 = vmatprep.subr.bf16.mxu0 0
      %678 = vmatpush1.bf16.msra.mxu0 0
      %679 = vmatprep.subr.bf16.mxu0 %v618
      %680 = vmatpush1.bf16.msra.mxu0 %v615
      %681 = vmatprep.subr.bf16.mxu0 %v390
      %682 = vmatpush1.bf16.msra.mxu0 %v386
      %683 = vmatprep.subr.bf16.mxu0 0
      %684 = vmatpush2.bf16.msra.mxu0 0
      %685 = vmatprep.subr.bf16.mxu0 0
      %686 = vmatpush2.bf16.msra.mxu0 0
      %687 = vmatprep.subr.bf16.mxu0 0
      %688 = vmatpush2.bf16.msra.mxu0 0
      %689 = vmatprep.subr.bf16.mxu0 0
      %690 = vmatpush2.bf16.msra.mxu0 0
      %691 = vmatprep.subr.bf16.mxu0 0
      %692 = vmatpush2.bf16.msra.mxu0 0
      %693 = vmatprep.subr.bf16.mxu0 0
      %694 = vmatpush2.bf16.msra.mxu0 0
      %695 = vmatprep.subr.bf16.mxu0 0
      %696 = vmatpush2.bf16.msra.mxu0 0
      %697 = vmatprep.subr.bf16.mxu0 0
      %698 = vmatpush2.bf16.msra.mxu0 0
      %699 = vmatprep.mubr.bf16.mxu0 0
      %700 = vmatmul.mubr.bf16.gmra.mxu0 %v606
      %v701 = vpop.f32.mrf.mxu0
      %v702 = vadd.f32 %v558, %v701
      %v703 = vpop.f32.mrf.mxu0
      %v704 = vadd.f32 %v560, %v703
      %v705 = vpop.f32.mrf.mxu0
      %v706 = vpop.f32.mrf.mxu0
      %707 = vdwg.mxu0
      %708 = vmatprep.subr.bf16.mxu0 0
      %709 = vmatpush1.bf16.msra.mxu0 0
      %710 = vmatprep.subr.bf16.mxu0 0
      %711 = vmatpush1.bf16.msra.mxu0 0
      %712 = vmatprep.subr.bf16.mxu0 0
      %713 = vmatpush1.bf16.msra.mxu0 0
      %714 = vmatprep.subr.bf16.mxu0 0
      %715 = vmatpush1.bf16.msra.mxu0 0
      %716 = vmatprep.subr.bf16.mxu0 0
      %717 = vmatpush1.bf16.msra.mxu0 0
      %718 = vmatprep.subr.bf16.mxu0 0
      %719 = vmatpush1.bf16.msra.mxu0 0
      %720 = vmatprep.subr.bf16.mxu0 %v624
      %721 = vmatpush1.bf16.msra.mxu0 %v621
      %722 = vmatprep.subr.bf16.mxu0 %v398
      %723 = vmatpush1.bf16.msra.mxu0 %v394
      %724 = vmatprep.subr.bf16.mxu0 0
      %725 = vmatpush2.bf16.msra.mxu0 0
      %726 = vmatprep.subr.bf16.mxu0 0
      %727 = vmatpush2.bf16.msra.mxu0 0
      %728 = vmatprep.subr.bf16.mxu0 0
      %729 = vmatpush2.bf16.msra.mxu0 0
      %730 = vmatprep.subr.bf16.mxu0 0
      %731 = vmatpush2.bf16.msra.mxu0 0
      %732 = vmatprep.subr.bf16.mxu0 0
      %733 = vmatpush2.bf16.msra.mxu0 0
      %734 = vmatprep.subr.bf16.mxu0 0
      %735 = vmatpush2.bf16.msra.mxu0 0
      %736 = vmatprep.subr.bf16.mxu0 0
      %737 = vmatpush2.bf16.msra.mxu0 0
      %738 = vmatprep.subr.bf16.mxu0 0
      %739 = vmatpush2.bf16.msra.mxu0 0
      %740 = vmatprep.mubr.bf16.mxu0 0
      %741 = vmatmul.mubr.bf16.gmra.mxu0 %v606
      %v742 = vpop.f32.mrf.mxu0
      %v743 = vadd.f32 %v599, %v742
      %v744 = vpop.f32.mrf.mxu0
      %v745 = vadd.f32 %v601, %v744
      %v746 = vpop.f32.mrf.mxu0
      %v747 = vpop.f32.mrf.mxu0
      %748 = vdwg.mxu0
      %s749 = scalar_lea.vmem %s2, 8
      %v750 = vld [vmem:[%s749] sm:$0xf]
      %751 = vrot.lane.b32.xlu0 %v378, 104
      %v752 = vpop.permute.xlu0 %751
      %753 = vrot.lane.b32.xlu0 %v382, 104
      %v754 = vpop.permute.xlu0 %753
      %755 = vrot.lane.b32.xlu0 %v386, 104
      %v756 = vpop.permute.xlu0 %755
      %757 = vrot.lane.b32.xlu0 %v390, 104
      %v758 = vpop.permute.xlu0 %757
      %759 = vrot.lane.b32.xlu0 %v394, 104
      %v760 = vpop.permute.xlu0 %759
      %761 = vrot.lane.b32.xlu0 %v398, 104
      %v762 = vpop.permute.xlu0 %761
      %763 = vrot.lane.b32.xlu0 %v403, 104
      %v764 = vpop.permute.xlu0 %763
      %765 = vrot.lane.b32.xlu0 %v369, 104
      %v766 = vpop.permute.xlu0 %765
      %767 = vrot.lane.b32.xlu0 %v370, 104
      %v768 = vpop.permute.xlu0 %767
      %769 = vrot.lane.b32.xlu0 %v371, 104
      %v770 = vpop.permute.xlu0 %769
      %771 = vrot.lane.b32.xlu0 %v372, 104
      %v772 = vpop.permute.xlu0 %771
      %773 = vrot.lane.b32.xlu0 %v373, 104
      %v774 = vpop.permute.xlu0 %773
      %775 = vrot.lane.b32.xlu0 %v374, 104
      %v776 = vpop.permute.xlu0 %775
      %777 = vrot.lane.b32.xlu0 %v367, 104
      %v778 = vpop.permute.xlu0 %777
      %vm779 = vcmask 850944
      %v780 = vsel %vm779, %v752, %v754
      %v781 = vsel %vm779, %v754, %v756
      %v782 = vsel %vm779, %v756, %v758
      %v783 = vsel %vm779, %v758, %v760
      %v784 = vsel %vm779, %v760, %v762
      %v785 = vsel %vm779, %v762, %v764
      %v786 = vsel %vm779, %v766, %v768
      %v787 = vsel %vm779, %v768, %v770
      %v788 = vsel %vm779, %v770, %v772
      %v789 = vsel %vm779, %v772, %v774
      %v790 = vsel %vm779, %v774, %v776
      %v791 = vsel %vm779, %v776, %v778
      %v799 = vsel %vm460, %v750, 0
      %v802 = vsel %vm375, %v786, 0
      %v805 = vsel %vm375, %v787, 0
      %v808 = vsel %vm375, %v788, 0
      %v811 = vsel %vm375, %v789, 0
      %v814 = vsel %vm375, %v790, 0
      %v817 = vsel %vm375, %v791, 0
      %819 = vmatprep.subr.bf16.mxu0 0
      %820 = vmatpush1.bf16.msra.mxu0 0
      %821 = vmatprep.subr.bf16.mxu0 0
      %822 = vmatpush1.bf16.msra.mxu0 0
      %823 = vmatprep.subr.bf16.mxu0 0
      %824 = vmatpush1.bf16.msra.mxu0 0
      %825 = vmatprep.subr.bf16.mxu0 0
      %826 = vmatpush1.bf16.msra.mxu0 0
      %827 = vmatprep.subr.bf16.mxu0 0
      %828 = vmatpush1.bf16.msra.mxu0 0
      %829 = vmatprep.subr.bf16.mxu0 0
      %830 = vmatpush1.bf16.msra.mxu0 0
      %831 = vmatprep.subr.bf16.mxu0 %v805
      %832 = vmatpush1.bf16.msra.mxu0 %v802
      %833 = vmatprep.subr.bf16.mxu0 %v781
      %834 = vmatpush1.bf16.msra.mxu0 %v780
      %835 = vmatprep.subr.bf16.mxu0 0
      %836 = vmatpush2.bf16.msra.mxu0 0
      %837 = vmatprep.subr.bf16.mxu0 0
      %838 = vmatpush2.bf16.msra.mxu0 0
      %839 = vmatprep.subr.bf16.mxu0 0
      %840 = vmatpush2.bf16.msra.mxu0 0
      %841 = vmatprep.subr.bf16.mxu0 0
      %842 = vmatpush2.bf16.msra.mxu0 0
      %843 = vmatprep.subr.bf16.mxu0 0
      %844 = vmatpush2.bf16.msra.mxu0 0
      %845 = vmatprep.subr.bf16.mxu0 0
      %846 = vmatpush2.bf16.msra.mxu0 0
      %847 = vmatprep.subr.bf16.mxu0 0
      %848 = vmatpush2.bf16.msra.mxu0 0
      %849 = vmatprep.subr.bf16.mxu0 0
      %850 = vmatpush2.bf16.msra.mxu0 0
      %851 = vmatprep.mubr.bf16.mxu0 0
      %852 = vmatmul.mubr.bf16.gmra.mxu0 %v799
      %v853 = vpop.f32.mrf.mxu0
      %v854 = vadd.f32 0.0, %v853
      %v855 = vpop.f32.mrf.mxu0
      %v856 = vadd.f32 0.0, %v855
      %v857 = vpop.f32.mrf.mxu0
      %v858 = vpop.f32.mrf.mxu0
      %859 = vdwg.mxu0
      %860 = vmatprep.subr.bf16.mxu0 0
      %861 = vmatpush1.bf16.msra.mxu0 0
      %862 = vmatprep.subr.bf16.mxu0 0
      %863 = vmatpush1.bf16.msra.mxu0 0
      %864 = vmatprep.subr.bf16.mxu0 0
      %865 = vmatpush1.bf16.msra.mxu0 0
      %866 = vmatprep.subr.bf16.mxu0 0
      %867 = vmatpush1.bf16.msra.mxu0 0
      %868 = vmatprep.subr.bf16.mxu0 0
      %869 = vmatpush1.bf16.msra.mxu0 0
      %870 = vmatprep.subr.bf16.mxu0 0
      %871 = vmatpush1.bf16.msra.mxu0 0
      %872 = vmatprep.subr.bf16.mxu0 %v811
      %873 = vmatpush1.bf16.msra.mxu0 %v808
      %874 = vmatprep.subr.bf16.mxu0 %v783
      %875 = vmatpush1.bf16.msra.mxu0 %v782
      %876 = vmatprep.subr.bf16.mxu0 0
      %877 = vmatpush2.bf16.msra.mxu0 0
      %878 = vmatprep.subr.bf16.mxu0 0
      %879 = vmatpush2.bf16.msra.mxu0 0
      %880 = vmatprep.subr.bf16.mxu0 0
      %881 = vmatpush2.bf16.msra.mxu0 0
      %882 = vmatprep.subr.bf16.mxu0 0
      %883 = vmatpush2.bf16.msra.mxu0 0
      %884 = vmatprep.subr.bf16.mxu0 0
      %885 = vmatpush2.bf16.msra.mxu0 0
      %886 = vmatprep.subr.bf16.mxu0 0
      %887 = vmatpush2.bf16.msra.mxu0 0
      %888 = vmatprep.subr.bf16.mxu0 0
      %889 = vmatpush2.bf16.msra.mxu0 0
      %890 = vmatprep.subr.bf16.mxu0 0
      %891 = vmatpush2.bf16.msra.mxu0 0
      %892 = vmatprep.mubr.bf16.mxu0 0
      %893 = vmatmul.mubr.bf16.gmra.mxu0 %v799
      %v894 = vpop.f32.mrf.mxu0
      %v895 = vadd.f32 0.0, %v894
      %v896 = vpop.f32.mrf.mxu0
      %v897 = vadd.f32 0.0, %v896
      %v898 = vpop.f32.mrf.mxu0
      %v899 = vpop.f32.mrf.mxu0
      %900 = vdwg.mxu0
      %901 = vmatprep.subr.bf16.mxu0 0
      %902 = vmatpush1.bf16.msra.mxu0 0
      %903 = vmatprep.subr.bf16.mxu0 0
      %904 = vmatpush1.bf16.msra.mxu0 0
      %905 = vmatprep.subr.bf16.mxu0 0
      %906 = vmatpush1.bf16.msra.mxu0 0
      %907 = vmatprep.subr.bf16.mxu0 0
      %908 = vmatpush1.bf16.msra.mxu0 0
      %909 = vmatprep.subr.bf16.mxu0 0
      %910 = vmatpush1.bf16.msra.mxu0 0
      %911 = vmatprep.subr.bf16.mxu0 0
      %912 = vmatpush1.bf16.msra.mxu0 0
      %913 = vmatprep.subr.bf16.mxu0 %v817
      %914 = vmatpush1.bf16.msra.mxu0 %v814
      %915 = vmatprep.subr.bf16.mxu0 %v785
      %916 = vmatpush1.bf16.msra.mxu0 %v784
      %917 = vmatprep.subr.bf16.mxu0 0
      %918 = vmatpush2.bf16.msra.mxu0 0
      %919 = vmatprep.subr.bf16.mxu0 0
      %920 = vmatpush2.bf16.msra.mxu0 0
      %921 = vmatprep.subr.bf16.mxu0 0
      %922 = vmatpush2.bf16.msra.mxu0 0
      %923 = vmatprep.subr.bf16.mxu0 0
      %924 = vmatpush2.bf16.msra.mxu0 0
      %925 = vmatprep.subr.bf16.mxu0 0
      %926 = vmatpush2.bf16.msra.mxu0 0
      %927 = vmatprep.subr.bf16.mxu0 0
      %928 = vmatpush2.bf16.msra.mxu0 0
      %929 = vmatprep.subr.bf16.mxu0 0
      %930 = vmatpush2.bf16.msra.mxu0 0
      %931 = vmatprep.subr.bf16.mxu0 0
      %932 = vmatpush2.bf16.msra.mxu0 0
      %933 = vmatprep.mubr.bf16.mxu0 0
      %934 = vmatmul.mubr.bf16.gmra.mxu0 %v799
      %v935 = vpop.f32.mrf.mxu0
      %v936 = vadd.f32 0.0, %v935
      %v937 = vpop.f32.mrf.mxu0
      %v938 = vadd.f32 0.0, %v937
      %v939 = vpop.f32.mrf.mxu0
      %v940 = vpop.f32.mrf.mxu0
      %941 = vdwg.mxu0
      %v942 = vadd.f32 %v661, %v854
      %v943 = vadd.f32 %v663, %v856
      %v944 = vadd.f32 %v702, %v895
      %v945 = vadd.f32 %v704, %v897
      %v946 = vadd.f32 %v743, %v936
      %v947 = vadd.f32 %v745, %v938
      %v948 = vrot.slane %v324, 4
      %949 = vrot.lane.b32.xlu0 %v948, 127
      %v950 = vpop.permute.xlu0 %949
      %v951 = vsel %vm347, %v346, %v950
      %952 = vrot.lane.b32.xlu0 %v324, 126
      %v953 = vpop.permute.xlu0 %952
      %v954 = vsel %vm368, %v367, %v953
      %v956 = vsel %vm375, %v323, %v951
      %v959 = vsel %vm375, %v324, %v950
      %s960 = scalar_lea.vmem %s2, 12
      %v961 = vld [vmem:[%s960] sm:$0xf]
      %964 = vrot.lane.b32.xlu0 %v382, 112
      %v965 = vpop.permute.xlu0 %964
      %966 = vrot.lane.b32.xlu0 %v386, 112
      %v967 = vpop.permute.xlu0 %966
      %968 = vrot.lane.b32.xlu0 %v390, 112
      %v969 = vpop.permute.xlu0 %968
      %970 = vrot.lane.b32.xlu0 %v394, 112
      %v971 = vpop.permute.xlu0 %970
      %972 = vrot.lane.b32.xlu0 %v398, 112
      %v973 = vpop.permute.xlu0 %972
      %974 = vrot.lane.b32.xlu0 %v956, 112
      %v975 = vpop.permute.xlu0 %974
      %976 = vrot.lane.b32.xlu0 %v959, 112
      %v977 = vpop.permute.xlu0 %976
      %978 = vrot.lane.b32.xlu0 %v370, 112
      %v979 = vpop.permute.xlu0 %978
      %980 = vrot.lane.b32.xlu0 %v371, 112
      %v981 = vpop.permute.xlu0 %980
      %982 = vrot.lane.b32.xlu0 %v372, 112
      %v983 = vpop.permute.xlu0 %982
      %984 = vrot.lane.b32.xlu0 %v373, 112
      %v985 = vpop.permute.xlu0 %984
      %986 = vrot.lane.b32.xlu0 %v374, 112
      %v987 = vpop.permute.xlu0 %986
      %988 = vrot.lane.b32.xlu0 %v954, 112
      %v989 = vpop.permute.xlu0 %988
      %990 = vrot.lane.b32.xlu0 %v953, 112
      %v991 = vpop.permute.xlu0 %990
      %vm992 = vcmask 916480
      %v993 = vsel %vm992, %v965, %v967
      %v994 = vsel %vm992, %v967, %v969
      %v995 = vsel %vm992, %v969, %v971
      %v996 = vsel %vm992, %v971, %v973
      %v997 = vsel %vm992, %v973, %v975
      %v998 = vsel %vm992, %v975, %v977
      %v999 = vsel %vm992, %v979, %v981
      %v1000 = vsel %vm992, %v981, %v983
      %v1001 = vsel %vm992, %v983, %v985
      %v1002 = vsel %vm992, %v985, %v987
      %v1003 = vsel %vm992, %v987, %v989
      %v1004 = vsel %vm992, %v989, %v991
      %v1012 = vsel %vm460, %v961, 0
      %v1015 = vsel %vm375, %v999, 0
      %v1018 = vsel %vm375, %v1000, 0
      %v1021 = vsel %vm375, %v1001, 0
      %v1024 = vsel %vm375, %v1002, 0
      %v1027 = vsel %vm375, %v1003, 0
      %v1030 = vsel %vm375, %v1004, 0
      %1032 = vmatprep.subr.bf16.mxu0 0
      %1033 = vmatpush1.bf16.msra.mxu0 0
      %1034 = vmatprep.subr.bf16.mxu0 0
      %1035 = vmatpush1.bf16.msra.mxu0 0
      %1036 = vmatprep.subr.bf16.mxu0 0
      %1037 = vmatpush1.bf16.msra.mxu0 0
      %1038 = vmatprep.subr.bf16.mxu0 0
      %1039 = vmatpush1.bf16.msra.mxu0 0
      %1040 = vmatprep.subr.bf16.mxu0 0
      %1041 = vmatpush1.bf16.msra.mxu0 0
      %1042 = vmatprep.subr.bf16.mxu0 0
      %1043 = vmatpush1.bf16.msra.mxu0 0
      %1044 = vmatprep.subr.bf16.mxu0 %v1018
      %1045 = vmatpush1.bf16.msra.mxu0 %v1015
      %1046 = vmatprep.subr.bf16.mxu0 %v994
      %1047 = vmatpush1.bf16.msra.mxu0 %v993
      %1048 = vmatprep.subr.bf16.mxu0 0
      %1049 = vmatpush2.bf16.msra.mxu0 0
      %1050 = vmatprep.subr.bf16.mxu0 0
      %1051 = vmatpush2.bf16.msra.mxu0 0
      %1052 = vmatprep.subr.bf16.mxu0 0
      %1053 = vmatpush2.bf16.msra.mxu0 0
      %1054 = vmatprep.subr.bf16.mxu0 0
      %1055 = vmatpush2.bf16.msra.mxu0 0
      %1056 = vmatprep.subr.bf16.mxu0 0
      %1057 = vmatpush2.bf16.msra.mxu0 0
      %1058 = vmatprep.subr.bf16.mxu0 0
      %1059 = vmatpush2.bf16.msra.mxu0 0
      %1060 = vmatprep.subr.bf16.mxu0 0
      %1061 = vmatpush2.bf16.msra.mxu0 0
      %1062 = vmatprep.subr.bf16.mxu0 0
      %1063 = vmatpush2.bf16.msra.mxu0 0
      %1064 = vmatprep.mubr.bf16.mxu0 0
      %1065 = vmatmul.mubr.bf16.gmra.mxu0 %v1012
      %v1066 = vpop.f32.mrf.mxu0
      %v1067 = vadd.f32 0.0, %v1066
      %v1068 = vpop.f32.mrf.mxu0
      %v1069 = vadd.f32 0.0, %v1068
      %v1070 = vpop.f32.mrf.mxu0
      %v1071 = vpop.f32.mrf.mxu0
      %1072 = vdwg.mxu0
      %1073 = vmatprep.subr.bf16.mxu0 0
      %1074 = vmatpush1.bf16.msra.mxu0 0
      %1075 = vmatprep.subr.bf16.mxu0 0
      %1076 = vmatpush1.bf16.msra.mxu0 0
      %1077 = vmatprep.subr.bf16.mxu0 0
      %1078 = vmatpush1.bf16.msra.mxu0 0
      %1079 = vmatprep.subr.bf16.mxu0 0
      %1080 = vmatpush1.bf16.msra.mxu0 0
      %1081 = vmatprep.subr.bf16.mxu0 0
      %1082 = vmatpush1.bf16.msra.mxu0 0
      %1083 = vmatprep.subr.bf16.mxu0 0
      %1084 = vmatpush1.bf16.msra.mxu0 0
      %1085 = vmatprep.subr.bf16.mxu0 %v1024
      %1086 = vmatpush1.bf16.msra.mxu0 %v1021
      %1087 = vmatprep.subr.bf16.mxu0 %v996
      %1088 = vmatpush1.bf16.msra.mxu0 %v995
      %1089 = vmatprep.subr.bf16.mxu0 0
      %1090 = vmatpush2.bf16.msra.mxu0 0
      %1091 = vmatprep.subr.bf16.mxu0 0
      %1092 = vmatpush2.bf16.msra.mxu0 0
      %1093 = vmatprep.subr.bf16.mxu0 0
      %1094 = vmatpush2.bf16.msra.mxu0 0
      %1095 = vmatprep.subr.bf16.mxu0 0
      %1096 = vmatpush2.bf16.msra.mxu0 0
      %1097 = vmatprep.subr.bf16.mxu0 0
      %1098 = vmatpush2.bf16.msra.mxu0 0
      %1099 = vmatprep.subr.bf16.mxu0 0
      %1100 = vmatpush2.bf16.msra.mxu0 0
      %1101 = vmatprep.subr.bf16.mxu0 0
      %1102 = vmatpush2.bf16.msra.mxu0 0
      %1103 = vmatprep.subr.bf16.mxu0 0
      %1104 = vmatpush2.bf16.msra.mxu0 0
      %1105 = vmatprep.mubr.bf16.mxu0 0
      %1106 = vmatmul.mubr.bf16.gmra.mxu0 %v1012
      %v1107 = vpop.f32.mrf.mxu0
      %v1108 = vadd.f32 0.0, %v1107
      %v1109 = vpop.f32.mrf.mxu0
      %v1110 = vadd.f32 0.0, %v1109
      %v1111 = vpop.f32.mrf.mxu0
      %v1112 = vpop.f32.mrf.mxu0
      %1113 = vdwg.mxu0
      %1114 = vmatprep.subr.bf16.mxu0 0
      %1115 = vmatpush1.bf16.msra.mxu0 0
      %1116 = vmatprep.subr.bf16.mxu0 0
      %1117 = vmatpush1.bf16.msra.mxu0 0
      %1118 = vmatprep.subr.bf16.mxu0 0
      %1119 = vmatpush1.bf16.msra.mxu0 0
      %1120 = vmatprep.subr.bf16.mxu0 0
      %1121 = vmatpush1.bf16.msra.mxu0 0
      %1122 = vmatprep.subr.bf16.mxu0 0
      %1123 = vmatpush1.bf16.msra.mxu0 0
      %1124 = vmatprep.subr.bf16.mxu0 0
      %1125 = vmatpush1.bf16.msra.mxu0 0
      %1126 = vmatprep.subr.bf16.mxu0 %v1030
      %1127 = vmatpush1.bf16.msra.mxu0 %v1027
      %1128 = vmatprep.subr.bf16.mxu0 %v998
      %1129 = vmatpush1.bf16.msra.mxu0 %v997
      %1130 = vmatprep.subr.bf16.mxu0 0
      %1131 = vmatpush2.bf16.msra.mxu0 0
      %1132 = vmatprep.subr.bf16.mxu0 0
      %1133 = vmatpush2.bf16.msra.mxu0 0
      %1134 = vmatprep.subr.bf16.mxu0 0
      %1135 = vmatpush2.bf16.msra.mxu0 0
      %1136 = vmatprep.subr.bf16.mxu0 0
      %1137 = vmatpush2.bf16.msra.mxu0 0
      %1138 = vmatprep.subr.bf16.mxu0 0
      %1139 = vmatpush2.bf16.msra.mxu0 0
      %1140 = vmatprep.subr.bf16.mxu0 0
      %1141 = vmatpush2.bf16.msra.mxu0 0
      %1142 = vmatprep.subr.bf16.mxu0 0
      %1143 = vmatpush2.bf16.msra.mxu0 0
      %1144 = vmatprep.subr.bf16.mxu0 0
      %1145 = vmatpush2.bf16.msra.mxu0 0
      %1146 = vmatprep.mubr.bf16.mxu0 0
      %1147 = vmatmul.mubr.bf16.gmra.mxu0 %v1012
      %v1148 = vpop.f32.mrf.mxu0
      %v1149 = vadd.f32 0.0, %v1148
      %v1150 = vpop.f32.mrf.mxu0
      %v1151 = vadd.f32 0.0, %v1150
      %v1152 = vpop.f32.mrf.mxu0
      %v1153 = vpop.f32.mrf.mxu0
      %1154 = vdwg.mxu0
      %v1155 = vadd.f32 %v942, %v1067
      %v1156 = vadd.f32 %v943, %v1069
      %v1157 = vadd.f32 %v944, %v1108
      %v1158 = vadd.f32 %v945, %v1110
      %v1159 = vadd.f32 %v946, %v1149
      %v1160 = vadd.f32 %v947, %v1151
      %s1161 = scalar_lea.vmem %s2, 16
      %v1162 = vld [vmem:[%s1161] sm:$0xf]
      %1163 = vrot.lane.b32.xlu0 %v382, 100
      %v1164 = vpop.permute.xlu0 %1163
      %1165 = vrot.lane.b32.xlu0 %v386, 100
      %v1166 = vpop.permute.xlu0 %1165
      %1167 = vrot.lane.b32.xlu0 %v390, 100
      %v1168 = vpop.permute.xlu0 %1167
      %1169 = vrot.lane.b32.xlu0 %v394, 100
      %v1170 = vpop.permute.xlu0 %1169
      %1171 = vrot.lane.b32.xlu0 %v398, 100
      %v1172 = vpop.permute.xlu0 %1171
      %1173 = vrot.lane.b32.xlu0 %v956, 100
      %v1174 = vpop.permute.xlu0 %1173
      %1175 = vrot.lane.b32.xlu0 %v959, 100
      %v1176 = vpop.permute.xlu0 %1175
      %1177 = vrot.lane.b32.xlu0 %v370, 100
      %v1178 = vpop.permute.xlu0 %1177
      %1179 = vrot.lane.b32.xlu0 %v371, 100
      %v1180 = vpop.permute.xlu0 %1179
      %1181 = vrot.lane.b32.xlu0 %v372, 100
      %v1182 = vpop.permute.xlu0 %1181
      %1183 = vrot.lane.b32.xlu0 %v373, 100
      %v1184 = vpop.permute.xlu0 %1183
      %1185 = vrot.lane.b32.xlu0 %v374, 100
      %v1186 = vpop.permute.xlu0 %1185
      %1187 = vrot.lane.b32.xlu0 %v954, 100
      %v1188 = vpop.permute.xlu0 %1187
      %1189 = vrot.lane.b32.xlu0 %v953, 100
      %v1190 = vpop.permute.xlu0 %1189
      %vm1191 = vcmask 818176
      %v1192 = vsel %vm1191, %v1164, %v1166
      %v1193 = vsel %vm1191, %v1166, %v1168
      %v1194 = vsel %vm1191, %v1168, %v1170
      %v1195 = vsel %vm1191, %v1170, %v1172
      %v1196 = vsel %vm1191, %v1172, %v1174
      %v1197 = vsel %vm1191, %v1174, %v1176
      %v1198 = vsel %vm1191, %v1178, %v1180
      %v1199 = vsel %vm1191, %v1180, %v1182
      %v1200 = vsel %vm1191, %v1182, %v1184
      %v1201 = vsel %vm1191, %v1184, %v1186
      %v1202 = vsel %vm1191, %v1186, %v1188
      %v1203 = vsel %vm1191, %v1188, %v1190
      %v1211 = vsel %vm460, %v1162, 0
      %v1214 = vsel %vm375, %v1198, 0
      %v1217 = vsel %vm375, %v1199, 0
      %v1220 = vsel %vm375, %v1200, 0
      %v1223 = vsel %vm375, %v1201, 0
      %v1226 = vsel %vm375, %v1202, 0
      %v1229 = vsel %vm375, %v1203, 0
      %1231 = vmatprep.subr.bf16.mxu0 0
      %1232 = vmatpush1.bf16.msra.mxu0 0
      %1233 = vmatprep.subr.bf16.mxu0 0
      %1234 = vmatpush1.bf16.msra.mxu0 0
      %1235 = vmatprep.subr.bf16.mxu0 0
      %1236 = vmatpush1.bf16.msra.mxu0 0
      %1237 = vmatprep.subr.bf16.mxu0 0
      %1238 = vmatpush1.bf16.msra.mxu0 0
      %1239 = vmatprep.subr.bf16.mxu0 0
      %1240 = vmatpush1.bf16.msra.mxu0 0
      %1241 = vmatprep.subr.bf16.mxu0 0
      %1242 = vmatpush1.bf16.msra.mxu0 0
      %1243 = vmatprep.subr.bf16.mxu0 %v1217
      %1244 = vmatpush1.bf16.msra.mxu0 %v1214
      %1245 = vmatprep.subr.bf16.mxu0 %v1193
      %1246 = vmatpush1.bf16.msra.mxu0 %v1192
      %1247 = vmatprep.subr.bf16.mxu0 0
      %1248 = vmatpush2.bf16.msra.mxu0 0
      %1249 = vmatprep.subr.bf16.mxu0 0
      %1250 = vmatpush2.bf16.msra.mxu0 0
      %1251 = vmatprep.subr.bf16.mxu0 0
      %1252 = vmatpush2.bf16.msra.mxu0 0
      %1253 = vmatprep.subr.bf16.mxu0 0
      %1254 = vmatpush2.bf16.msra.mxu0 0
      %1255 = vmatprep.subr.bf16.mxu0 0
      %1256 = vmatpush2.bf16.msra.mxu0 0
      %1257 = vmatprep.subr.bf16.mxu0 0
      %1258 = vmatpush2.bf16.msra.mxu0 0
      %1259 = vmatprep.subr.bf16.mxu0 0
      %1260 = vmatpush2.bf16.msra.mxu0 0
      %1261 = vmatprep.subr.bf16.mxu0 0
      %1262 = vmatpush2.bf16.msra.mxu0 0
      %1263 = vmatprep.mubr.bf16.mxu0 0
      %1264 = vmatmul.mubr.bf16.gmra.mxu0 %v1211
      %v1265 = vpop.f32.mrf.mxu0
      %v1266 = vadd.f32 0.0, %v1265
      %v1267 = vpop.f32.mrf.mxu0
      %v1268 = vadd.f32 0.0, %v1267
      %v1269 = vpop.f32.mrf.mxu0
      %v1270 = vpop.f32.mrf.mxu0
      %1271 = vdwg.mxu0
      %1272 = vmatprep.subr.bf16.mxu0 0
      %1273 = vmatpush1.bf16.msra.mxu0 0
      %1274 = vmatprep.subr.bf16.mxu0 0
      %1275 = vmatpush1.bf16.msra.mxu0 0
      %1276 = vmatprep.subr.bf16.mxu0 0
      %1277 = vmatpush1.bf16.msra.mxu0 0
      %1278 = vmatprep.subr.bf16.mxu0 0
      %1279 = vmatpush1.bf16.msra.mxu0 0
      %1280 = vmatprep.subr.bf16.mxu0 0
      %1281 = vmatpush1.bf16.msra.mxu0 0
      %1282 = vmatprep.subr.bf16.mxu0 0
      %1283 = vmatpush1.bf16.msra.mxu0 0
      %1284 = vmatprep.subr.bf16.mxu0 %v1223
      %1285 = vmatpush1.bf16.msra.mxu0 %v1220
      %1286 = vmatprep.subr.bf16.mxu0 %v1195
      %1287 = vmatpush1.bf16.msra.mxu0 %v1194
      %1288 = vmatprep.subr.bf16.mxu0 0
      %1289 = vmatpush2.bf16.msra.mxu0 0
      %1290 = vmatprep.subr.bf16.mxu0 0
      %1291 = vmatpush2.bf16.msra.mxu0 0
      %1292 = vmatprep.subr.bf16.mxu0 0
      %1293 = vmatpush2.bf16.msra.mxu0 0
      %1294 = vmatprep.subr.bf16.mxu0 0
      %1295 = vmatpush2.bf16.msra.mxu0 0
      %1296 = vmatprep.subr.bf16.mxu0 0
      %1297 = vmatpush2.bf16.msra.mxu0 0
      %1298 = vmatprep.subr.bf16.mxu0 0
      %1299 = vmatpush2.bf16.msra.mxu0 0
      %1300 = vmatprep.subr.bf16.mxu0 0
      %1301 = vmatpush2.bf16.msra.mxu0 0
      %1302 = vmatprep.subr.bf16.mxu0 0
      %1303 = vmatpush2.bf16.msra.mxu0 0
      %1304 = vmatprep.mubr.bf16.mxu0 0
      %1305 = vmatmul.mubr.bf16.gmra.mxu0 %v1211
      %v1306 = vpop.f32.mrf.mxu0
      %v1307 = vadd.f32 0.0, %v1306
      %v1308 = vpop.f32.mrf.mxu0
      %v1309 = vadd.f32 0.0, %v1308
      %v1310 = vpop.f32.mrf.mxu0
      %v1311 = vpop.f32.mrf.mxu0
      %1312 = vdwg.mxu0
      %1313 = vmatprep.subr.bf16.mxu0 0
      %1314 = vmatpush1.bf16.msra.mxu0 0
      %1315 = vmatprep.subr.bf16.mxu0 0
      %1316 = vmatpush1.bf16.msra.mxu0 0
      %1317 = vmatprep.subr.bf16.mxu0 0
      %1318 = vmatpush1.bf16.msra.mxu0 0
      %1319 = vmatprep.subr.bf16.mxu0 0
      %1320 = vmatpush1.bf16.msra.mxu0 0
      %1321 = vmatprep.subr.bf16.mxu0 0
      %1322 = vmatpush1.bf16.msra.mxu0 0
      %1323 = vmatprep.subr.bf16.mxu0 0
      %1324 = vmatpush1.bf16.msra.mxu0 0
      %1325 = vmatprep.subr.bf16.mxu0 %v1229
      %1326 = vmatpush1.bf16.msra.mxu0 %v1226
      %1327 = vmatprep.subr.bf16.mxu0 %v1197
      %1328 = vmatpush1.bf16.msra.mxu0 %v1196
      %1329 = vmatprep.subr.bf16.mxu0 0
      %1330 = vmatpush2.bf16.msra.mxu0 0
      %1331 = vmatprep.subr.bf16.mxu0 0
      %1332 = vmatpush2.bf16.msra.mxu0 0
      %1333 = vmatprep.subr.bf16.mxu0 0
      %1334 = vmatpush2.bf16.msra.mxu0 0
      %1335 = vmatprep.subr.bf16.mxu0 0
      %1336 = vmatpush2.bf16.msra.mxu0 0
      %1337 = vmatprep.subr.bf16.mxu0 0
      %1338 = vmatpush2.bf16.msra.mxu0 0
      %1339 = vmatprep.subr.bf16.mxu0 0
      %1340 = vmatpush2.bf16.msra.mxu0 0
      %1341 = vmatprep.subr.bf16.mxu0 0
      %1342 = vmatpush2.bf16.msra.mxu0 0
      %1343 = vmatprep.subr.bf16.mxu0 0
      %1344 = vmatpush2.bf16.msra.mxu0 0
      %1345 = vmatprep.mubr.bf16.mxu0 0
      %1346 = vmatmul.mubr.bf16.gmra.mxu0 %v1211
      %v1347 = vpop.f32.mrf.mxu0
      %v1348 = vadd.f32 0.0, %v1347
      %v1349 = vpop.f32.mrf.mxu0
      %v1350 = vadd.f32 0.0, %v1349
      %v1351 = vpop.f32.mrf.mxu0
      %v1352 = vpop.f32.mrf.mxu0
      %1353 = vdwg.mxu0
      %v1354 = vadd.f32 %v1155, %v1266
      %v1355 = vadd.f32 %v1156, %v1268
      %v1356 = vadd.f32 %v1157, %v1307
      %v1357 = vadd.f32 %v1158, %v1309
      %v1358 = vadd.f32 %v1159, %v1348
      %v1359 = vadd.f32 %v1160, %v1350
      %s1360 = scalar_lea.vmem %s2, 20
      %v1361 = vld [vmem:[%s1360] sm:$0xf]
      %1362 = vrot.lane.b32.xlu0 %v382, 88
      %v1363 = vpop.permute.xlu0 %1362
      %1364 = vrot.lane.b32.xlu0 %v386, 88
      %v1365 = vpop.permute.xlu0 %1364
      %1366 = vrot.lane.b32.xlu0 %v390, 88
      %v1367 = vpop.permute.xlu0 %1366
      %1368 = vrot.lane.b32.xlu0 %v394, 88
      %v1369 = vpop.permute.xlu0 %1368
      %1370 = vrot.lane.b32.xlu0 %v398, 88
      %v1371 = vpop.permute.xlu0 %1370
      %1372 = vrot.lane.b32.xlu0 %v956, 88
      %v1373 = vpop.permute.xlu0 %1372
      %1374 = vrot.lane.b32.xlu0 %v959, 88
      %v1375 = vpop.permute.xlu0 %1374
      %1376 = vrot.lane.b32.xlu0 %v370, 88
      %v1377 = vpop.permute.xlu0 %1376
      %1378 = vrot.lane.b32.xlu0 %v371, 88
      %v1379 = vpop.permute.xlu0 %1378
      %1380 = vrot.lane.b32.xlu0 %v372, 88
      %v1381 = vpop.permute.xlu0 %1380
      %1382 = vrot.lane.b32.xlu0 %v373, 88
      %v1383 = vpop.permute.xlu0 %1382
      %1384 = vrot.lane.b32.xlu0 %v374, 88
      %v1385 = vpop.permute.xlu0 %1384
      %1386 = vrot.lane.b32.xlu0 %v954, 88
      %v1387 = vpop.permute.xlu0 %1386
      %1388 = vrot.lane.b32.xlu0 %v953, 88
      %v1389 = vpop.permute.xlu0 %1388
      %vm1390 = vcmask 719872
      %v1391 = vsel %vm1390, %v1363, %v1365
      %v1392 = vsel %vm1390, %v1365, %v1367
      %v1393 = vsel %vm1390, %v1367, %v1369
      %v1394 = vsel %vm1390, %v1369, %v1371
      %v1395 = vsel %vm1390, %v1371, %v1373
      %v1396 = vsel %vm1390, %v1373, %v1375
      %v1397 = vsel %vm1390, %v1377, %v1379
      %v1398 = vsel %vm1390, %v1379, %v1381
      %v1399 = vsel %vm1390, %v1381, %v1383
      %v1400 = vsel %vm1390, %v1383, %v1385
      %v1401 = vsel %vm1390, %v1385, %v1387
      %v1402 = vsel %vm1390, %v1387, %v1389
      %v1410 = vsel %vm460, %v1361, 0
      %v1413 = vsel %vm375, %v1397, 0
      %v1416 = vsel %vm375, %v1398, 0
      %v1419 = vsel %vm375, %v1399, 0
      %v1422 = vsel %vm375, %v1400, 0
      %v1425 = vsel %vm375, %v1401, 0
      %v1428 = vsel %vm375, %v1402, 0
      %1430 = vmatprep.subr.bf16.mxu0 0
      %1431 = vmatpush1.bf16.msra.mxu0 0
      %1432 = vmatprep.subr.bf16.mxu0 0
      %1433 = vmatpush1.bf16.msra.mxu0 0
      %1434 = vmatprep.subr.bf16.mxu0 0
      %1435 = vmatpush1.bf16.msra.mxu0 0
      %1436 = vmatprep.subr.bf16.mxu0 0
      %1437 = vmatpush1.bf16.msra.mxu0 0
      %1438 = vmatprep.subr.bf16.mxu0 0
      %1439 = vmatpush1.bf16.msra.mxu0 0
      %1440 = vmatprep.subr.bf16.mxu0 0
      %1441 = vmatpush1.bf16.msra.mxu0 0
      %1442 = vmatprep.subr.bf16.mxu0 %v1416
      %1443 = vmatpush1.bf16.msra.mxu0 %v1413
      %1444 = vmatprep.subr.bf16.mxu0 %v1392
      %1445 = vmatpush1.bf16.msra.mxu0 %v1391
      %1446 = vmatprep.subr.bf16.mxu0 0
      %1447 = vmatpush2.bf16.msra.mxu0 0
      %1448 = vmatprep.subr.bf16.mxu0 0
      %1449 = vmatpush2.bf16.msra.mxu0 0
      %1450 = vmatprep.subr.bf16.mxu0 0
      %1451 = vmatpush2.bf16.msra.mxu0 0
      %1452 = vmatprep.subr.bf16.mxu0 0
      %1453 = vmatpush2.bf16.msra.mxu0 0
      %1454 = vmatprep.subr.bf16.mxu0 0
      %1455 = vmatpush2.bf16.msra.mxu0 0
      %1456 = vmatprep.subr.bf16.mxu0 0
      %1457 = vmatpush2.bf16.msra.mxu0 0
      %1458 = vmatprep.subr.bf16.mxu0 0
      %1459 = vmatpush2.bf16.msra.mxu0 0
      %1460 = vmatprep.subr.bf16.mxu0 0
      %1461 = vmatpush2.bf16.msra.mxu0 0
      %1462 = vmatprep.mubr.bf16.mxu0 0
      %1463 = vmatmul.mubr.bf16.gmra.mxu0 %v1410
      %v1464 = vpop.f32.mrf.mxu0
      %v1465 = vadd.f32 0.0, %v1464
      %v1466 = vpop.f32.mrf.mxu0
      %v1467 = vadd.f32 0.0, %v1466
      %v1468 = vpop.f32.mrf.mxu0
      %v1469 = vpop.f32.mrf.mxu0
      %1470 = vdwg.mxu0
      %1471 = vmatprep.subr.bf16.mxu0 0
      %1472 = vmatpush1.bf16.msra.mxu0 0
      %1473 = vmatprep.subr.bf16.mxu0 0
      %1474 = vmatpush1.bf16.msra.mxu0 0
      %1475 = vmatprep.subr.bf16.mxu0 0
      %1476 = vmatpush1.bf16.msra.mxu0 0
      %1477 = vmatprep.subr.bf16.mxu0 0
      %1478 = vmatpush1.bf16.msra.mxu0 0
      %1479 = vmatprep.subr.bf16.mxu0 0
      %1480 = vmatpush1.bf16.msra.mxu0 0
      %1481 = vmatprep.subr.bf16.mxu0 0
      %1482 = vmatpush1.bf16.msra.mxu0 0
      %1483 = vmatprep.subr.bf16.mxu0 %v1422
      %1484 = vmatpush1.bf16.msra.mxu0 %v1419
      %1485 = vmatprep.subr.bf16.mxu0 %v1394
      %1486 = vmatpush1.bf16.msra.mxu0 %v1393
      %1487 = vmatprep.subr.bf16.mxu0 0
      %1488 = vmatpush2.bf16.msra.mxu0 0
      %1489 = vmatprep.subr.bf16.mxu0 0
      %1490 = vmatpush2.bf16.msra.mxu0 0
      %1491 = vmatprep.subr.bf16.mxu0 0
      %1492 = vmatpush2.bf16.msra.mxu0 0
      %1493 = vmatprep.subr.bf16.mxu0 0
      %1494 = vmatpush2.bf16.msra.mxu0 0
      %1495 = vmatprep.subr.bf16.mxu0 0
      %1496 = vmatpush2.bf16.msra.mxu0 0
      %1497 = vmatprep.subr.bf16.mxu0 0
      %1498 = vmatpush2.bf16.msra.mxu0 0
      %1499 = vmatprep.subr.bf16.mxu0 0
      %1500 = vmatpush2.bf16.msra.mxu0 0
      %1501 = vmatprep.subr.bf16.mxu0 0
      %1502 = vmatpush2.bf16.msra.mxu0 0
      %1503 = vmatprep.mubr.bf16.mxu0 0
      %1504 = vmatmul.mubr.bf16.gmra.mxu0 %v1410
      %v1505 = vpop.f32.mrf.mxu0
      %v1506 = vadd.f32 0.0, %v1505
      %v1507 = vpop.f32.mrf.mxu0
      %v1508 = vadd.f32 0.0, %v1507
      %v1509 = vpop.f32.mrf.mxu0
      %v1510 = vpop.f32.mrf.mxu0
      %1511 = vdwg.mxu0
      %1512 = vmatprep.subr.bf16.mxu0 0
      %1513 = vmatpush1.bf16.msra.mxu0 0
      %1514 = vmatprep.subr.bf16.mxu0 0
      %1515 = vmatpush1.bf16.msra.mxu0 0
      %1516 = vmatprep.subr.bf16.mxu0 0
      %1517 = vmatpush1.bf16.msra.mxu0 0
      %1518 = vmatprep.subr.bf16.mxu0 0
      %1519 = vmatpush1.bf16.msra.mxu0 0
      %1520 = vmatprep.subr.bf16.mxu0 0
      %1521 = vmatpush1.bf16.msra.mxu0 0
      %1522 = vmatprep.subr.bf16.mxu0 0
      %1523 = vmatpush1.bf16.msra.mxu0 0
      %1524 = vmatprep.subr.bf16.mxu0 %v1428
      %1525 = vmatpush1.bf16.msra.mxu0 %v1425
      %1526 = vmatprep.subr.bf16.mxu0 %v1396
      %1527 = vmatpush1.bf16.msra.mxu0 %v1395
      %1528 = vmatprep.subr.bf16.mxu0 0
      %1529 = vmatpush2.bf16.msra.mxu0 0
      %1530 = vmatprep.subr.bf16.mxu0 0
      %1531 = vmatpush2.bf16.msra.mxu0 0
      %1532 = vmatprep.subr.bf16.mxu0 0
      %1533 = vmatpush2.bf16.msra.mxu0 0
      %1534 = vmatprep.subr.bf16.mxu0 0
      %1535 = vmatpush2.bf16.msra.mxu0 0
      %1536 = vmatprep.subr.bf16.mxu0 0
      %1537 = vmatpush2.bf16.msra.mxu0 0
      %1538 = vmatprep.subr.bf16.mxu0 0
      %1539 = vmatpush2.bf16.msra.mxu0 0
      %1540 = vmatprep.subr.bf16.mxu0 0
      %1541 = vmatpush2.bf16.msra.mxu0 0
      %1542 = vmatprep.subr.bf16.mxu0 0
      %1543 = vmatpush2.bf16.msra.mxu0 0
      %1544 = vmatprep.mubr.bf16.mxu0 0
      %1545 = vmatmul.mubr.bf16.gmra.mxu0 %v1410
      %v1546 = vpop.f32.mrf.mxu0
      %v1547 = vadd.f32 0.0, %v1546
      %v1548 = vpop.f32.mrf.mxu0
      %v1549 = vadd.f32 0.0, %v1548
      %v1550 = vpop.f32.mrf.mxu0
      %v1551 = vpop.f32.mrf.mxu0
      %1552 = vdwg.mxu0
      %v1553 = vadd.f32 %v1354, %v1465
      %v1554 = vadd.f32 %v1355, %v1467
      %v1555 = vadd.f32 %v1356, %v1506
      %v1556 = vadd.f32 %v1357, %v1508
      %v1557 = vadd.f32 %v1358, %v1547
      %v1558 = vadd.f32 %v1359, %v1549
      %v1559 = vrot.slane %v325, 4
      %1560 = vrot.lane.b32.xlu0 %v1559, 127
      %v1561 = vpop.permute.xlu0 %1560
      %v1562 = vsel %vm347, %v950, %v1561
      %1563 = vrot.lane.b32.xlu0 %v325, 126
      %v1564 = vpop.permute.xlu0 %1563
      %v1565 = vsel %vm368, %v953, %v1564
      %v1567 = vsel %vm375, %v324, %v1562
      %v1570 = vsel %vm375, %v325, %v1561
      %s1571 = scalar_lea.vmem %s2, 24
      %v1572 = vld [vmem:[%s1571] sm:$0xf]
      %1575 = vrot.lane.b32.xlu0 %v386, 96
      %v1576 = vpop.permute.xlu0 %1575
      %1577 = vrot.lane.b32.xlu0 %v390, 96
      %v1578 = vpop.permute.xlu0 %1577
      %1579 = vrot.lane.b32.xlu0 %v394, 96
      %v1580 = vpop.permute.xlu0 %1579
      %1581 = vrot.lane.b32.xlu0 %v398, 96
      %v1582 = vpop.permute.xlu0 %1581
      %1583 = vrot.lane.b32.xlu0 %v956, 96
      %v1584 = vpop.permute.xlu0 %1583
      %1585 = vrot.lane.b32.xlu0 %v1567, 96
      %v1586 = vpop.permute.xlu0 %1585
      %1587 = vrot.lane.b32.xlu0 %v1570, 96
      %v1588 = vpop.permute.xlu0 %1587
      %1589 = vrot.lane.b32.xlu0 %v371, 96
      %v1590 = vpop.permute.xlu0 %1589
      %1591 = vrot.lane.b32.xlu0 %v372, 96
      %v1592 = vpop.permute.xlu0 %1591
      %1593 = vrot.lane.b32.xlu0 %v373, 96
      %v1594 = vpop.permute.xlu0 %1593
      %1595 = vrot.lane.b32.xlu0 %v374, 96
      %v1596 = vpop.permute.xlu0 %1595
      %1597 = vrot.lane.b32.xlu0 %v954, 96
      %v1598 = vpop.permute.xlu0 %1597
      %1599 = vrot.lane.b32.xlu0 %v1565, 96
      %v1600 = vpop.permute.xlu0 %1599
      %1601 = vrot.lane.b32.xlu0 %v1564, 96
      %v1602 = vpop.permute.xlu0 %1601
      %vm1603 = vcmask 785408
      %v1604 = vsel %vm1603, %v1576, %v1578
      %v1605 = vsel %vm1603, %v1578, %v1580
      %v1606 = vsel %vm1603, %v1580, %v1582
      %v1607 = vsel %vm1603, %v1582, %v1584
      %v1608 = vsel %vm1603, %v1584, %v1586
      %v1609 = vsel %vm1603, %v1586, %v1588
      %v1610 = vsel %vm1603, %v1590, %v1592
      %v1611 = vsel %vm1603, %v1592, %v1594
      %v1612 = vsel %vm1603, %v1594, %v1596
      %v1613 = vsel %vm1603, %v1596, %v1598
      %v1614 = vsel %vm1603, %v1598, %v1600
      %v1615 = vsel %vm1603, %v1600, %v1602
      %v1623 = vsel %vm460, %v1572, 0
      %v1626 = vsel %vm375, %v1610, 0
      %v1629 = vsel %vm375, %v1611, 0
      %v1632 = vsel %vm375, %v1612, 0
      %v1635 = vsel %vm375, %v1613, 0
      %v1638 = vsel %vm375, %v1614, 0
      %v1641 = vsel %vm375, %v1615, 0
      %1643 = vmatprep.subr.bf16.mxu0 0
      %1644 = vmatpush1.bf16.msra.mxu0 0
      %1645 = vmatprep.subr.bf16.mxu0 0
      %1646 = vmatpush1.bf16.msra.mxu0 0
      %1647 = vmatprep.subr.bf16.mxu0 0
      %1648 = vmatpush1.bf16.msra.mxu0 0
      %1649 = vmatprep.subr.bf16.mxu0 0
      %1650 = vmatpush1.bf16.msra.mxu0 0
      %1651 = vmatprep.subr.bf16.mxu0 0
      %1652 = vmatpush1.bf16.msra.mxu0 0
      %1653 = vmatprep.subr.bf16.mxu0 0
      %1654 = vmatpush1.bf16.msra.mxu0 0
      %1655 = vmatprep.subr.bf16.mxu0 %v1629
      %1656 = vmatpush1.bf16.msra.mxu0 %v1626
      %1657 = vmatprep.subr.bf16.mxu0 %v1605
      %1658 = vmatpush1.bf16.msra.mxu0 %v1604
      %1659 = vmatprep.subr.bf16.mxu0 0
      %1660 = vmatpush2.bf16.msra.mxu0 0
      %1661 = vmatprep.subr.bf16.mxu0 0
      %1662 = vmatpush2.bf16.msra.mxu0 0
      %1663 = vmatprep.subr.bf16.mxu0 0
      %1664 = vmatpush2.bf16.msra.mxu0 0
      %1665 = vmatprep.subr.bf16.mxu0 0
      %1666 = vmatpush2.bf16.msra.mxu0 0
      %1667 = vmatprep.subr.bf16.mxu0 0
      %1668 = vmatpush2.bf16.msra.mxu0 0
      %1669 = vmatprep.subr.bf16.mxu0 0
      %1670 = vmatpush2.bf16.msra.mxu0 0
      %1671 = vmatprep.subr.bf16.mxu0 0
      %1672 = vmatpush2.bf16.msra.mxu0 0
      %1673 = vmatprep.subr.bf16.mxu0 0
      %1674 = vmatpush2.bf16.msra.mxu0 0
      %1675 = vmatprep.mubr.bf16.mxu0 0
      %1676 = vmatmul.mubr.bf16.gmra.mxu0 %v1623
      %v1677 = vpop.f32.mrf.mxu0
      %v1678 = vadd.f32 0.0, %v1677
      %v1679 = vpop.f32.mrf.mxu0
      %v1680 = vadd.f32 0.0, %v1679
      %v1681 = vpop.f32.mrf.mxu0
      %v1682 = vpop.f32.mrf.mxu0
      %1683 = vdwg.mxu0
      %1684 = vmatprep.subr.bf16.mxu0 0
      %1685 = vmatpush1.bf16.msra.mxu0 0
      %1686 = vmatprep.subr.bf16.mxu0 0
      %1687 = vmatpush1.bf16.msra.mxu0 0
      %1688 = vmatprep.subr.bf16.mxu0 0
      %1689 = vmatpush1.bf16.msra.mxu0 0
      %1690 = vmatprep.subr.bf16.mxu0 0
      %1691 = vmatpush1.bf16.msra.mxu0 0
      %1692 = vmatprep.subr.bf16.mxu0 0
      %1693 = vmatpush1.bf16.msra.mxu0 0
      %1694 = vmatprep.subr.bf16.mxu0 0
      %1695 = vmatpush1.bf16.msra.mxu0 0
      %1696 = vmatprep.subr.bf16.mxu0 %v1635
      %1697 = vmatpush1.bf16.msra.mxu0 %v1632
      %1698 = vmatprep.subr.bf16.mxu0 %v1607
      %1699 = vmatpush1.bf16.msra.mxu0 %v1606
      %1700 = vmatprep.subr.bf16.mxu0 0
      %1701 = vmatpush2.bf16.msra.mxu0 0
      %1702 = vmatprep.subr.bf16.mxu0 0
      %1703 = vmatpush2.bf16.msra.mxu0 0
      %1704 = vmatprep.subr.bf16.mxu0 0
      %1705 = vmatpush2.bf16.msra.mxu0 0
      %1706 = vmatprep.subr.bf16.mxu0 0
      %1707 = vmatpush2.bf16.msra.mxu0 0
      %1708 = vmatprep.subr.bf16.mxu0 0
      %1709 = vmatpush2.bf16.msra.mxu0 0
      %1710 = vmatprep.subr.bf16.mxu0 0
      %1711 = vmatpush2.bf16.msra.mxu0 0
      %1712 = vmatprep.subr.bf16.mxu0 0
      %1713 = vmatpush2.bf16.msra.mxu0 0
      %1714 = vmatprep.subr.bf16.mxu0 0
      %1715 = vmatpush2.bf16.msra.mxu0 0
      %1716 = vmatprep.mubr.bf16.mxu0 0
      %1717 = vmatmul.mubr.bf16.gmra.mxu0 %v1623
      %v1718 = vpop.f32.mrf.mxu0
      %v1719 = vadd.f32 0.0, %v1718
      %v1720 = vpop.f32.mrf.mxu0
      %v1721 = vadd.f32 0.0, %v1720
      %v1722 = vpop.f32.mrf.mxu0
      %v1723 = vpop.f32.mrf.mxu0
      %1724 = vdwg.mxu0
      %1725 = vmatprep.subr.bf16.mxu0 0
      %1726 = vmatpush1.bf16.msra.mxu0 0
      %1727 = vmatprep.subr.bf16.mxu0 0
      %1728 = vmatpush1.bf16.msra.mxu0 0
      %1729 = vmatprep.subr.bf16.mxu0 0
      %1730 = vmatpush1.bf16.msra.mxu0 0
      %1731 = vmatprep.subr.bf16.mxu0 0
      %1732 = vmatpush1.bf16.msra.mxu0 0
      %1733 = vmatprep.subr.bf16.mxu0 0
      %1734 = vmatpush1.bf16.msra.mxu0 0
      %1735 = vmatprep.subr.bf16.mxu0 0
      %1736 = vmatpush1.bf16.msra.mxu0 0
      %1737 = vmatprep.subr.bf16.mxu0 %v1641
      %1738 = vmatpush1.bf16.msra.mxu0 %v1638
      %1739 = vmatprep.subr.bf16.mxu0 %v1609
      %1740 = vmatpush1.bf16.msra.mxu0 %v1608
      %1741 = vmatprep.subr.bf16.mxu0 0
      %1742 = vmatpush2.bf16.msra.mxu0 0
      %1743 = vmatprep.subr.bf16.mxu0 0
      %1744 = vmatpush2.bf16.msra.mxu0 0
      %1745 = vmatprep.subr.bf16.mxu0 0
      %1746 = vmatpush2.bf16.msra.mxu0 0
      %1747 = vmatprep.subr.bf16.mxu0 0
      %1748 = vmatpush2.bf16.msra.mxu0 0
      %1749 = vmatprep.subr.bf16.mxu0 0
      %1750 = vmatpush2.bf16.msra.mxu0 0
      %1751 = vmatprep.subr.bf16.mxu0 0
      %1752 = vmatpush2.bf16.msra.mxu0 0
      %1753 = vmatprep.subr.bf16.mxu0 0
      %1754 = vmatpush2.bf16.msra.mxu0 0
      %1755 = vmatprep.subr.bf16.mxu0 0
      %1756 = vmatpush2.bf16.msra.mxu0 0
      %1757 = vmatprep.mubr.bf16.mxu0 0
      %1758 = vmatmul.mubr.bf16.gmra.mxu0 %v1623
      %v1759 = vpop.f32.mrf.mxu0
      %v1760 = vadd.f32 0.0, %v1759
      %v1761 = vpop.f32.mrf.mxu0
      %v1762 = vadd.f32 0.0, %v1761
      %v1763 = vpop.f32.mrf.mxu0
      %v1764 = vpop.f32.mrf.mxu0
      %1765 = vdwg.mxu0
      %v1766 = vadd.f32 %v1553, %v1678
      %v1767 = vadd.f32 %v1554, %v1680
      %v1768 = vadd.f32 %v1555, %v1719
      %v1769 = vadd.f32 %v1556, %v1721
      %v1770 = vadd.f32 %v1557, %v1760
      %v1771 = vadd.f32 %v1558, %v1762
      %s1772 = scalar_lea.vmem %s2, 28
      %v1773 = vld [vmem:[%s1772] sm:$0xf]
      %1774 = vrot.lane.b32.xlu0 %v386, 84
      %v1775 = vpop.permute.xlu0 %1774
      %1776 = vrot.lane.b32.xlu0 %v390, 84
      %v1777 = vpop.permute.xlu0 %1776
      %1778 = vrot.lane.b32.xlu0 %v394, 84
      %v1779 = vpop.permute.xlu0 %1778
      %1780 = vrot.lane.b32.xlu0 %v398, 84
      %v1781 = vpop.permute.xlu0 %1780
      %1782 = vrot.lane.b32.xlu0 %v956, 84
      %v1783 = vpop.permute.xlu0 %1782
      %1784 = vrot.lane.b32.xlu0 %v1567, 84
      %v1785 = vpop.permute.xlu0 %1784
      %1786 = vrot.lane.b32.xlu0 %v1570, 84
      %v1787 = vpop.permute.xlu0 %1786
      %1788 = vrot.lane.b32.xlu0 %v371, 84
      %v1789 = vpop.permute.xlu0 %1788
      %1790 = vrot.lane.b32.xlu0 %v372, 84
      %v1791 = vpop.permute.xlu0 %1790
      %1792 = vrot.lane.b32.xlu0 %v373, 84
      %v1793 = vpop.permute.xlu0 %1792
      %1794 = vrot.lane.b32.xlu0 %v374, 84
      %v1795 = vpop.permute.xlu0 %1794
      %1796 = vrot.lane.b32.xlu0 %v954, 84
      %v1797 = vpop.permute.xlu0 %1796
      %1798 = vrot.lane.b32.xlu0 %v1565, 84
      %v1799 = vpop.permute.xlu0 %1798
      %1800 = vrot.lane.b32.xlu0 %v1564, 84
      %v1801 = vpop.permute.xlu0 %1800
      %vm1802 = vcmask 687104
      %v1803 = vsel %vm1802, %v1775, %v1777
      %v1804 = vsel %vm1802, %v1777, %v1779
      %v1805 = vsel %vm1802, %v1779, %v1781
      %v1806 = vsel %vm1802, %v1781, %v1783
      %v1807 = vsel %vm1802, %v1783, %v1785
      %v1808 = vsel %vm1802, %v1785, %v1787
      %v1809 = vsel %vm1802, %v1789, %v1791
      %v1810 = vsel %vm1802, %v1791, %v1793
      %v1811 = vsel %vm1802, %v1793, %v1795
      %v1812 = vsel %vm1802, %v1795, %v1797
      %v1813 = vsel %vm1802, %v1797, %v1799
      %v1814 = vsel %vm1802, %v1799, %v1801
      %v1822 = vsel %vm460, %v1773, 0
      %v1825 = vsel %vm375, %v1809, 0
      %v1828 = vsel %vm375, %v1810, 0
      %v1831 = vsel %vm375, %v1811, 0
      %v1834 = vsel %vm375, %v1812, 0
      %v1837 = vsel %vm375, %v1813, 0
      %v1840 = vsel %vm375, %v1814, 0
      %1842 = vmatprep.subr.bf16.mxu0 0
      %1843 = vmatpush1.bf16.msra.mxu0 0
      %1844 = vmatprep.subr.bf16.mxu0 0
      %1845 = vmatpush1.bf16.msra.mxu0 0
      %1846 = vmatprep.subr.bf16.mxu0 0
      %1847 = vmatpush1.bf16.msra.mxu0 0
      %1848 = vmatprep.subr.bf16.mxu0 0
      %1849 = vmatpush1.bf16.msra.mxu0 0
      %1850 = vmatprep.subr.bf16.mxu0 0
      %1851 = vmatpush1.bf16.msra.mxu0 0
      %1852 = vmatprep.subr.bf16.mxu0 0
      %1853 = vmatpush1.bf16.msra.mxu0 0
      %1854 = vmatprep.subr.bf16.mxu0 %v1828
      %1855 = vmatpush1.bf16.msra.mxu0 %v1825
      %1856 = vmatprep.subr.bf16.mxu0 %v1804
      %1857 = vmatpush1.bf16.msra.mxu0 %v1803
      %1858 = vmatprep.subr.bf16.mxu0 0
      %1859 = vmatpush2.bf16.msra.mxu0 0
      %1860 = vmatprep.subr.bf16.mxu0 0
      %1861 = vmatpush2.bf16.msra.mxu0 0
      %1862 = vmatprep.subr.bf16.mxu0 0
      %1863 = vmatpush2.bf16.msra.mxu0 0
      %1864 = vmatprep.subr.bf16.mxu0 0
      %1865 = vmatpush2.bf16.msra.mxu0 0
      %1866 = vmatprep.subr.bf16.mxu0 0
      %1867 = vmatpush2.bf16.msra.mxu0 0
      %1868 = vmatprep.subr.bf16.mxu0 0
      %1869 = vmatpush2.bf16.msra.mxu0 0
      %1870 = vmatprep.subr.bf16.mxu0 0
      %1871 = vmatpush2.bf16.msra.mxu0 0
      %1872 = vmatprep.subr.bf16.mxu0 0
      %1873 = vmatpush2.bf16.msra.mxu0 0
      %1874 = vmatprep.mubr.bf16.mxu0 0
      %1875 = vmatmul.mubr.bf16.gmra.mxu0 %v1822
      %v1876 = vpop.f32.mrf.mxu0
      %v1877 = vadd.f32 0.0, %v1876
      %v1878 = vpop.f32.mrf.mxu0
      %v1879 = vadd.f32 0.0, %v1878
      %v1880 = vpop.f32.mrf.mxu0
      %v1881 = vpop.f32.mrf.mxu0
      %1882 = vdwg.mxu0
      %1883 = vmatprep.subr.bf16.mxu0 0
      %1884 = vmatpush1.bf16.msra.mxu0 0
      %1885 = vmatprep.subr.bf16.mxu0 0
      %1886 = vmatpush1.bf16.msra.mxu0 0
      %1887 = vmatprep.subr.bf16.mxu0 0
      %1888 = vmatpush1.bf16.msra.mxu0 0
      %1889 = vmatprep.subr.bf16.mxu0 0
      %1890 = vmatpush1.bf16.msra.mxu0 0
      %1891 = vmatprep.subr.bf16.mxu0 0
      %1892 = vmatpush1.bf16.msra.mxu0 0
      %1893 = vmatprep.subr.bf16.mxu0 0
      %1894 = vmatpush1.bf16.msra.mxu0 0
      %1895 = vmatprep.subr.bf16.mxu0 %v1834
      %1896 = vmatpush1.bf16.msra.mxu0 %v1831
      %1897 = vmatprep.subr.bf16.mxu0 %v1806
      %1898 = vmatpush1.bf16.msra.mxu0 %v1805
      %1899 = vmatprep.subr.bf16.mxu0 0
      %1900 = vmatpush2.bf16.msra.mxu0 0
      %1901 = vmatprep.subr.bf16.mxu0 0
      %1902 = vmatpush2.bf16.msra.mxu0 0
      %1903 = vmatprep.subr.bf16.mxu0 0
      %1904 = vmatpush2.bf16.msra.mxu0 0
      %1905 = vmatprep.subr.bf16.mxu0 0
      %1906 = vmatpush2.bf16.msra.mxu0 0
      %1907 = vmatprep.subr.bf16.mxu0 0
      %1908 = vmatpush2.bf16.msra.mxu0 0
      %1909 = vmatprep.subr.bf16.mxu0 0
      %1910 = vmatpush2.bf16.msra.mxu0 0
      %1911 = vmatprep.subr.bf16.mxu0 0
      %1912 = vmatpush2.bf16.msra.mxu0 0
      %1913 = vmatprep.subr.bf16.mxu0 0
      %1914 = vmatpush2.bf16.msra.mxu0 0
      %1915 = vmatprep.mubr.bf16.mxu0 0
      %1916 = vmatmul.mubr.bf16.gmra.mxu0 %v1822
      %v1917 = vpop.f32.mrf.mxu0
      %v1918 = vadd.f32 0.0, %v1917
      %v1919 = vpop.f32.mrf.mxu0
      %v1920 = vadd.f32 0.0, %v1919
      %v1921 = vpop.f32.mrf.mxu0
      %v1922 = vpop.f32.mrf.mxu0
      %1923 = vdwg.mxu0
      %1924 = vmatprep.subr.bf16.mxu0 0
      %1925 = vmatpush1.bf16.msra.mxu0 0
      %1926 = vmatprep.subr.bf16.mxu0 0
      %1927 = vmatpush1.bf16.msra.mxu0 0
      %1928 = vmatprep.subr.bf16.mxu0 0
      %1929 = vmatpush1.bf16.msra.mxu0 0
      %1930 = vmatprep.subr.bf16.mxu0 0
      %1931 = vmatpush1.bf16.msra.mxu0 0
      %1932 = vmatprep.subr.bf16.mxu0 0
      %1933 = vmatpush1.bf16.msra.mxu0 0
      %1934 = vmatprep.subr.bf16.mxu0 0
      %1935 = vmatpush1.bf16.msra.mxu0 0
      %1936 = vmatprep.subr.bf16.mxu0 %v1840
      %1937 = vmatpush1.bf16.msra.mxu0 %v1837
      %1938 = vmatprep.subr.bf16.mxu0 %v1808
      %1939 = vmatpush1.bf16.msra.mxu0 %v1807
      %1940 = vmatprep.subr.bf16.mxu0 0
      %1941 = vmatpush2.bf16.msra.mxu0 0
      %1942 = vmatprep.subr.bf16.mxu0 0
      %1943 = vmatpush2.bf16.msra.mxu0 0
      %1944 = vmatprep.subr.bf16.mxu0 0
      %1945 = vmatpush2.bf16.msra.mxu0 0
      %1946 = vmatprep.subr.bf16.mxu0 0
      %1947 = vmatpush2.bf16.msra.mxu0 0
      %1948 = vmatprep.subr.bf16.mxu0 0
      %1949 = vmatpush2.bf16.msra.mxu0 0
      %1950 = vmatprep.subr.bf16.mxu0 0
      %1951 = vmatpush2.bf16.msra.mxu0 0
      %1952 = vmatprep.subr.bf16.mxu0 0
      %1953 = vmatpush2.bf16.msra.mxu0 0
      %1954 = vmatprep.subr.bf16.mxu0 0
      %1955 = vmatpush2.bf16.msra.mxu0 0
      %1956 = vmatprep.mubr.bf16.mxu0 0
      %1957 = vmatmul.mubr.bf16.gmra.mxu0 %v1822
      %v1958 = vpop.f32.mrf.mxu0
      %v1959 = vadd.f32 0.0, %v1958
      %v1960 = vpop.f32.mrf.mxu0
      %v1961 = vadd.f32 0.0, %v1960
      %v1962 = vpop.f32.mrf.mxu0
      %v1963 = vpop.f32.mrf.mxu0
      %1964 = vdwg.mxu0
      %v1965 = vadd.f32 %v1766, %v1877
      %v1966 = vadd.f32 %v1767, %v1879
      %v1967 = vadd.f32 %v1768, %v1918
      %v1968 = vadd.f32 %v1769, %v1920
      %v1969 = vadd.f32 %v1770, %v1959
      %v1970 = vadd.f32 %v1771, %v1961
      %s1971 = scalar_lea.vmem %s2, 32
      %v1972 = vld [vmem:[%s1971] sm:$0xf]
      %1973 = vrot.lane.b32.xlu0 %v386, 72
      %v1974 = vpop.permute.xlu0 %1973
      %1975 = vrot.lane.b32.xlu0 %v390, 72
      %v1976 = vpop.permute.xlu0 %1975
      %1977 = vrot.lane.b32.xlu0 %v394, 72
      %v1978 = vpop.permute.xlu0 %1977
      %1979 = vrot.lane.b32.xlu0 %v398, 72
      %v1980 = vpop.permute.xlu0 %1979
      %1981 = vrot.lane.b32.xlu0 %v956, 72
      %v1982 = vpop.permute.xlu0 %1981
      %1983 = vrot.lane.b32.xlu0 %v1567, 72
      %v1984 = vpop.permute.xlu0 %1983
      %1985 = vrot.lane.b32.xlu0 %v1570, 72
      %v1986 = vpop.permute.xlu0 %1985
      %1987 = vrot.lane.b32.xlu0 %v371, 72
      %v1988 = vpop.permute.xlu0 %1987
      %1989 = vrot.lane.b32.xlu0 %v372, 72
      %v1990 = vpop.permute.xlu0 %1989
      %1991 = vrot.lane.b32.xlu0 %v373, 72
      %v1992 = vpop.permute.xlu0 %1991
      %1993 = vrot.lane.b32.xlu0 %v374, 72
      %v1994 = vpop.permute.xlu0 %1993
      %1995 = vrot.lane.b32.xlu0 %v954, 72
      %v1996 = vpop.permute.xlu0 %1995
      %1997 = vrot.lane.b32.xlu0 %v1565, 72
      %v1998 = vpop.permute.xlu0 %1997
      %1999 = vrot.lane.b32.xlu0 %v1564, 72
      %v2000 = vpop.permute.xlu0 %1999
      %vm2001 = vcmask 588800
      %v2002 = vsel %vm2001, %v1974, %v1976
      %v2003 = vsel %vm2001, %v1976, %v1978
      %v2004 = vsel %vm2001, %v1978, %v1980
      %v2005 = vsel %vm2001, %v1980, %v1982
      %v2006 = vsel %vm2001, %v1982, %v1984
      %v2007 = vsel %vm2001, %v1984, %v1986
      %v2008 = vsel %vm2001, %v1988, %v1990
      %v2009 = vsel %vm2001, %v1990, %v1992
      %v2010 = vsel %vm2001, %v1992, %v1994
      %v2011 = vsel %vm2001, %v1994, %v1996
      %v2012 = vsel %vm2001, %v1996, %v1998
      %v2013 = vsel %vm2001, %v1998, %v2000
      %v2021 = vsel %vm460, %v1972, 0
      %v2024 = vsel %vm375, %v2008, 0
      %v2027 = vsel %vm375, %v2009, 0
      %v2030 = vsel %vm375, %v2010, 0
      %v2033 = vsel %vm375, %v2011, 0
      %v2036 = vsel %vm375, %v2012, 0
      %v2039 = vsel %vm375, %v2013, 0
      %2041 = vmatprep.subr.bf16.mxu0 0
      %2042 = vmatpush1.bf16.msra.mxu0 0
      %2043 = vmatprep.subr.bf16.mxu0 0
      %2044 = vmatpush1.bf16.msra.mxu0 0
      %2045 = vmatprep.subr.bf16.mxu0 0
      %2046 = vmatpush1.bf16.msra.mxu0 0
      %2047 = vmatprep.subr.bf16.mxu0 0
      %2048 = vmatpush1.bf16.msra.mxu0 0
      %2049 = vmatprep.subr.bf16.mxu0 0
      %2050 = vmatpush1.bf16.msra.mxu0 0
      %2051 = vmatprep.subr.bf16.mxu0 0
      %2052 = vmatpush1.bf16.msra.mxu0 0
      %2053 = vmatprep.subr.bf16.mxu0 %v2027
      %2054 = vmatpush1.bf16.msra.mxu0 %v2024
      %2055 = vmatprep.subr.bf16.mxu0 %v2003
      %2056 = vmatpush1.bf16.msra.mxu0 %v2002
      %2057 = vmatprep.subr.bf16.mxu0 0
      %2058 = vmatpush2.bf16.msra.mxu0 0
      %2059 = vmatprep.subr.bf16.mxu0 0
      %2060 = vmatpush2.bf16.msra.mxu0 0
      %2061 = vmatprep.subr.bf16.mxu0 0
      %2062 = vmatpush2.bf16.msra.mxu0 0
      %2063 = vmatprep.subr.bf16.mxu0 0
      %2064 = vmatpush2.bf16.msra.mxu0 0
      %2065 = vmatprep.subr.bf16.mxu0 0
      %2066 = vmatpush2.bf16.msra.mxu0 0
      %2067 = vmatprep.subr.bf16.mxu0 0
      %2068 = vmatpush2.bf16.msra.mxu0 0
      %2069 = vmatprep.subr.bf16.mxu0 0
      %2070 = vmatpush2.bf16.msra.mxu0 0
      %2071 = vmatprep.subr.bf16.mxu0 0
      %2072 = vmatpush2.bf16.msra.mxu0 0
      %2073 = vmatprep.mubr.bf16.mxu0 0
      %2074 = vmatmul.mubr.bf16.gmra.mxu0 %v2021
      %v2075 = vpop.f32.mrf.mxu0
      %v2076 = vadd.f32 0.0, %v2075
      %v2077 = vpop.f32.mrf.mxu0
      %v2078 = vadd.f32 0.0, %v2077
      %v2079 = vpop.f32.mrf.mxu0
      %v2080 = vpop.f32.mrf.mxu0
      %2081 = vdwg.mxu0
      %2082 = vmatprep.subr.bf16.mxu0 0
      %2083 = vmatpush1.bf16.msra.mxu0 0
      %2084 = vmatprep.subr.bf16.mxu0 0
      %2085 = vmatpush1.bf16.msra.mxu0 0
      %2086 = vmatprep.subr.bf16.mxu0 0
      %2087 = vmatpush1.bf16.msra.mxu0 0
      %2088 = vmatprep.subr.bf16.mxu0 0
      %2089 = vmatpush1.bf16.msra.mxu0 0
      %2090 = vmatprep.subr.bf16.mxu0 0
      %2091 = vmatpush1.bf16.msra.mxu0 0
      %2092 = vmatprep.subr.bf16.mxu0 0
      %2093 = vmatpush1.bf16.msra.mxu0 0
      %2094 = vmatprep.subr.bf16.mxu0 %v2033
      %2095 = vmatpush1.bf16.msra.mxu0 %v2030
      %2096 = vmatprep.subr.bf16.mxu0 %v2005
      %2097 = vmatpush1.bf16.msra.mxu0 %v2004
      %2098 = vmatprep.subr.bf16.mxu0 0
      %2099 = vmatpush2.bf16.msra.mxu0 0
      %2100 = vmatprep.subr.bf16.mxu0 0
      %2101 = vmatpush2.bf16.msra.mxu0 0
      %2102 = vmatprep.subr.bf16.mxu0 0
      %2103 = vmatpush2.bf16.msra.mxu0 0
      %2104 = vmatprep.subr.bf16.mxu0 0
      %2105 = vmatpush2.bf16.msra.mxu0 0
      %2106 = vmatprep.subr.bf16.mxu0 0
      %2107 = vmatpush2.bf16.msra.mxu0 0
      %2108 = vmatprep.subr.bf16.mxu0 0
      %2109 = vmatpush2.bf16.msra.mxu0 0
      %2110 = vmatprep.subr.bf16.mxu0 0
      %2111 = vmatpush2.bf16.msra.mxu0 0
      %2112 = vmatprep.subr.bf16.mxu0 0
      %2113 = vmatpush2.bf16.msra.mxu0 0
      %2114 = vmatprep.mubr.bf16.mxu0 0
      %2115 = vmatmul.mubr.bf16.gmra.mxu0 %v2021
      %v2116 = vpop.f32.mrf.mxu0
      %v2117 = vadd.f32 0.0, %v2116
      %v2118 = vpop.f32.mrf.mxu0
      %v2119 = vadd.f32 0.0, %v2118
      %v2120 = vpop.f32.mrf.mxu0
      %v2121 = vpop.f32.mrf.mxu0
      %2122 = vdwg.mxu0
      %2123 = vmatprep.subr.bf16.mxu0 0
      %2124 = vmatpush1.bf16.msra.mxu0 0
      %2125 = vmatprep.subr.bf16.mxu0 0
      %2126 = vmatpush1.bf16.msra.mxu0 0
      %2127 = vmatprep.subr.bf16.mxu0 0
      %2128 = vmatpush1.bf16.msra.mxu0 0
      %2129 = vmatprep.subr.bf16.mxu0 0
      %2130 = vmatpush1.bf16.msra.mxu0 0
      %2131 = vmatprep.subr.bf16.mxu0 0
      %2132 = vmatpush1.bf16.msra.mxu0 0
      %2133 = vmatprep.subr.bf16.mxu0 0
      %2134 = vmatpush1.bf16.msra.mxu0 0
      %2135 = vmatprep.subr.bf16.mxu0 %v2039
      %2136 = vmatpush1.bf16.msra.mxu0 %v2036
      %2137 = vmatprep.subr.bf16.mxu0 %v2007
      %2138 = vmatpush1.bf16.msra.mxu0 %v2006
      %2139 = vmatprep.subr.bf16.mxu0 0
      %2140 = vmatpush2.bf16.msra.mxu0 0
      %2141 = vmatprep.subr.bf16.mxu0 0
      %2142 = vmatpush2.bf16.msra.mxu0 0
      %2143 = vmatprep.subr.bf16.mxu0 0
      %2144 = vmatpush2.bf16.msra.mxu0 0
      %2145 = vmatprep.subr.bf16.mxu0 0
      %2146 = vmatpush2.bf16.msra.mxu0 0
      %2147 = vmatprep.subr.bf16.mxu0 0
      %2148 = vmatpush2.bf16.msra.mxu0 0
      %2149 = vmatprep.subr.bf16.mxu0 0
      %2150 = vmatpush2.bf16.msra.mxu0 0
      %2151 = vmatprep.subr.bf16.mxu0 0
      %2152 = vmatpush2.bf16.msra.mxu0 0
      %2153 = vmatprep.subr.bf16.mxu0 0
      %2154 = vmatpush2.bf16.msra.mxu0 0
      %2155 = vmatprep.mubr.bf16.mxu0 0
      %2156 = vmatmul.mubr.bf16.gmra.mxu0 %v2021
      %v2157 = vpop.f32.mrf.mxu0
      %v2158 = vadd.f32 0.0, %v2157
      %v2159 = vpop.f32.mrf.mxu0
      %v2160 = vadd.f32 0.0, %v2159
      %v2161 = vpop.f32.mrf.mxu0
      %v2162 = vpop.f32.mrf.mxu0
      %2163 = vdwg.mxu0
      %v2164 = vadd.f32 %v1965, %v2076
      %v2165 = vadd.f32 %v1966, %v2078
      %v2166 = vadd.f32 %v1967, %v2117
      %v2167 = vadd.f32 %v1968, %v2119
      %v2168 = vadd.f32 %v1969, %v2158
      %v2169 = vadd.f32 %v1970, %v2160
      %v2170 = vld [vmem:[%s3] sm:$0xff]
      %2172 = vset.pattern.permute.xlu0 0
      %2173 = vperm.xlu0 %2172, %v2170
      %v2174 = vpop.permute.xlu0 %2173
      %v2176 = vadd.f32 %v2164, %v2174
      %v2177 = vadd.f32 %v2165, %v2174
      %v2178 = vadd.f32 %v2166, %v2174
      %v2179 = vadd.f32 %v2167, %v2174
      %v2180 = vadd.f32 %v2168, %v2174
      %v2181 = vadd.f32 %v2169, %v2174
      %v2182 = vrot.slane %v2176, 4
      %v2183 = vadd.f32 %v2176, %v2182
      %v2184 = vrot.slane %v2183, 2
      %v2185 = vadd.f32 %v2183, %v2184
      %v2186 = vrot.slane %v2185, 1
      %v2187 = vadd.f32 %v2185, %v2186
      %v2188 = vrot.slane %v2177, 4
      %v2189 = vadd.f32 %v2177, %v2188
      %v2190 = vrot.slane %v2189, 2
      %v2191 = vadd.f32 %v2189, %v2190
      %v2192 = vrot.slane %v2191, 1
      %v2193 = vadd.f32 %v2191, %v2192
      %v2194 = vrot.slane %v2178, 4
      %v2195 = vadd.f32 %v2178, %v2194
      %v2196 = vrot.slane %v2195, 2
      %v2197 = vadd.f32 %v2195, %v2196
      %v2198 = vrot.slane %v2197, 1
      %v2199 = vadd.f32 %v2197, %v2198
      %v2200 = vrot.slane %v2179, 4
      %v2201 = vadd.f32 %v2179, %v2200
      %v2202 = vrot.slane %v2201, 2
      %v2203 = vadd.f32 %v2201, %v2202
      %v2204 = vrot.slane %v2203, 1
      %v2205 = vadd.f32 %v2203, %v2204
      %v2206 = vrot.slane %v2180, 4
      %v2207 = vadd.f32 %v2180, %v2206
      %v2208 = vrot.slane %v2207, 2
      %v2209 = vadd.f32 %v2207, %v2208
      %v2210 = vrot.slane %v2209, 1
      %v2211 = vadd.f32 %v2209, %v2210
      %v2212 = vrot.slane %v2181, 4
      %v2213 = vadd.f32 %v2181, %v2212
      %v2214 = vrot.slane %v2213, 2
      %v2215 = vadd.f32 %v2213, %v2214
      %v2216 = vrot.slane %v2215, 1
      %v2217 = vadd.f32 %v2215, %v2216
      %v2218 = vrcp.pop 8.0
      %v2219 = vmul.f32 %v2187, %v2218
      %v2220 = vmul.f32 %v2193, %v2218
      %v2221 = vmul.f32 %v2199, %v2218
      %v2222 = vmul.f32 %v2205, %v2218
      %v2223 = vmul.f32 %v2211, %v2218
      %v2224 = vmul.f32 %v2217, %v2218
      %v2225 = vsub.f32 %v2176, %v2219
      %v2226 = vsub.f32 %v2177, %v2220
      %v2227 = vsub.f32 %v2178, %v2221
      %v2228 = vsub.f32 %v2179, %v2222
      %v2229 = vsub.f32 %v2180, %v2223
      %v2230 = vsub.f32 %v2181, %v2224
      %v2231 = vmul.f32 %v2225, %v2225
      %v2232 = vmul.f32 %v2226, %v2226
      %v2233 = vmul.f32 %v2227, %v2227
      %v2234 = vmul.f32 %v2228, %v2228
      %v2235 = vmul.f32 %v2229, %v2229
      %v2236 = vmul.f32 %v2230, %v2230
      %v2237 = vrot.slane %v2231, 4
      %v2238 = vadd.f32 %v2231, %v2237
      %v2239 = vrot.slane %v2238, 2
      %v2240 = vadd.f32 %v2238, %v2239
      %v2241 = vrot.slane %v2240, 1
      %v2242 = vadd.f32 %v2240, %v2241
      %v2243 = vrot.slane %v2232, 4
      %v2244 = vadd.f32 %v2232, %v2243
      %v2245 = vrot.slane %v2244, 2
      %v2246 = vadd.f32 %v2244, %v2245
      %v2247 = vrot.slane %v2246, 1
      %v2248 = vadd.f32 %v2246, %v2247
      %v2249 = vrot.slane %v2233, 4
      %v2250 = vadd.f32 %v2233, %v2249
      %v2251 = vrot.slane %v2250, 2
      %v2252 = vadd.f32 %v2250, %v2251
      %v2253 = vrot.slane %v2252, 1
      %v2254 = vadd.f32 %v2252, %v2253
      %v2255 = vrot.slane %v2234, 4
      %v2256 = vadd.f32 %v2234, %v2255
      %v2257 = vrot.slane %v2256, 2
      %v2258 = vadd.f32 %v2256, %v2257
      %v2259 = vrot.slane %v2258, 1
      %v2260 = vadd.f32 %v2258, %v2259
      %v2261 = vrot.slane %v2235, 4
      %v2262 = vadd.f32 %v2235, %v2261
      %v2263 = vrot.slane %v2262, 2
      %v2264 = vadd.f32 %v2262, %v2263
      %v2265 = vrot.slane %v2264, 1
      %v2266 = vadd.f32 %v2264, %v2265
      %v2267 = vrot.slane %v2236, 4
      %v2268 = vadd.f32 %v2236, %v2267
      %v2269 = vrot.slane %v2268, 2
      %v2270 = vadd.f32 %v2268, %v2269
      %v2271 = vrot.slane %v2270, 1
      %v2272 = vadd.f32 %v2270, %v2271
      %v2273 = vmul.f32 %v2242, %v2218
      %v2274 = vmul.f32 %v2248, %v2218
      %v2275 = vmul.f32 %v2254, %v2218
      %v2276 = vmul.f32 %v2260, %v2218
      %v2277 = vmul.f32 %v2266, %v2218
      %v2278 = vmul.f32 %v2272, %v2218
      %v2279 = vadd.f32 %v2273, 1e-05
      %v2280 = vadd.f32 %v2274, 1e-05
      %v2281 = vadd.f32 %v2275, 1e-05
      %v2282 = vadd.f32 %v2276, 1e-05
      %v2283 = vadd.f32 %v2277, 1e-05
      %v2284 = vadd.f32 %v2278, 1e-05
      %v2285 = vrsqrt.pop %v2279
      %v2286 = vrsqrt.pop %v2280
      %v2287 = vrsqrt.pop %v2281
      %v2288 = vrsqrt.pop %v2282
      %v2289 = vrsqrt.pop %v2283
      %v2290 = vrsqrt.pop %v2284
      %v2291 = vmul.f32 %v2225, %v2285
      %v2292 = vmul.f32 %v2226, %v2286
      %v2293 = vmul.f32 %v2227, %v2287
      %v2294 = vmul.f32 %v2228, %v2288
      %v2295 = vmul.f32 %v2229, %v2289
      %v2296 = vmul.f32 %v2230, %v2290
      %2297 = vset.pattern.permute.xlu0 1
      %2298 = vperm.xlu0 %2297, %v2170
      %v2299 = vpop.permute.xlu0 %2298
      %v2301 = vmul.f32 %v2291, %v2299
      %v2302 = vmul.f32 %v2292, %v2299
      %v2303 = vmul.f32 %v2293, %v2299
      %v2304 = vmul.f32 %v2294, %v2299
      %v2305 = vmul.f32 %v2295, %v2299
      %v2306 = vmul.f32 %v2296, %v2299
      %2307 = vset.pattern.permute.xlu0 2
      %2308 = vperm.xlu0 %2307, %v2170
      %v2309 = vpop.permute.xlu0 %2308
      %v2311 = vadd.f32 %v2301, %v2309
      %v2312 = vadd.f32 %v2302, %v2309
      %v2313 = vadd.f32 %v2303, %v2309
      %v2314 = vadd.f32 %v2304, %v2309
      %v2315 = vadd.f32 %v2305, %v2309
      %v2316 = vadd.f32 %v2306, %v2309
      %vm2317 = vcmp.ge.f32.partialorder %v2311, 0.0
      %vm2318 = vcmp.ge.f32.partialorder %v2312, 0.0
      %vm2319 = vcmp.ge.f32.partialorder %v2313, 0.0
      %vm2320 = vcmp.ge.f32.partialorder %v2314, 0.0
      %vm2321 = vcmp.ge.f32.partialorder %v2315, 0.0
      %vm2322 = vcmp.ge.f32.partialorder %v2316, 0.0
      %2323 = vset.pattern.permute.xlu0 3
      %2324 = vperm.xlu0 %2323, %v2170
      %v2325 = vpop.permute.xlu0 %2324
      %v2327 = vmul.f32 %v2325, %v2311
      %v2328 = vmul.f32 %v2325, %v2312
      %v2329 = vmul.f32 %v2325, %v2313
      %v2330 = vmul.f32 %v2325, %v2314
      %v2331 = vmul.f32 %v2325, %v2315
      %v2332 = vmul.f32 %v2325, %v2316
      %v2333 = vsel %vm2317, %v2311, %v2327
      %v2334 = vsel %vm2318, %v2312, %v2328
      %v2335 = vsel %vm2319, %v2313, %v2329
      %v2336 = vsel %vm2320, %v2314, %v2330
      %v2337 = vsel %vm2321, %v2315, %v2331
      %v2338 = vsel %vm2322, %v2316, %v2332
      %v2339 = vld [vmem:[%s289] sm:$0x3f]
      %v2340 = vunpack.c.l.bf16 %v2339
      %v2341 = vunpack.c.h.bf16 %v2339
      %v2344 = vlaneseq
      %v2345 = vshrl.u32 %v2344, 7
      %v2346 = vsub.s32 0, %v2345
      %v2347 = vrot.slane %v2340, %v2346
      %v2348 = vlaneseq
      %v2349 = vshrl.u32 %v2348, 7
      %v2350 = vsub.s32 2, %v2349
      %v2351 = vrot.slane %v2340, %v2350
      %v2352 = vlaneseq
      %v2353 = vshrl.u32 %v2352, 7
      %v2354 = vsub.s32 4, %v2353
      %v2355 = vrot.slane %v2340, %v2354
      %v2356 = vlaneseq
      %v2357 = vshrl.u32 %v2356, 7
      %v2358 = vsub.s32 6, %v2357
      %v2359 = vrot.slane %v2340, %v2358
      %v2360 = vlaneseq
      %v2361 = vshrl.u32 %v2360, 7
      %v2362 = vsub.s32 0, %v2361
      %v2363 = vrot.slane %v2341, %v2362
      %v2364 = vlaneseq
      %v2365 = vshrl.u32 %v2364, 7
      %v2366 = vsub.s32 2, %v2365
      %v2367 = vrot.slane %v2341, %v2366
      %v2374 = vlaneseq
      %v2375 = vshrl.u32 %v2374, 7
      %v2376 = vsub.s32 0, %v2375
      %v2377 = vrot.slane %v2347, %v2376
      %v2378 = vlaneseq
      %v2379 = vshrl.u32 %v2378, 7
      %v2380 = vsub.s32 0, %v2379
      %v2381 = vrot.slane %v2351, %v2380
      %v2382 = vlaneseq
      %v2383 = vshrl.u32 %v2382, 7
      %v2384 = vsub.s32 0, %v2383
      %v2385 = vrot.slane %v2355, %v2384
      %v2386 = vlaneseq
      %v2387 = vshrl.u32 %v2386, 7
      %v2388 = vsub.s32 0, %v2387
      %v2389 = vrot.slane %v2359, %v2388
      %v2390 = vlaneseq
      %v2391 = vshrl.u32 %v2390, 7
      %v2392 = vsub.s32 0, %v2391
      %v2393 = vrot.slane %v2363, %v2392
      %v2394 = vlaneseq
      %v2395 = vshrl.u32 %v2394, 7
      %v2396 = vsub.s32 0, %v2395
      %v2397 = vrot.slane %v2367, %v2396
      %v2398 = vmul.f32 %v2333, %v2377
      %v2399 = vmul.f32 %v2334, %v2381
      %v2400 = vmul.f32 %v2335, %v2385
      %v2401 = vmul.f32 %v2336, %v2389
      %v2402 = vmul.f32 %v2337, %v2393
      %v2403 = vmul.f32 %v2338, %v2397
      %v2404 = vpack.c.bf16 %v2398, %v2398
      %v2405 = vpack.c.bf16 %v2399, %v2399
      %v2406 = vpack.c.bf16 %v2400, %v2400
      %v2407 = vpack.c.bf16 %v2401, %v2401
      %v2408 = vpack.c.bf16 %v2402, %v2402
      %v2409 = vpack.c.bf16 %v2403, %v2403
      %v2416 = vunpack.c.l.b16 %v2404
      %v2417 = vunpack.c.l.b16 %v2405
      %v2418 = vunpack.c.l.b16 %v2406
      %v2419 = vunpack.c.l.b16 %v2407
      %v2420 = vunpack.c.l.b16 %v2408
      %v2421 = vunpack.c.l.b16 %v2409
      %v2422 = vpack.c.b16 %v2417, %v2416
      %v2423 = vpack.c.b16 %v2419, %v2418
      %v2424 = vpack.c.b16 %v2421, %v2420
      %2428 = vst [vmem:[%s295] sm:$0xff] %v2422
      %2429 = vst [vmem:[%s295 + $0x8] sm:$0xff] %v2423
      %2430 = vst [vmem:[%s295 + $0x10] sm:$0xff] %v2424
      %s2431 = smul.u32 6, %s16
      %p2432 = scmp.lt.s32.totalorder %s2431, 29
      %s2433 = scalar_select %p2432, %s2431, 29
      %s2434 = smul.addr %s2433, 4
      %s2435 = scalar_lea.vmem %s5, %s2434
      // Predicated region
      $region41: #{_lambda_.2} parent=39 // pred_check
        %p2436 = pneg %p162
      $region42: #{_lambda_.2} parent=39 // pred_check_branch
        %2438 = sbr.rel (%p2436) target = $region44
      $region43: #{_lambda_.2} parent=39 // pred_region
        %s2439 = smul.u32 6, %s16
      $region44: #{_lambda_.2} parent=39 // pred_fallthru
        _
    $region40: #{_lambda_.2} parent=5 // pred_fallthru
      _
    %p2440 = scmp.le.s32.totalorder 2, %s11
    // Predicated region
    $region45: #{_lambda_.2} parent=5 // pred_check
      %p2441 = pneg %p2440
    $region46: #{_lambda_.2} parent=5 // pred_check_branch
      %2443 = sbr.rel (%p2441) target = $region48
    $region47: #{_lambda_.2} parent=5 // pred_region
      %s2444 = ssub.s32 %s11, 2
      // Predicated region
      $region49: #{_lambda_.2} parent=47 // pred_check
        %p2445 = pneg %p168
      $region50: #{_lambda_.2} parent=47 // pred_check_branch
        %2447 = sbr.rel (%p2445) target = $region52
      $region51: #{_lambda_.2} parent=47 // pred_region
        %s2448 = smul.u32 6, %s17
        %p2449 = scmp.lt.s32.totalorder %s2448, 29
        %s2450 = scalar_select %p2449, %s2448, 29
        %s2451 = smul.addr %s2450, 4
        %s2452 = scalar_lea.vmem %s5, %s2451
      $region52: #{_lambda_.2} parent=47 // pred_fallthru
        _
    $region48: #{_lambda_.2} parent=5 // pred_fallthru
      _
  $region6: #{_lambda_.2} parent=0 // loop_footer
    %s15 = sadd.s32 1, %s11
  $region7: #{_lambda_.2} parent=0 // loop_footer_branch
    %10 = sbr.rel target = $region3
  $region8: #{_lambda_.2} parent=0 // loop_exit
    _

// kernel: _lambda_.3
$region0: #{_lambda_.3}
  #allocation0 [shape = 'u32[]', space=smem, size = 0x4, offset = 0x4, fixed_abs, tag = 'smem constant byte address 0x4 - core index']
  #allocation1 [shape = 'u32[144,128]{1,0:T(1,128)}', space=vmem, size = 0x12000, scoped, tag = 'internal scratch']
  %s0 = inlined_call_operand.vmem [shape: bf16[8,3840], index: 0, kind: input, shape index: {}, may-alias: {0,1}]
  %s1 = inlined_call_operand.vmem [shape: bf16[8,3840], index: 1, kind: input, shape index: {}, may-alias: {0,1}]
  %s2 = inlined_call_operand.vmem [shape: bf16[9,8,24], index: 2, kind: input, shape index: {}]
  %s3 = inlined_call_operand.vmem [shape: f32[8,4], index: 3, kind: input, shape index: {}]
  %s4 = inlined_call_operand.vmem [shape: bf16[1,3840], index: 4, kind: input, shape index: {}]
  %s5 = inlined_call_operand.vmem [shape: f32[8,3840], index: 5, kind: output, shape index: {}]
  %s6 = sld [smem:[#allocation0]]
  $region53: #{_lambda_.3} parent=0
    _
  %s8 = ssub.s32 1, %s6
  %s9 = scalar_select 0, %s8, %s6
  loop: start=0, step=1, limit=7
  $region2: #{_lambda_.3} parent=0 // loop_pre_header
    _
  $region3: #{_lambda_.3} parent=0 // loop_header
    %s11 = sphi 0, %s15
    %p12 = scmp.ge.s32.totalorder %s11, 7
    %s21 = sphi 0, %s23
    %s24 = sphi 0, %s21
    %s25 = sphi 0, %s24
    %s41 = sphi 0, %s25
    %s55 = sphi 0, %s57
    %s58 = sphi 0, %s55
    %s59 = sphi 0, %s58
    %s75 = sphi 0, %s59
    %s79 = sphi 0, %s79
    %s81 = sphi 0, %s79
    %s82 = sphi 0, %s81
    %s96 = sphi 0, %s82
    %s100 = sphi 0, %s100
    %s102 = sphi 0, %s100
    %s103 = sphi 0, %s102
    %s117 = sphi 0, %s103
    %s123 = sphi 0, %s125
    %s126 = sphi 0, %s123
    %s127 = sphi 0, %s126
    %s143 = sphi 0, %s127
    %s149 = sphi 0, %s151
    %s152 = sphi 0, %s149
    %s153 = sphi 0, %s152
    %s169 = sphi 0, %s153
  $region4: #{_lambda_.3} parent=0 // loop_header_branch
    %14 = sbr.rel (%p12) target = $region8
  $region5: #{_lambda_.3} parent=0 // loop_body
    %s16 = ssub.s32 %s11, 1
    %s17 = ssub.s32 %s11, 2
    %s18 = sadd.s32 %s11, 1
    %s19 = ssub.s32 %s11, %s18
    %p20 = scmp.eq.s32.totalorder %s19, 0
    %s22 = sadd.s32 %s21, 1
    %s23 = scalar_select %p20, %s21, %s22
    %p26 = pneg %p20
    %p27 = scmp.eq.s32.totalorder %s11, 4
    %p28 = por %p26, %p27
    %p29 = scmp.ne.s32.totalorder %s21, %s24
    %p30 = scmp.eq.s32.totalorder %s11, 0
    %p31 = por %p29, %p30
    %p32 = scmp.ne.s32.totalorder %s21, %s24
    %p33 = scmp.eq.s32.totalorder %s16, 4
    %p34 = por %p32, %p33
    %p35 = scmp.ne.s32.totalorder %s24, %s25
    %p36 = scmp.eq.s32.totalorder %s16, 0
    %p37 = por %p35, %p36
    %p38 = scmp.ne.s32.totalorder %s24, %s25
    %p39 = scmp.eq.s32.totalorder %s17, 4
    %p40 = por %p38, %p39
    %p42 = scmp.ne.s32.totalorder %s25, %s41
    %p43 = scmp.eq.s32.totalorder %s17, 0
    %p44 = por %p42, %p43
    %s45 = sadd.s32 %s11, 1
    %s46 = smul.u32 %s45, 2
    %p47 = scmp.lt.s32.totalorder %s46, 9
    %s48 = scalar_select %p47, %s46, 9
    %s49 = sadd.s32 %s18, 1
    %s50 = smul.u32 %s49, 2
    %p51 = scmp.lt.s32.totalorder %s50, 9
    %s52 = scalar_select %p51, %s50, 9
    %s53 = ssub.s32 %s48, %s52
    %p54 = scmp.eq.s32.totalorder %s53, 0
    %s56 = sadd.s32 %s55, 1
    %s57 = scalar_select %p54, %s55, %s56
    %p60 = pneg %p54
    %p61 = scmp.eq.s32.totalorder %s11, 4
    %p62 = por %p60, %p61
    %p63 = scmp.ne.s32.totalorder %s55, %s58
    %p64 = scmp.eq.s32.totalorder %s11, 0
    %p65 = por %p63, %p64
    %p66 = scmp.ne.s32.totalorder %s55, %s58
    %p67 = scmp.eq.s32.totalorder %s16, 4
    %p68 = por %p66, %p67
    %p69 = scmp.ne.s32.totalorder %s58, %s59
    %p70 = scmp.eq.s32.totalorder %s16, 0
    %p71 = por %p69, %p70
    %p72 = scmp.ne.s32.totalorder %s58, %s59
    %p73 = scmp.eq.s32.totalorder %s17, 4
    %p74 = por %p72, %p73
    %p76 = scmp.ne.s32.totalorder %s59, %s75
    %p77 = scmp.eq.s32.totalorder %s17, 0
    %p78 = por %p76, %p77
    %s80 = sadd.s32 %s79, 1
    %p83 = scmp.eq.s32.totalorder %s11, 4
    %p84 = scmp.ne.s32.totalorder %s79, %s81
    %p85 = scmp.eq.s32.totalorder %s11, 0
    %p86 = por %p84, %p85
    %p87 = scmp.ne.s32.totalorder %s79, %s81
    %p88 = scmp.eq.s32.totalorder %s16, 4
    %p89 = por %p87, %p88
    %p90 = scmp.ne.s32.totalorder %s81, %s82
    %p91 = scmp.eq.s32.totalorder %s16, 0
    %p92 = por %p90, %p91
    %p93 = scmp.ne.s32.totalorder %s81, %s82
    %p94 = scmp.eq.s32.totalorder %s17, 4
    %p95 = por %p93, %p94
    %p97 = scmp.ne.s32.totalorder %s82, %s96
    %p98 = scmp.eq.s32.totalorder %s17, 0
    %p99 = por %p97, %p98
    %s101 = sadd.s32 %s100, 1
    %p104 = scmp.eq.s32.totalorder %s11, 4
    %p105 = scmp.ne.s32.totalorder %s100, %s102
    %p106 = scmp.eq.s32.totalorder %s11, 0
    %p107 = por %p105, %p106
    %p108 = scmp.ne.s32.totalorder %s100, %s102
    %p109 = scmp.eq.s32.totalorder %s16, 4
    %p110 = por %p108, %p109
    %p111 = scmp.ne.s32.totalorder %s102, %s103
    %p112 = scmp.eq.s32.totalorder %s16, 0
    %p113 = por %p111, %p112
    %p114 = scmp.ne.s32.totalorder %s102, %s103
    %p115 = scmp.eq.s32.totalorder %s17, 4
    %p116 = por %p114, %p115
    %p118 = scmp.ne.s32.totalorder %s103, %s117
    %p119 = scmp.eq.s32.totalorder %s17, 0
    %p120 = por %p118, %p119
    %s121 = ssub.s32 %s11, %s18
    %p122 = scmp.eq.s32.totalorder %s121, 0
    %s124 = sadd.s32 %s123, 1
    %s125 = scalar_select %p122, %s123, %s124
    %p128 = pneg %p122
    %p129 = scmp.eq.s32.totalorder %s11, 4
    %p130 = por %p128, %p129
    %p131 = scmp.ne.s32.totalorder %s123, %s126
    %p132 = scmp.eq.s32.totalorder %s11, 0
    %p133 = por %p131, %p132
    %p134 = scmp.ne.s32.totalorder %s123, %s126
    %p135 = scmp.eq.s32.totalorder %s16, 4
    %p136 = por %p134, %p135
    %p137 = scmp.ne.s32.totalorder %s126, %s127
    %p138 = scmp.eq.s32.totalorder %s16, 0
    %p139 = por %p137, %p138
    %p140 = scmp.ne.s32.totalorder %s126, %s127
    %p141 = scmp.eq.s32.totalorder %s17, 4
    %p142 = por %p140, %p141
    %p144 = scmp.ne.s32.totalorder %s127, %s143
    %p145 = scmp.eq.s32.totalorder %s17, 0
    %p146 = por %p144, %p145
    %s147 = ssub.s32 %s11, %s18
    %p148 = scmp.eq.s32.totalorder %s147, 0
    %s150 = sadd.s32 %s149, 1
    %s151 = scalar_select %p148, %s149, %s150
    %p154 = pneg %p148
    %p155 = scmp.eq.s32.totalorder %s11, 4
    %p156 = por %p154, %p155
    %p157 = scmp.ne.s32.totalorder %s149, %s152
    %p158 = scmp.eq.s32.totalorder %s11, 0
    %p159 = por %p157, %p158
    %p160 = scmp.ne.s32.totalorder %s149, %s152
    %p161 = scmp.eq.s32.totalorder %s16, 4
    %p162 = por %p160, %p161
    %p163 = scmp.ne.s32.totalorder %s152, %s153
    %p164 = scmp.eq.s32.totalorder %s16, 0
    %p165 = por %p163, %p164
    %p166 = scmp.ne.s32.totalorder %s152, %s153
    %p167 = scmp.eq.s32.totalorder %s17, 4
    %p168 = por %p166, %p167
    %p170 = scmp.ne.s32.totalorder %s153, %s169
    %p171 = scmp.eq.s32.totalorder %s17, 0
    %p172 = por %p170, %p171
    %p173 = scmp.le.s32.totalorder 1, %s11
    %p174 = scmp.lt.s32.totalorder %s11, 6
    %p175 = pnand %p173, %p174
    %p176 = pneg %p175
    // Predicated region
    $region9: #{_lambda_.3} parent=5 // pred_check
      _
    $region10: #{_lambda_.3} parent=5 // pred_check_branch
      %178 = sbr.rel (%p175) target = $region12
    $region11: #{_lambda_.3} parent=5 // pred_region
      %s179 = ssub.s32 %s11, 1
      // Predicated region
      $region13: #{_lambda_.3} parent=11 // pred_check
        %p180 = pneg %p92
      $region14: #{_lambda_.3} parent=11 // pred_check_branch
        %182 = sbr.rel (%p180) target = $region16
      $region15: #{_lambda_.3} parent=11 // pred_region
        _
      $region16: #{_lambda_.3} parent=11 // pred_fallthru
        _
      // Predicated region
      $region17: #{_lambda_.3} parent=11 // pred_check
        %p183 = pneg %p113
      $region18: #{_lambda_.3} parent=11 // pred_check_branch
        %185 = sbr.rel (%p183) target = $region20
      $region19: #{_lambda_.3} parent=11 // pred_region
        _
      $region20: #{_lambda_.3} parent=11 // pred_fallthru
        _
    $region12: #{_lambda_.3} parent=5 // pred_fallthru
      _
    %p186 = scmp.lt.s32.totalorder %s11, 5
    // Predicated region
    $region21: #{_lambda_.3} parent=5 // pred_check
      %p187 = pneg %p186
    $region22: #{_lambda_.3} parent=5 // pred_check_branch
      %189 = sbr.rel (%p187) target = $region24
    $region23: #{_lambda_.3} parent=5 // pred_region
      // Predicated region
      $region25: #{_lambda_.3} parent=23 // pred_check
        %p190 = pneg %p31
      $region26: #{_lambda_.3} parent=23 // pred_check_branch
        %192 = sbr.rel (%p190) target = $region28
      $region27: #{_lambda_.3} parent=23 // pred_region
        %s193 = smul.u32 6, %s11
        %p194 = scmp.lt.s32.totalorder %s193, 29
        %s195 = scalar_select %p194, %s193, 29
        %s196 = smul.addr %s195, 4
        %s197 = scalar_lea.vmem %s0, %s196
        %s198 = smul.u32 6, %s11
      $region28: #{_lambda_.3} parent=23 // pred_fallthru
        _
      // Predicated region
      $region29: #{_lambda_.3} parent=23 // pred_check
        %p199 = pneg %p65
      $region30: #{_lambda_.3} parent=23 // pred_check_branch
        %201 = sbr.rel (%p199) target = $region32
      $region31: #{_lambda_.3} parent=23 // pred_region
        %s202 = sadd.s32 %s11, 1
        %s203 = smul.u32 %s202, 2
        %p204 = scmp.lt.s32.totalorder %s203, 9
        %s205 = scalar_select %p204, %s203, 9
        %s206 = smul.u32 3, %s205
        %p207 = scmp.lt.s32.totalorder %s206, 29
        %s208 = scalar_select %p207, %s206, 29
        %s209 = smul.addr %s208, 4
        %s210 = scalar_lea.vmem %s1, %s209
        %s211 = sadd.s32 %s11, 1
        %s212 = smul.u32 %s211, 2
        %p213 = scmp.lt.s32.totalorder %s212, 9
        %s214 = scalar_select %p213, %s212, 9
        %s215 = smul.u32 3, %s214
      $region32: #{_lambda_.3} parent=23 // pred_fallthru
        _
      // Predicated region
      $region33: #{_lambda_.3} parent=23 // pred_check
        %p216 = pneg %p133
      $region34: #{_lambda_.3} parent=23 // pred_check_branch
        %218 = sbr.rel (%p216) target = $region36
      $region35: #{_lambda_.3} parent=23 // pred_region
        %s219 = smul.u32 6, %s11
        %p220 = scmp.lt.s32.totalorder %s219, 29
        %s221 = scalar_select %p220, %s219, 29
        %s222 = scalar_lea.vmem %s4, %s221
        %s223 = smul.u32 6, %s11
      $region36: #{_lambda_.3} parent=23 // pred_fallthru
        _
    $region24: #{_lambda_.3} parent=5 // pred_fallthru
      _
    %p224 = scmp.le.s32.totalorder 1, %s11
    %p225 = scmp.lt.s32.totalorder %s11, 6
    %p226 = pnand %p224, %p225
    %p227 = pneg %p226
    // Predicated region
    $region37: #{_lambda_.3} parent=5 // pred_check
      _
    $region38: #{_lambda_.3} parent=5 // pred_check_branch
      %229 = sbr.rel (%p226) target = $region40
    $region39: #{_lambda_.3} parent=5 // pred_region
      %s230 = ssub.s32 %s11, 1
      %s231 = smul.u32 6, %s16
      %p232 = scmp.lt.s32.totalorder %s231, 29
      %s233 = scalar_select %p232, %s231, 29
      %s234 = smul.addr %s233, 4
      %s235 = scalar_lea.vmem %s0, %s234
      %p236 = pneg %p37
      %p237 = pneg %p34
      %s238 = sadd.s32 %s16, 1
      %s239 = smul.u32 %s238, 2
      %p240 = scmp.lt.s32.totalorder %s239, 9
      %s241 = scalar_select %p240, %s239, 9
      %s242 = smul.u32 3, %s241
      %p243 = scmp.lt.s32.totalorder %s242, 29
      %s244 = scalar_select %p243, %s242, 29
      %s245 = smul.addr %s244, 4
      %s246 = scalar_lea.vmem %s1, %s245
      %p247 = pneg %p71
      %p248 = pneg %p68
      %p249 = pneg %p92
      %p250 = pneg %p89
      %p251 = pneg %p113
      %p252 = pneg %p110
      %s253 = smul.u32 6, %s16
      %p254 = scmp.lt.s32.totalorder %s253, 29
      %s255 = scalar_select %p254, %s253, 29
      %s256 = scalar_lea.vmem %s4, %s255
      %p257 = pneg %p139
      %p258 = pneg %p136
      %p259 = pneg %p165
      %p260 = pneg %p162
      %s261 = smul.u32 6, %s16
      %p262 = scmp.lt.s32.totalorder %s261, 29
      %s263 = scalar_select %p262, %s261, 29
      %s264 = smul.addr %s263, 8
      %s265 = scalar_lea.vmem %s5, %s264
      %s266 = smul.u32 6, %s16
      %p267 = scmp.lt.s32.totalorder %s266, 29
      %s268 = scalar_select %p267, %s266, 29
      %s269 = smul.addr %s268, 4
      %s270 = scalar_lea.vmem %s0, %s269
      %s271 = smul.u32 6, %s16
      %s272 = sadd.s32 %s16, 1
      %s273 = smul.u32 %s272, 2
      %p274 = scmp.lt.s32.totalorder %s273, 9
      %s275 = scalar_select %p274, %s273, 9
      %s276 = smul.u32 3, %s275
      %p277 = scmp.lt.s32.totalorder %s276, 29
      %s278 = scalar_select %p277, %s276, 29
      %s279 = smul.addr %s278, 4
      %s280 = scalar_lea.vmem %s1, %s279
      %s281 = sadd.s32 %s16, 1
      %s282 = smul.u32 %s281, 2
      %p283 = scmp.lt.s32.totalorder %s282, 9
      %s284 = scalar_select %p283, %s282, 9
      %s285 = smul.u32 3, %s284
      %s286 = smul.u32 6, %s16
      %p287 = scmp.lt.s32.totalorder %s286, 29
      %s288 = scalar_select %p287, %s286, 29
      %s289 = scalar_lea.vmem %s4, %s288
      %s290 = smul.u32 6, %s16
      %s291 = smul.u32 6, %s16
      %p292 = scmp.lt.s32.totalorder %s291, 29
      %s293 = scalar_select %p292, %s291, 29
      %s294 = smul.addr %s293, 8
      %s295 = scalar_lea.vmem %s5, %s294
      %s296 = smul.u32 6, %s16
      %v298 = vld [vmem:[%s270] sm:$0xff]
      %v299 = vld [vmem:[%s270 + $0x8] sm:$0xff]
      %v300 = vld [vmem:[%s270 + $0x10] sm:$0xff]
      %v301 = vld [vmem:[%s280] sm:$0xff]
      %v302 = vld [vmem:[%s280 + $0x8] sm:$0xf]
      %v306 = vunpack.c.l.b16 %v298
      %v307 = vunpack.c.h.b16 %v298
      %v308 = vunpack.c.l.b16 %v299
      %v309 = vunpack.c.h.b16 %v299
      %v310 = vunpack.c.l.b16 %v300
      %v311 = vunpack.c.h.b16 %v300
      %v312 = vpack.c.b16 %v306, %v306
      %v313 = vpack.c.b16 %v307, %v307
      %v314 = vpack.c.b16 %v308, %v308
      %v315 = vpack.c.b16 %v309, %v309
      %v316 = vpack.c.b16 %v310, %v310
      %v317 = vpack.c.b16 %v311, %v311
      %v320 = vunpack.c.l.b16 %v301
      %v321 = vunpack.c.h.b16 %v301
      %v322 = vunpack.c.l.b16 %v302
      %v323 = vpack.c.b16 %v320, %v320
      %v324 = vpack.c.b16 %v321, %v321
      %v325 = vpack.c.b16 %v322, %v322
      %v326 = vrot.slane %v312, 4
      %v327 = vrot.slane %v313, 4
      %v328 = vrot.slane %v314, 4
      %v329 = vrot.slane %v315, 4
      %v330 = vrot.slane %v316, 4
      %v331 = vrot.slane %v317, 4
      %v332 = vrot.slane %v323, 4
      %333 = vrot.lane.b32.xlu0 %v326, 127
      %v334 = vpop.permute.xlu0 %333
      %335 = vrot.lane.b32.xlu0 %v327, 127
      %v336 = vpop.permute.xlu0 %335
      %337 = vrot.lane.b32.xlu0 %v328, 127
      %v338 = vpop.permute.xlu0 %337
      %339 = vrot.lane.b32.xlu0 %v329, 127
      %v340 = vpop.permute.xlu0 %339
      %341 = vrot.lane.b32.xlu0 %v330, 127
      %v342 = vpop.permute.xlu0 %341
      %343 = vrot.lane.b32.xlu0 %v331, 127
      %v344 = vpop.permute.xlu0 %343
      %345 = vrot.lane.b32.xlu0 %v332, 127
      %v346 = vpop.permute.xlu0 %345
      %vm347 = vcmask 1039360
      %v348 = vsel %vm347, %v334, %v336
      %v349 = vsel %vm347, %v336, %v338
      %v350 = vsel %vm347, %v338, %v340
      %v351 = vsel %vm347, %v340, %v342
      %v352 = vsel %vm347, %v342, %v344
      %v353 = vsel %vm347, %v344, %v346
      %354 = vrot.lane.b32.xlu0 %v312, 126
      %v355 = vpop.permute.xlu0 %354
      %356 = vrot.lane.b32.xlu0 %v313, 126
      %v357 = vpop.permute.xlu0 %356
      %358 = vrot.lane.b32.xlu0 %v314, 126
      %v359 = vpop.permute.xlu0 %358
      %360 = vrot.lane.b32.xlu0 %v315, 126
      %v361 = vpop.permute.xlu0 %360
      %362 = vrot.lane.b32.xlu0 %v316, 126
      %v363 = vpop.permute.xlu0 %362
      %364 = vrot.lane.b32.xlu0 %v317, 126
      %v365 = vpop.permute.xlu0 %364
      %366 = vrot.lane.b32.xlu0 %v323, 126
      %v367 = vpop.permute.xlu0 %366
      %vm368 = vcmask 1031168
      %v369 = vsel %vm368, %v355, %v357
      %v370 = vsel %vm368, %v357, %v359
      %v371 = vsel %vm368, %v359, %v361
      %v372 = vsel %vm368, %v361, %v363
      %v373 = vsel %vm368, %v363, %v365
      %v374 = vsel %vm368, %v365, %v367
      %vm375 = vcmask 1043456
      %v378 = vsel %vm375, %v312, %v348
      %v382 = vsel %vm375, %v313, %v349
      %v386 = vsel %vm375, %v314, %v350
      %v390 = vsel %vm375, %v315, %v351
      %v394 = vsel %vm375, %v316, %v352
      %v398 = vsel %vm375, %v317, %v353
      %v400 = vld [vmem:[%s2] sm:$0xf]
      %v403 = vsel %vm375, %v323, %v346
      %s404 = scalar_lea.vmem %s2, 4
      %v405 = vld [vmem:[%s404] sm:$0xf]
      %413 = vrot.lane.b32.xlu0 %v378, 116
      %v414 = vpop.permute.xlu0 %413
      %415 = vrot.lane.b32.xlu0 %v382, 116
      %v416 = vpop.permute.xlu0 %415
      %417 = vrot.lane.b32.xlu0 %v386, 116
      %v418 = vpop.permute.xlu0 %417
      %419 = vrot.lane.b32.xlu0 %v390, 116
      %v420 = vpop.permute.xlu0 %419
      %421 = vrot.lane.b32.xlu0 %v394, 116
      %v422 = vpop.permute.xlu0 %421
      %423 = vrot.lane.b32.xlu0 %v398, 116
      %v424 = vpop.permute.xlu0 %423
      %425 = vrot.lane.b32.xlu0 %v403, 116
      %v426 = vpop.permute.xlu0 %425
      %427 = vrot.lane.b32.xlu0 %v369, 116
      %v428 = vpop.permute.xlu0 %427
      %429 = vrot.lane.b32.xlu0 %v370, 116
      %v430 = vpop.permute.xlu0 %429
      %431 = vrot.lane.b32.xlu0 %v371, 116
      %v432 = vpop.permute.xlu0 %431
      %433 = vrot.lane.b32.xlu0 %v372, 116
      %v434 = vpop.permute.xlu0 %433
      %435 = vrot.lane.b32.xlu0 %v373, 116
      %v436 = vpop.permute.xlu0 %435
      %437 = vrot.lane.b32.xlu0 %v374, 116
      %v438 = vpop.permute.xlu0 %437
      %439 = vrot.lane.b32.xlu0 %v367, 116
      %v440 = vpop.permute.xlu0 %439
      %vm441 = vcmask 949248
      %v442 = vsel %vm441, %v414, %v416
      %v443 = vsel %vm441, %v416, %v418
      %v444 = vsel %vm441, %v418, %v420
      %v445 = vsel %vm441, %v420, %v422
      %v446 = vsel %vm441, %v422, %v424
      %v447 = vsel %vm441, %v424, %v426
      %v448 = vsel %vm441, %v428, %v430
      %v449 = vsel %vm441, %v430, %v432
      %v450 = vsel %vm441, %v432, %v434
      %v451 = vsel %vm441, %v434, %v436
      %v452 = vsel %vm441, %v436, %v438
      %v453 = vsel %vm441, %v438, %v440
      %vm460 = vcmask 195584
      %v462 = vsel %vm460, %v405, 0
      %v465 = vsel %vm375, %v448, 0
      %v468 = vsel %vm375, %v449, 0
      %v471 = vsel %vm375, %v450, 0
      %v474 = vsel %vm375, %v451, 0
      %v477 = vsel %vm375, %v452, 0
      %v480 = vsel %vm375, %v453, 0
      %482 = vmatprep.subr.bf16.mxu0 0
      %483 = vmatpush1.bf16.msra.mxu0 0
      %484 = vmatprep.subr.bf16.mxu0 0
      %485 = vmatpush1.bf16.msra.mxu0 0
      %486 = vmatprep.subr.bf16.mxu0 0
      %487 = vmatpush1.bf16.msra.mxu0 0
      %488 = vmatprep.subr.bf16.mxu0 0
      %489 = vmatpush1.bf16.msra.mxu0 0
      %490 = vmatprep.subr.bf16.mxu0 0
      %491 = vmatpush1.bf16.msra.mxu0 0
      %492 = vmatprep.subr.bf16.mxu0 0
      %493 = vmatpush1.bf16.msra.mxu0 0
      %494 = vmatprep.subr.bf16.mxu0 %v468
      %495 = vmatpush1.bf16.msra.mxu0 %v465
      %496 = vmatprep.subr.bf16.mxu0 %v443
      %497 = vmatpush1.bf16.msra.mxu0 %v442
      %498 = vmatprep.subr.bf16.mxu0 0
      %499 = vmatpush2.bf16.msra.mxu0 0
      %500 = vmatprep.subr.bf16.mxu0 0
      %501 = vmatpush2.bf16.msra.mxu0 0
      %502 = vmatprep.subr.bf16.mxu0 0
      %503 = vmatpush2.bf16.msra.mxu0 0
      %504 = vmatprep.subr.bf16.mxu0 0
      %505 = vmatpush2.bf16.msra.mxu0 0
      %506 = vmatprep.subr.bf16.mxu0 0
      %507 = vmatpush2.bf16.msra.mxu0 0
      %508 = vmatprep.subr.bf16.mxu0 0
      %509 = vmatpush2.bf16.msra.mxu0 0
      %510 = vmatprep.subr.bf16.mxu0 0
      %511 = vmatpush2.bf16.msra.mxu0 0
      %512 = vmatprep.subr.bf16.mxu0 0
      %513 = vmatpush2.bf16.msra.mxu0 0
      %514 = vmatprep.mubr.bf16.mxu0 0
      %515 = vmatmul.mubr.bf16.gmra.mxu0 %v462
      %v516 = vpop.f32.mrf.mxu0
      %v517 = vadd.f32 0.0, %v516
      %v518 = vpop.f32.mrf.mxu0
      %v519 = vadd.f32 0.0, %v518
      %v520 = vpop.f32.mrf.mxu0
      %v521 = vpop.f32.mrf.mxu0
      %522 = vdwg.mxu0
      %523 = vmatprep.subr.bf16.mxu0 0
      %524 = vmatpush1.bf16.msra.mxu0 0
      %525 = vmatprep.subr.bf16.mxu0 0
      %526 = vmatpush1.bf16.msra.mxu0 0
      %527 = vmatprep.subr.bf16.mxu0 0
      %528 = vmatpush1.bf16.msra.mxu0 0
      %529 = vmatprep.subr.bf16.mxu0 0
      %530 = vmatpush1.bf16.msra.mxu0 0
      %531 = vmatprep.subr.bf16.mxu0 0
      %532 = vmatpush1.bf16.msra.mxu0 0
      %533 = vmatprep.subr.bf16.mxu0 0
      %534 = vmatpush1.bf16.msra.mxu0 0
      %535 = vmatprep.subr.bf16.mxu0 %v474
      %536 = vmatpush1.bf16.msra.mxu0 %v471
      %537 = vmatprep.subr.bf16.mxu0 %v445
      %538 = vmatpush1.bf16.msra.mxu0 %v444
      %539 = vmatprep.subr.bf16.mxu0 0
      %540 = vmatpush2.bf16.msra.mxu0 0
      %541 = vmatprep.subr.bf16.mxu0 0
      %542 = vmatpush2.bf16.msra.mxu0 0
      %543 = vmatprep.subr.bf16.mxu0 0
      %544 = vmatpush2.bf16.msra.mxu0 0
      %545 = vmatprep.subr.bf16.mxu0 0
      %546 = vmatpush2.bf16.msra.mxu0 0
      %547 = vmatprep.subr.bf16.mxu0 0
      %548 = vmatpush2.bf16.msra.mxu0 0
      %549 = vmatprep.subr.bf16.mxu0 0
      %550 = vmatpush2.bf16.msra.mxu0 0
      %551 = vmatprep.subr.bf16.mxu0 0
      %552 = vmatpush2.bf16.msra.mxu0 0
      %553 = vmatprep.subr.bf16.mxu0 0
      %554 = vmatpush2.bf16.msra.mxu0 0
      %555 = vmatprep.mubr.bf16.mxu0 0
      %556 = vmatmul.mubr.bf16.gmra.mxu0 %v462
      %v557 = vpop.f32.mrf.mxu0
      %v558 = vadd.f32 0.0, %v557
      %v559 = vpop.f32.mrf.mxu0
      %v560 = vadd.f32 0.0, %v559
      %v561 = vpop.f32.mrf.mxu0
      %v562 = vpop.f32.mrf.mxu0
      %563 = vdwg.mxu0
      %564 = vmatprep.subr.bf16.mxu0 0
      %565 = vmatpush1.bf16.msra.mxu0 0
      %566 = vmatprep.subr.bf16.mxu0 0
      %567 = vmatpush1.bf16.msra.mxu0 0
      %568 = vmatprep.subr.bf16.mxu0 0
      %569 = vmatpush1.bf16.msra.mxu0 0
      %570 = vmatprep.subr.bf16.mxu0 0
      %571 = vmatpush1.bf16.msra.mxu0 0
      %572 = vmatprep.subr.bf16.mxu0 0
      %573 = vmatpush1.bf16.msra.mxu0 0
      %574 = vmatprep.subr.bf16.mxu0 0
      %575 = vmatpush1.bf16.msra.mxu0 0
      %576 = vmatprep.subr.bf16.mxu0 %v480
      %577 = vmatpush1.bf16.msra.mxu0 %v477
      %578 = vmatprep.subr.bf16.mxu0 %v447
      %579 = vmatpush1.bf16.msra.mxu0 %v446
      %580 = vmatprep.subr.bf16.mxu0 0
      %581 = vmatpush2.bf16.msra.mxu0 0
      %582 = vmatprep.subr.bf16.mxu0 0
      %583 = vmatpush2.bf16.msra.mxu0 0
      %584 = vmatprep.subr.bf16.mxu0 0
      %585 = vmatpush2.bf16.msra.mxu0 0
      %586 = vmatprep.subr.bf16.mxu0 0
      %587 = vmatpush2.bf16.msra.mxu0 0
      %588 = vmatprep.subr.bf16.mxu0 0
      %589 = vmatpush2.bf16.msra.mxu0 0
      %590 = vmatprep.subr.bf16.mxu0 0
      %591 = vmatpush2.bf16.msra.mxu0 0
      %592 = vmatprep.subr.bf16.mxu0 0
      %593 = vmatpush2.bf16.msra.mxu0 0
      %594 = vmatprep.subr.bf16.mxu0 0
      %595 = vmatpush2.bf16.msra.mxu0 0
      %596 = vmatprep.mubr.bf16.mxu0 0
      %597 = vmatmul.mubr.bf16.gmra.mxu0 %v462
      %v598 = vpop.f32.mrf.mxu0
      %v599 = vadd.f32 0.0, %v598
      %v600 = vpop.f32.mrf.mxu0
      %v601 = vadd.f32 0.0, %v600
      %v602 = vpop.f32.mrf.mxu0
      %v603 = vpop.f32.mrf.mxu0
      %604 = vdwg.mxu0
      %v606 = vsel %vm460, %v400, 0
      %v609 = vsel %vm375, %v369, 0
      %v612 = vsel %vm375, %v370, 0
      %v615 = vsel %vm375, %v371, 0
      %v618 = vsel %vm375, %v372, 0
      %v621 = vsel %vm375, %v373, 0
      %v624 = vsel %vm375, %v374, 0
      %626 = vmatprep.subr.bf16.mxu0 0
      %627 = vmatpush1.bf16.msra.mxu0 0
      %628 = vmatprep.subr.bf16.mxu0 0
      %629 = vmatpush1.bf16.msra.mxu0 0
      %630 = vmatprep.subr.bf16.mxu0 0
      %631 = vmatpush1.bf16.msra.mxu0 0
      %632 = vmatprep.subr.bf16.mxu0 0
      %633 = vmatpush1.bf16.msra.mxu0 0
      %634 = vmatprep.subr.bf16.mxu0 0
      %635 = vmatpush1.bf16.msra.mxu0 0
      %636 = vmatprep.subr.bf16.mxu0 0
      %637 = vmatpush1.bf16.msra.mxu0 0
      %638 = vmatprep.subr.bf16.mxu0 %v612
      %639 = vmatpush1.bf16.msra.mxu0 %v609
      %640 = vmatprep.subr.bf16.mxu0 %v382
      %641 = vmatpush1.bf16.msra.mxu0 %v378
      %642 = vmatprep.subr.bf16.mxu0 0
      %643 = vmatpush2.bf16.msra.mxu0 0
      %644 = vmatprep.subr.bf16.mxu0 0
      %645 = vmatpush2.bf16.msra.mxu0 0
      %646 = vmatprep.subr.bf16.mxu0 0
      %647 = vmatpush2.bf16.msra.mxu0 0
      %648 = vmatprep.subr.bf16.mxu0 0
      %649 = vmatpush2.bf16.msra.mxu0 0
      %650 = vmatprep.subr.bf16.mxu0 0
      %651 = vmatpush2.bf16.msra.mxu0 0
      %652 = vmatprep.subr.bf16.mxu0 0
      %653 = vmatpush2.bf16.msra.mxu0 0
      %654 = vmatprep.subr.bf16.mxu0 0
      %655 = vmatpush2.bf16.msra.mxu0 0
      %656 = vmatprep.subr.bf16.mxu0 0
      %657 = vmatpush2.bf16.msra.mxu0 0
      %658 = vmatprep.mubr.bf16.mxu0 0
      %659 = vmatmul.mubr.bf16.gmra.mxu0 %v606
      %v660 = vpop.f32.mrf.mxu0
      %v661 = vadd.f32 %v517, %v660
      %v662 = vpop.f32.mrf.mxu0
      %v663 = vadd.f32 %v519, %v662
      %v664 = vpop.f32.mrf.mxu0
      %v665 = vpop.f32.mrf.mxu0
      %666 = vdwg.mxu0
      %667 = vmatprep.subr.bf16.mxu0 0
      %668 = vmatpush1.bf16.msra.mxu0 0
      %669 = vmatprep.subr.bf16.mxu0 0
      %670 = vmatpush1.bf16.msra.mxu0 0
      %671 = vmatprep.subr.bf16.mxu0 0
      %672 = vmatpush1.bf16.msra.mxu0 0
      %673 = vmatprep.subr.bf16.mxu0 0
      %674 = vmatpush1.bf16.msra.mxu0 0
      %675 = vmatprep.subr.bf16.mxu0 0
      %676 = vmatpush1.bf16.msra.mxu0 0
      %677 = vmatprep.subr.bf16.mxu0 0
      %678 = vmatpush1.bf16.msra.mxu0 0
      %679 = vmatprep.subr.bf16.mxu0 %v618
      %680 = vmatpush1.bf16.msra.mxu0 %v615
      %681 = vmatprep.subr.bf16.mxu0 %v390
      %682 = vmatpush1.bf16.msra.mxu0 %v386
      %683 = vmatprep.subr.bf16.mxu0 0
      %684 = vmatpush2.bf16.msra.mxu0 0
      %685 = vmatprep.subr.bf16.mxu0 0
      %686 = vmatpush2.bf16.msra.mxu0 0
      %687 = vmatprep.subr.bf16.mxu0 0
      %688 = vmatpush2.bf16.msra.mxu0 0
      %689 = vmatprep.subr.bf16.mxu0 0
      %690 = vmatpush2.bf16.msra.mxu0 0
      %691 = vmatprep.subr.bf16.mxu0 0
      %692 = vmatpush2.bf16.msra.mxu0 0
      %693 = vmatprep.subr.bf16.mxu0 0
      %694 = vmatpush2.bf16.msra.mxu0 0
      %695 = vmatprep.subr.bf16.mxu0 0
      %696 = vmatpush2.bf16.msra.mxu0 0
      %697 = vmatprep.subr.bf16.mxu0 0
      %698 = vmatpush2.bf16.msra.mxu0 0
      %699 = vmatprep.mubr.bf16.mxu0 0
      %700 = vmatmul.mubr.bf16.gmra.mxu0 %v606
      %v701 = vpop.f32.mrf.mxu0
      %v702 = vadd.f32 %v558, %v701
      %v703 = vpop.f32.mrf.mxu0
      %v704 = vadd.f32 %v560, %v703
      %v705 = vpop.f32.mrf.mxu0
      %v706 = vpop.f32.mrf.mxu0
      %707 = vdwg.mxu0
      %708 = vmatprep.subr.bf16.mxu0 0
      %709 = vmatpush1.bf16.msra.mxu0 0
      %710 = vmatprep.subr.bf16.mxu0 0
      %711 = vmatpush1.bf16.msra.mxu0 0
      %712 = vmatprep.subr.bf16.mxu0 0
      %713 = vmatpush1.bf16.msra.mxu0 0
      %714 = vmatprep.subr.bf16.mxu0 0
      %715 = vmatpush1.bf16.msra.mxu0 0
      %716 = vmatprep.subr.bf16.mxu0 0
      %717 = vmatpush1.bf16.msra.mxu0 0
      %718 = vmatprep.subr.bf16.mxu0 0
      %719 = vmatpush1.bf16.msra.mxu0 0
      %720 = vmatprep.subr.bf16.mxu0 %v624
      %721 = vmatpush1.bf16.msra.mxu0 %v621
      %722 = vmatprep.subr.bf16.mxu0 %v398
      %723 = vmatpush1.bf16.msra.mxu0 %v394
      %724 = vmatprep.subr.bf16.mxu0 0
      %725 = vmatpush2.bf16.msra.mxu0 0
      %726 = vmatprep.subr.bf16.mxu0 0
      %727 = vmatpush2.bf16.msra.mxu0 0
      %728 = vmatprep.subr.bf16.mxu0 0
      %729 = vmatpush2.bf16.msra.mxu0 0
      %730 = vmatprep.subr.bf16.mxu0 0
      %731 = vmatpush2.bf16.msra.mxu0 0
      %732 = vmatprep.subr.bf16.mxu0 0
      %733 = vmatpush2.bf16.msra.mxu0 0
      %734 = vmatprep.subr.bf16.mxu0 0
      %735 = vmatpush2.bf16.msra.mxu0 0
      %736 = vmatprep.subr.bf16.mxu0 0
      %737 = vmatpush2.bf16.msra.mxu0 0
      %738 = vmatprep.subr.bf16.mxu0 0
      %739 = vmatpush2.bf16.msra.mxu0 0
      %740 = vmatprep.mubr.bf16.mxu0 0
      %741 = vmatmul.mubr.bf16.gmra.mxu0 %v606
      %v742 = vpop.f32.mrf.mxu0
      %v743 = vadd.f32 %v599, %v742
      %v744 = vpop.f32.mrf.mxu0
      %v745 = vadd.f32 %v601, %v744
      %v746 = vpop.f32.mrf.mxu0
      %v747 = vpop.f32.mrf.mxu0
      %748 = vdwg.mxu0
      %s749 = scalar_lea.vmem %s2, 8
      %v750 = vld [vmem:[%s749] sm:$0xf]
      %751 = vrot.lane.b32.xlu0 %v378, 104
      %v752 = vpop.permute.xlu0 %751
      %753 = vrot.lane.b32.xlu0 %v382, 104
      %v754 = vpop.permute.xlu0 %753
      %755 = vrot.lane.b32.xlu0 %v386, 104
      %v756 = vpop.permute.xlu0 %755
      %757 = vrot.lane.b32.xlu0 %v390, 104
      %v758 = vpop.permute.xlu0 %757
      %759 = vrot.lane.b32.xlu0 %v394, 104
      %v760 = vpop.permute.xlu0 %759
      %761 = vrot.lane.b32.xlu0 %v398, 104
      %v762 = vpop.permute.xlu0 %761
      %763 = vrot.lane.b32.xlu0 %v403, 104
      %v764 = vpop.permute.xlu0 %763
      %765 = vrot.lane.b32.xlu0 %v369, 104
      %v766 = vpop.permute.xlu0 %765
      %767 = vrot.lane.b32.xlu0 %v370, 104
      %v768 = vpop.permute.xlu0 %767
      %769 = vrot.lane.b32.xlu0 %v371, 104
      %v770 = vpop.permute.xlu0 %769
      %771 = vrot.lane.b32.xlu0 %v372, 104
      %v772 = vpop.permute.xlu0 %771
      %773 = vrot.lane.b32.xlu0 %v373, 104
      %v774 = vpop.permute.xlu0 %773
      %775 = vrot.lane.b32.xlu0 %v374, 104
      %v776 = vpop.permute.xlu0 %775
      %777 = vrot.lane.b32.xlu0 %v367, 104
      %v778 = vpop.permute.xlu0 %777
      %vm779 = vcmask 850944
      %v780 = vsel %vm779, %v752, %v754
      %v781 = vsel %vm779, %v754, %v756
      %v782 = vsel %vm779, %v756, %v758
      %v783 = vsel %vm779, %v758, %v760
      %v784 = vsel %vm779, %v760, %v762
      %v785 = vsel %vm779, %v762, %v764
      %v786 = vsel %vm779, %v766, %v768
      %v787 = vsel %vm779, %v768, %v770
      %v788 = vsel %vm779, %v770, %v772
      %v789 = vsel %vm779, %v772, %v774
      %v790 = vsel %vm779, %v774, %v776
      %v791 = vsel %vm779, %v776, %v778
      %v799 = vsel %vm460, %v750, 0
      %v802 = vsel %vm375, %v786, 0
      %v805 = vsel %vm375, %v787, 0
      %v808 = vsel %vm375, %v788, 0
      %v811 = vsel %vm375, %v789, 0
      %v814 = vsel %vm375, %v790, 0
      %v817 = vsel %vm375, %v791, 0
      %819 = vmatprep.subr.bf16.mxu0 0
      %820 = vmatpush1.bf16.msra.mxu0 0
      %821 = vmatprep.subr.bf16.mxu0 0
      %822 = vmatpush1.bf16.msra.mxu0 0
      %823 = vmatprep.subr.bf16.mxu0 0
      %824 = vmatpush1.bf16.msra.mxu0 0
      %825 = vmatprep.subr.bf16.mxu0 0
      %826 = vmatpush1.bf16.msra.mxu0 0
      %827 = vmatprep.subr.bf16.mxu0 0
      %828 = vmatpush1.bf16.msra.mxu0 0
      %829 = vmatprep.subr.bf16.mxu0 0
      %830 = vmatpush1.bf16.msra.mxu0 0
      %831 = vmatprep.subr.bf16.mxu0 %v805
      %832 = vmatpush1.bf16.msra.mxu0 %v802
      %833 = vmatprep.subr.bf16.mxu0 %v781
      %834 = vmatpush1.bf16.msra.mxu0 %v780
      %835 = vmatprep.subr.bf16.mxu0 0
      %836 = vmatpush2.bf16.msra.mxu0 0
      %837 = vmatprep.subr.bf16.mxu0 0
      %838 = vmatpush2.bf16.msra.mxu0 0
      %839 = vmatprep.subr.bf16.mxu0 0
      %840 = vmatpush2.bf16.msra.mxu0 0
      %841 = vmatprep.subr.bf16.mxu0 0
      %842 = vmatpush2.bf16.msra.mxu0 0
      %843 = vmatprep.subr.bf16.mxu0 0
      %844 = vmatpush2.bf16.msra.mxu0 0
      %845 = vmatprep.subr.bf16.mxu0 0
      %846 = vmatpush2.bf16.msra.mxu0 0
      %847 = vmatprep.subr.bf16.mxu0 0
      %848 = vmatpush2.bf16.msra.mxu0 0
      %849 = vmatprep.subr.bf16.mxu0 0
      %850 = vmatpush2.bf16.msra.mxu0 0
      %851 = vmatprep.mubr.bf16.mxu0 0
      %852 = vmatmul.mubr.bf16.gmra.mxu0 %v799
      %v853 = vpop.f32.mrf.mxu0
      %v854 = vadd.f32 0.0, %v853
      %v855 = vpop.f32.mrf.mxu0
      %v856 = vadd.f32 0.0, %v855
      %v857 = vpop.f32.mrf.mxu0
      %v858 = vpop.f32.mrf.mxu0
      %859 = vdwg.mxu0
      %860 = vmatprep.subr.bf16.mxu0 0
      %861 = vmatpush1.bf16.msra.mxu0 0
      %862 = vmatprep.subr.bf16.mxu0 0
      %863 = vmatpush1.bf16.msra.mxu0 0
      %864 = vmatprep.subr.bf16.mxu0 0
      %865 = vmatpush1.bf16.msra.mxu0 0
      %866 = vmatprep.subr.bf16.mxu0 0
      %867 = vmatpush1.bf16.msra.mxu0 0
      %868 = vmatprep.subr.bf16.mxu0 0
      %869 = vmatpush1.bf16.msra.mxu0 0
      %870 = vmatprep.subr.bf16.mxu0 0
      %871 = vmatpush1.bf16.msra.mxu0 0
      %872 = vmatprep.subr.bf16.mxu0 %v811
      %873 = vmatpush1.bf16.msra.mxu0 %v808
      %874 = vmatprep.subr.bf16.mxu0 %v783
      %875 = vmatpush1.bf16.msra.mxu0 %v782
      %876 = vmatprep.subr.bf16.mxu0 0
      %877 = vmatpush2.bf16.msra.mxu0 0
      %878 = vmatprep.subr.bf16.mxu0 0
      %879 = vmatpush2.bf16.msra.mxu0 0
      %880 = vmatprep.subr.bf16.mxu0 0
      %881 = vmatpush2.bf16.msra.mxu0 0
      %882 = vmatprep.subr.bf16.mxu0 0
      %883 = vmatpush2.bf16.msra.mxu0 0
      %884 = vmatprep.subr.bf16.mxu0 0
      %885 = vmatpush2.bf16.msra.mxu0 0
      %886 = vmatprep.subr.bf16.mxu0 0
      %887 = vmatpush2.bf16.msra.mxu0 0
      %888 = vmatprep.subr.bf16.mxu0 0
      %889 = vmatpush2.bf16.msra.mxu0 0
      %890 = vmatprep.subr.bf16.mxu0 0
      %891 = vmatpush2.bf16.msra.mxu0 0
      %892 = vmatprep.mubr.bf16.mxu0 0
      %893 = vmatmul.mubr.bf16.gmra.mxu0 %v799
      %v894 = vpop.f32.mrf.mxu0
      %v895 = vadd.f32 0.0, %v894
      %v896 = vpop.f32.mrf.mxu0
      %v897 = vadd.f32 0.0, %v896
      %v898 = vpop.f32.mrf.mxu0
      %v899 = vpop.f32.mrf.mxu0
      %900 = vdwg.mxu0
      %901 = vmatprep.subr.bf16.mxu0 0
      %902 = vmatpush1.bf16.msra.mxu0 0
      %903 = vmatprep.subr.bf16.mxu0 0
      %904 = vmatpush1.bf16.msra.mxu0 0
      %905 = vmatprep.subr.bf16.mxu0 0
      %906 = vmatpush1.bf16.msra.mxu0 0
      %907 = vmatprep.subr.bf16.mxu0 0
      %908 = vmatpush1.bf16.msra.mxu0 0
      %909 = vmatprep.subr.bf16.mxu0 0
      %910 = vmatpush1.bf16.msra.mxu0 0
      %911 = vmatprep.subr.bf16.mxu0 0
      %912 = vmatpush1.bf16.msra.mxu0 0
      %913 = vmatprep.subr.bf16.mxu0 %v817
      %914 = vmatpush1.bf16.msra.mxu0 %v814
      %915 = vmatprep.subr.bf16.mxu0 %v785
      %916 = vmatpush1.bf16.msra.mxu0 %v784
      %917 = vmatprep.subr.bf16.mxu0 0
      %918 = vmatpush2.bf16.msra.mxu0 0
      %919 = vmatprep.subr.bf16.mxu0 0
      %920 = vmatpush2.bf16.msra.mxu0 0
      %921 = vmatprep.subr.bf16.mxu0 0
      %922 = vmatpush2.bf16.msra.mxu0 0
      %923 = vmatprep.subr.bf16.mxu0 0
      %924 = vmatpush2.bf16.msra.mxu0 0
      %925 = vmatprep.subr.bf16.mxu0 0
      %926 = vmatpush2.bf16.msra.mxu0 0
      %927 = vmatprep.subr.bf16.mxu0 0
      %928 = vmatpush2.bf16.msra.mxu0 0
      %929 = vmatprep.subr.bf16.mxu0 0
      %930 = vmatpush2.bf16.msra.mxu0 0
      %931 = vmatprep.subr.bf16.mxu0 0
      %932 = vmatpush2.bf16.msra.mxu0 0
      %933 = vmatprep.mubr.bf16.mxu0 0
      %934 = vmatmul.mubr.bf16.gmra.mxu0 %v799
      %v935 = vpop.f32.mrf.mxu0
      %v936 = vadd.f32 0.0, %v935
      %v937 = vpop.f32.mrf.mxu0
      %v938 = vadd.f32 0.0, %v937
      %v939 = vpop.f32.mrf.mxu0
      %v940 = vpop.f32.mrf.mxu0
      %941 = vdwg.mxu0
      %v942 = vadd.f32 %v661, %v854
      %v943 = vadd.f32 %v663, %v856
      %v944 = vadd.f32 %v702, %v895
      %v945 = vadd.f32 %v704, %v897
      %v946 = vadd.f32 %v743, %v936
      %v947 = vadd.f32 %v745, %v938
      %v948 = vrot.slane %v324, 4
      %949 = vrot.lane.b32.xlu0 %v948, 127
      %v950 = vpop.permute.xlu0 %949
      %v951 = vsel %vm347, %v346, %v950
      %952 = vrot.lane.b32.xlu0 %v324, 126
      %v953 = vpop.permute.xlu0 %952
      %v954 = vsel %vm368, %v367, %v953
      %v956 = vsel %vm375, %v323, %v951
      %v959 = vsel %vm375, %v324, %v950
      %s960 = scalar_lea.vmem %s2, 12
      %v961 = vld [vmem:[%s960] sm:$0xf]
      %964 = vrot.lane.b32.xlu0 %v382, 112
      %v965 = vpop.permute.xlu0 %964
      %966 = vrot.lane.b32.xlu0 %v386, 112
      %v967 = vpop.permute.xlu0 %966
      %968 = vrot.lane.b32.xlu0 %v390, 112
      %v969 = vpop.permute.xlu0 %968
      %970 = vrot.lane.b32.xlu0 %v394, 112
      %v971 = vpop.permute.xlu0 %970
      %972 = vrot.lane.b32.xlu0 %v398, 112
      %v973 = vpop.permute.xlu0 %972
      %974 = vrot.lane.b32.xlu0 %v956, 112
      %v975 = vpop.permute.xlu0 %974
      %976 = vrot.lane.b32.xlu0 %v959, 112
      %v977 = vpop.permute.xlu0 %976
      %978 = vrot.lane.b32.xlu0 %v370, 112
      %v979 = vpop.permute.xlu0 %978
      %980 = vrot.lane.b32.xlu0 %v371, 112
      %v981 = vpop.permute.xlu0 %980
      %982 = vrot.lane.b32.xlu0 %v372, 112
      %v983 = vpop.permute.xlu0 %982
      %984 = vrot.lane.b32.xlu0 %v373, 112
      %v985 = vpop.permute.xlu0 %984
      %986 = vrot.lane.b32.xlu0 %v374, 112
      %v987 = vpop.permute.xlu0 %986
      %988 = vrot.lane.b32.xlu0 %v954, 112
      %v989 = vpop.permute.xlu0 %988
      %990 = vrot.lane.b32.xlu0 %v953, 112
      %v991 = vpop.permute.xlu0 %990
      %vm992 = vcmask 916480
      %v993 = vsel %vm992, %v965, %v967
      %v994 = vsel %vm992, %v967, %v969
      %v995 = vsel %vm992, %v969, %v971
      %v996 = vsel %vm992, %v971, %v973
      %v997 = vsel %vm992, %v973, %v975
      %v998 = vsel %vm992, %v975, %v977
      %v999 = vsel %vm992, %v979, %v981
      %v1000 = vsel %vm992, %v981, %v983
      %v1001 = vsel %vm992, %v983, %v985
      %v1002 = vsel %vm992, %v985, %v987
      %v1003 = vsel %vm992, %v987, %v989
      %v1004 = vsel %vm992, %v989, %v991
      %v1012 = vsel %vm460, %v961, 0
      %v1015 = vsel %vm375, %v999, 0
      %v1018 = vsel %vm375, %v1000, 0
      %v1021 = vsel %vm375, %v1001, 0
      %v1024 = vsel %vm375, %v1002, 0
      %v1027 = vsel %vm375, %v1003, 0
      %v1030 = vsel %vm375, %v1004, 0
      %1032 = vmatprep.subr.bf16.mxu0 0
      %1033 = vmatpush1.bf16.msra.mxu0 0
      %1034 = vmatprep.subr.bf16.mxu0 0
      %1035 = vmatpush1.bf16.msra.mxu0 0
      %1036 = vmatprep.subr.bf16.mxu0 0
      %1037 = vmatpush1.bf16.msra.mxu0 0
      %1038 = vmatprep.subr.bf16.mxu0 0
      %1039 = vmatpush1.bf16.msra.mxu0 0
      %1040 = vmatprep.subr.bf16.mxu0 0
      %1041 = vmatpush1.bf16.msra.mxu0 0
      %1042 = vmatprep.subr.bf16.mxu0 0
      %1043 = vmatpush1.bf16.msra.mxu0 0
      %1044 = vmatprep.subr.bf16.mxu0 %v1018
      %1045 = vmatpush1.bf16.msra.mxu0 %v1015
      %1046 = vmatprep.subr.bf16.mxu0 %v994
      %1047 = vmatpush1.bf16.msra.mxu0 %v993
      %1048 = vmatprep.subr.bf16.mxu0 0
      %1049 = vmatpush2.bf16.msra.mxu0 0
      %1050 = vmatprep.subr.bf16.mxu0 0
      %1051 = vmatpush2.bf16.msra.mxu0 0
      %1052 = vmatprep.subr.bf16.mxu0 0
      %1053 = vmatpush2.bf16.msra.mxu0 0
      %1054 = vmatprep.subr.bf16.mxu0 0
      %1055 = vmatpush2.bf16.msra.mxu0 0
      %1056 = vmatprep.subr.bf16.mxu0 0
      %1057 = vmatpush2.bf16.msra.mxu0 0
      %1058 = vmatprep.subr.bf16.mxu0 0
      %1059 = vmatpush2.bf16.msra.mxu0 0
      %1060 = vmatprep.subr.bf16.mxu0 0
      %1061 = vmatpush2.bf16.msra.mxu0 0
      %1062 = vmatprep.subr.bf16.mxu0 0
      %1063 = vmatpush2.bf16.msra.mxu0 0
      %1064 = vmatprep.mubr.bf16.mxu0 0
      %1065 = vmatmul.mubr.bf16.gmra.mxu0 %v1012
      %v1066 = vpop.f32.mrf.mxu0
      %v1067 = vadd.f32 0.0, %v1066
      %v1068 = vpop.f32.mrf.mxu0
      %v1069 = vadd.f32 0.0, %v1068
      %v1070 = vpop.f32.mrf.mxu0
      %v1071 = vpop.f32.mrf.mxu0
      %1072 = vdwg.mxu0
      %1073 = vmatprep.subr.bf16.mxu0 0
      %1074 = vmatpush1.bf16.msra.mxu0 0
      %1075 = vmatprep.subr.bf16.mxu0 0
      %1076 = vmatpush1.bf16.msra.mxu0 0
      %1077 = vmatprep.subr.bf16.mxu0 0
      %1078 = vmatpush1.bf16.msra.mxu0 0
      %1079 = vmatprep.subr.bf16.mxu0 0
      %1080 = vmatpush1.bf16.msra.mxu0 0
      %1081 = vmatprep.subr.bf16.mxu0 0
      %1082 = vmatpush1.bf16.msra.mxu0 0
      %1083 = vmatprep.subr.bf16.mxu0 0
      %1084 = vmatpush1.bf16.msra.mxu0 0
      %1085 = vmatprep.subr.bf16.mxu0 %v1024
      %1086 = vmatpush1.bf16.msra.mxu0 %v1021
      %1087 = vmatprep.subr.bf16.mxu0 %v996
      %1088 = vmatpush1.bf16.msra.mxu0 %v995
      %1089 = vmatprep.subr.bf16.mxu0 0
      %1090 = vmatpush2.bf16.msra.mxu0 0
      %1091 = vmatprep.subr.bf16.mxu0 0
      %1092 = vmatpush2.bf16.msra.mxu0 0
      %1093 = vmatprep.subr.bf16.mxu0 0
      %1094 = vmatpush2.bf16.msra.mxu0 0
      %1095 = vmatprep.subr.bf16.mxu0 0
      %1096 = vmatpush2.bf16.msra.mxu0 0
      %1097 = vmatprep.subr.bf16.mxu0 0
      %1098 = vmatpush2.bf16.msra.mxu0 0
      %1099 = vmatprep.subr.bf16.mxu0 0
      %1100 = vmatpush2.bf16.msra.mxu0 0
      %1101 = vmatprep.subr.bf16.mxu0 0
      %1102 = vmatpush2.bf16.msra.mxu0 0
      %1103 = vmatprep.subr.bf16.mxu0 0
      %1104 = vmatpush2.bf16.msra.mxu0 0
      %1105 = vmatprep.mubr.bf16.mxu0 0
      %1106 = vmatmul.mubr.bf16.gmra.mxu0 %v1012
      %v1107 = vpop.f32.mrf.mxu0
      %v1108 = vadd.f32 0.0, %v1107
      %v1109 = vpop.f32.mrf.mxu0
      %v1110 = vadd.f32 0.0, %v1109
      %v1111 = vpop.f32.mrf.mxu0
      %v1112 = vpop.f32.mrf.mxu0
      %1113 = vdwg.mxu0
      %1114 = vmatprep.subr.bf16.mxu0 0
      %1115 = vmatpush1.bf16.msra.mxu0 0
      %1116 = vmatprep.subr.bf16.mxu0 0
      %1117 = vmatpush1.bf16.msra.mxu0 0
      %1118 = vmatprep.subr.bf16.mxu0 0
      %1119 = vmatpush1.bf16.msra.mxu0 0
      %1120 = vmatprep.subr.bf16.mxu0 0
      %1121 = vmatpush1.bf16.msra.mxu0 0
      %1122 = vmatprep.subr.bf16.mxu0 0
      %1123 = vmatpush1.bf16.msra.mxu0 0
      %1124 = vmatprep.subr.bf16.mxu0 0
      %1125 = vmatpush1.bf16.msra.mxu0 0
      %1126 = vmatprep.subr.bf16.mxu0 %v1030
      %1127 = vmatpush1.bf16.msra.mxu0 %v1027
      %1128 = vmatprep.subr.bf16.mxu0 %v998
      %1129 = vmatpush1.bf16.msra.mxu0 %v997
      %1130 = vmatprep.subr.bf16.mxu0 0
      %1131 = vmatpush2.bf16.msra.mxu0 0
      %1132 = vmatprep.subr.bf16.mxu0 0
      %1133 = vmatpush2.bf16.msra.mxu0 0
      %1134 = vmatprep.subr.bf16.mxu0 0
      %1135 = vmatpush2.bf16.msra.mxu0 0
      %1136 = vmatprep.subr.bf16.mxu0 0
      %1137 = vmatpush2.bf16.msra.mxu0 0
      %1138 = vmatprep.subr.bf16.mxu0 0
      %1139 = vmatpush2.bf16.msra.mxu0 0
      %1140 = vmatprep.subr.bf16.mxu0 0
      %1141 = vmatpush2.bf16.msra.mxu0 0
      %1142 = vmatprep.subr.bf16.mxu0 0
      %1143 = vmatpush2.bf16.msra.mxu0 0
      %1144 = vmatprep.subr.bf16.mxu0 0
      %1145 = vmatpush2.bf16.msra.mxu0 0
      %1146 = vmatprep.mubr.bf16.mxu0 0
      %1147 = vmatmul.mubr.bf16.gmra.mxu0 %v1012
      %v1148 = vpop.f32.mrf.mxu0
      %v1149 = vadd.f32 0.0, %v1148
      %v1150 = vpop.f32.mrf.mxu0
      %v1151 = vadd.f32 0.0, %v1150
      %v1152 = vpop.f32.mrf.mxu0
      %v1153 = vpop.f32.mrf.mxu0
      %1154 = vdwg.mxu0
      %v1155 = vadd.f32 %v942, %v1067
      %v1156 = vadd.f32 %v943, %v1069
      %v1157 = vadd.f32 %v944, %v1108
      %v1158 = vadd.f32 %v945, %v1110
      %v1159 = vadd.f32 %v946, %v1149
      %v1160 = vadd.f32 %v947, %v1151
      %s1161 = scalar_lea.vmem %s2, 16
      %v1162 = vld [vmem:[%s1161] sm:$0xf]
      %1163 = vrot.lane.b32.xlu0 %v382, 100
      %v1164 = vpop.permute.xlu0 %1163
      %1165 = vrot.lane.b32.xlu0 %v386, 100
      %v1166 = vpop.permute.xlu0 %1165
      %1167 = vrot.lane.b32.xlu0 %v390, 100
      %v1168 = vpop.permute.xlu0 %1167
      %1169 = vrot.lane.b32.xlu0 %v394, 100
      %v1170 = vpop.permute.xlu0 %1169
      %1171 = vrot.lane.b32.xlu0 %v398, 100
      %v1172 = vpop.permute.xlu0 %1171
      %1173 = vrot.lane.b32.xlu0 %v956, 100
      %v1174 = vpop.permute.xlu0 %1173
      %1175 = vrot.lane.b32.xlu0 %v959, 100
      %v1176 = vpop.permute.xlu0 %1175
      %1177 = vrot.lane.b32.xlu0 %v370, 100
      %v1178 = vpop.permute.xlu0 %1177
      %1179 = vrot.lane.b32.xlu0 %v371, 100
      %v1180 = vpop.permute.xlu0 %1179
      %1181 = vrot.lane.b32.xlu0 %v372, 100
      %v1182 = vpop.permute.xlu0 %1181
      %1183 = vrot.lane.b32.xlu0 %v373, 100
      %v1184 = vpop.permute.xlu0 %1183
      %1185 = vrot.lane.b32.xlu0 %v374, 100
      %v1186 = vpop.permute.xlu0 %1185
      %1187 = vrot.lane.b32.xlu0 %v954, 100
      %v1188 = vpop.permute.xlu0 %1187
      %1189 = vrot.lane.b32.xlu0 %v953, 100
      %v1190 = vpop.permute.xlu0 %1189
      %vm1191 = vcmask 818176
      %v1192 = vsel %vm1191, %v1164, %v1166
      %v1193 = vsel %vm1191, %v1166, %v1168
      %v1194 = vsel %vm1191, %v1168, %v1170
      %v1195 = vsel %vm1191, %v1170, %v1172
      %v1196 = vsel %vm1191, %v1172, %v1174
      %v1197 = vsel %vm1191, %v1174, %v1176
      %v1198 = vsel %vm1191, %v1178, %v1180
      %v1199 = vsel %vm1191, %v1180, %v1182
      %v1200 = vsel %vm1191, %v1182, %v1184
      %v1201 = vsel %vm1191, %v1184, %v1186
      %v1202 = vsel %vm1191, %v1186, %v1188
      %v1203 = vsel %vm1191, %v1188, %v1190
      %v1211 = vsel %vm460, %v1162, 0
      %v1214 = vsel %vm375, %v1198, 0
      %v1217 = vsel %vm375, %v1199, 0
      %v1220 = vsel %vm375, %v1200, 0
      %v1223 = vsel %vm375, %v1201, 0
      %v1226 = vsel %vm375, %v1202, 0
      %v1229 = vsel %vm375, %v1203, 0
      %1231 = vmatprep.subr.bf16.mxu0 0
      %1232 = vmatpush1.bf16.msra.mxu0 0
      %1233 = vmatprep.subr.bf16.mxu0 0
      %1234 = vmatpush1.bf16.msra.mxu0 0
      %1235 = vmatprep.subr.bf16.mxu0 0
      %1236 = vmatpush1.bf16.msra.mxu0 0
      %1237 = vmatprep.subr.bf16.mxu0 0
      %1238 = vmatpush1.bf16.msra.mxu0 0
      %1239 = vmatprep.subr.bf16.mxu0 0
      %1240 = vmatpush1.bf16.msra.mxu0 0
      %1241 = vmatprep.subr.bf16.mxu0 0
      %1242 = vmatpush1.bf16.msra.mxu0 0
      %1243 = vmatprep.subr.bf16.mxu0 %v1217
      %1244 = vmatpush1.bf16.msra.mxu0 %v1214
      %1245 = vmatprep.subr.bf16.mxu0 %v1193
      %1246 = vmatpush1.bf16.msra.mxu0 %v1192
      %1247 = vmatprep.subr.bf16.mxu0 0
      %1248 = vmatpush2.bf16.msra.mxu0 0
      %1249 = vmatprep.subr.bf16.mxu0 0
      %1250 = vmatpush2.bf16.msra.mxu0 0
      %1251 = vmatprep.subr.bf16.mxu0 0
      %1252 = vmatpush2.bf16.msra.mxu0 0
      %1253 = vmatprep.subr.bf16.mxu0 0
      %1254 = vmatpush2.bf16.msra.mxu0 0
      %1255 = vmatprep.subr.bf16.mxu0 0
      %1256 = vmatpush2.bf16.msra.mxu0 0
      %1257 = vmatprep.subr.bf16.mxu0 0
      %1258 = vmatpush2.bf16.msra.mxu0 0
      %1259 = vmatprep.subr.bf16.mxu0 0
      %1260 = vmatpush2.bf16.msra.mxu0 0
      %1261 = vmatprep.subr.bf16.mxu0 0
      %1262 = vmatpush2.bf16.msra.mxu0 0
      %1263 = vmatprep.mubr.bf16.mxu0 0
      %1264 = vmatmul.mubr.bf16.gmra.mxu0 %v1211
      %v1265 = vpop.f32.mrf.mxu0
      %v1266 = vadd.f32 0.0, %v1265
      %v1267 = vpop.f32.mrf.mxu0
      %v1268 = vadd.f32 0.0, %v1267
      %v1269 = vpop.f32.mrf.mxu0
      %v1270 = vpop.f32.mrf.mxu0
      %1271 = vdwg.mxu0
      %1272 = vmatprep.subr.bf16.mxu0 0
      %1273 = vmatpush1.bf16.msra.mxu0 0
      %1274 = vmatprep.subr.bf16.mxu0 0
      %1275 = vmatpush1.bf16.msra.mxu0 0
      %1276 = vmatprep.subr.bf16.mxu0 0
      %1277 = vmatpush1.bf16.msra.mxu0 0
      %1278 = vmatprep.subr.bf16.mxu0 0
      %1279 = vmatpush1.bf16.msra.mxu0 0
      %1280 = vmatprep.subr.bf16.mxu0 0
      %1281 = vmatpush1.bf16.msra.mxu0 0
      %1282 = vmatprep.subr.bf16.mxu0 0
      %1283 = vmatpush1.bf16.msra.mxu0 0
      %1284 = vmatprep.subr.bf16.mxu0 %v1223
      %1285 = vmatpush1.bf16.msra.mxu0 %v1220
      %1286 = vmatprep.subr.bf16.mxu0 %v1195
      %1287 = vmatpush1.bf16.msra.mxu0 %v1194
      %1288 = vmatprep.subr.bf16.mxu0 0
      %1289 = vmatpush2.bf16.msra.mxu0 0
      %1290 = vmatprep.subr.bf16.mxu0 0
      %1291 = vmatpush2.bf16.msra.mxu0 0
      %1292 = vmatprep.subr.bf16.mxu0 0
      %1293 = vmatpush2.bf16.msra.mxu0 0
      %1294 = vmatprep.subr.bf16.mxu0 0
      %1295 = vmatpush2.bf16.msra.mxu0 0
      %1296 = vmatprep.subr.bf16.mxu0 0
      %1297 = vmatpush2.bf16.msra.mxu0 0
      %1298 = vmatprep.subr.bf16.mxu0 0
      %1299 = vmatpush2.bf16.msra.mxu0 0
      %1300 = vmatprep.subr.bf16.mxu0 0
      %1301 = vmatpush2.bf16.msra.mxu0 0
      %1302 = vmatprep.subr.bf16.mxu0 0
      %1303 = vmatpush2.bf16.msra.mxu0 0
      %1304 = vmatprep.mubr.bf16.mxu0 0
      %1305 = vmatmul.mubr.bf16.gmra.mxu0 %v1211
      %v1306 = vpop.f32.mrf.mxu0
      %v1307 = vadd.f32 0.0, %v1306
      %v1308 = vpop.f32.mrf.mxu0
      %v1309 = vadd.f32 0.0, %v1308
      %v1310 = vpop.f32.mrf.mxu0
      %v1311 = vpop.f32.mrf.mxu0
      %1312 = vdwg.mxu0
      %1313 = vmatprep.subr.bf16.mxu0 0
      %1314 = vmatpush1.bf16.msra.mxu0 0
      %1315 = vmatprep.subr.bf16.mxu0 0
      %1316 = vmatpush1.bf16.msra.mxu0 0
      %1317 = vmatprep.subr.bf16.mxu0 0
      %1318 = vmatpush1.bf16.msra.mxu0 0
      %1319 = vmatprep.subr.bf16.mxu0 0
      %1320 = vmatpush1.bf16.msra.mxu0 0
      %1321 = vmatprep.subr.bf16.mxu0 0
      %1322 = vmatpush1.bf16.msra.mxu0 0
      %1323 = vmatprep.subr.bf16.mxu0 0
      %1324 = vmatpush1.bf16.msra.mxu0 0
      %1325 = vmatprep.subr.bf16.mxu0 %v1229
      %1326 = vmatpush1.bf16.msra.mxu0 %v1226
      %1327 = vmatprep.subr.bf16.mxu0 %v1197
      %1328 = vmatpush1.bf16.msra.mxu0 %v1196
      %1329 = vmatprep.subr.bf16.mxu0 0
      %1330 = vmatpush2.bf16.msra.mxu0 0
      %1331 = vmatprep.subr.bf16.mxu0 0
      %1332 = vmatpush2.bf16.msra.mxu0 0
      %1333 = vmatprep.subr.bf16.mxu0 0
      %1334 = vmatpush2.bf16.msra.mxu0 0
      %1335 = vmatprep.subr.bf16.mxu0 0
      %1336 = vmatpush2.bf16.msra.mxu0 0
      %1337 = vmatprep.subr.bf16.mxu0 0
      %1338 = vmatpush2.bf16.msra.mxu0 0
      %1339 = vmatprep.subr.bf16.mxu0 0
      %1340 = vmatpush2.bf16.msra.mxu0 0
      %1341 = vmatprep.subr.bf16.mxu0 0
      %1342 = vmatpush2.bf16.msra.mxu0 0
      %1343 = vmatprep.subr.bf16.mxu0 0
      %1344 = vmatpush2.bf16.msra.mxu0 0
      %1345 = vmatprep.mubr.bf16.mxu0 0
      %1346 = vmatmul.mubr.bf16.gmra.mxu0 %v1211
      %v1347 = vpop.f32.mrf.mxu0
      %v1348 = vadd.f32 0.0, %v1347
      %v1349 = vpop.f32.mrf.mxu0
      %v1350 = vadd.f32 0.0, %v1349
      %v1351 = vpop.f32.mrf.mxu0
      %v1352 = vpop.f32.mrf.mxu0
      %1353 = vdwg.mxu0
      %v1354 = vadd.f32 %v1155, %v1266
      %v1355 = vadd.f32 %v1156, %v1268
      %v1356 = vadd.f32 %v1157, %v1307
      %v1357 = vadd.f32 %v1158, %v1309
      %v1358 = vadd.f32 %v1159, %v1348
      %v1359 = vadd.f32 %v1160, %v1350
      %s1360 = scalar_lea.vmem %s2, 20
      %v1361 = vld [vmem:[%s1360] sm:$0xf]
      %1362 = vrot.lane.b32.xlu0 %v382, 88
      %v1363 = vpop.permute.xlu0 %1362
      %1364 = vrot.lane.b32.xlu0 %v386, 88
      %v1365 = vpop.permute.xlu0 %1364
      %1366 = vrot.lane.b32.xlu0 %v390, 88
      %v1367 = vpop.permute.xlu0 %1366
      %1368 = vrot.lane.b32.xlu0 %v394, 88
      %v1369 = vpop.permute.xlu0 %1368
      %1370 = vrot.lane.b32.xlu0 %v398, 88
      %v1371 = vpop.permute.xlu0 %1370
      %1372 = vrot.lane.b32.xlu0 %v956, 88
      %v1373 = vpop.permute.xlu0 %1372
      %1374 = vrot.lane.b32.xlu0 %v959, 88
      %v1375 = vpop.permute.xlu0 %1374
      %1376 = vrot.lane.b32.xlu0 %v370, 88
      %v1377 = vpop.permute.xlu0 %1376
      %1378 = vrot.lane.b32.xlu0 %v371, 88
      %v1379 = vpop.permute.xlu0 %1378
      %1380 = vrot.lane.b32.xlu0 %v372, 88
      %v1381 = vpop.permute.xlu0 %1380
      %1382 = vrot.lane.b32.xlu0 %v373, 88
      %v1383 = vpop.permute.xlu0 %1382
      %1384 = vrot.lane.b32.xlu0 %v374, 88
      %v1385 = vpop.permute.xlu0 %1384
      %1386 = vrot.lane.b32.xlu0 %v954, 88
      %v1387 = vpop.permute.xlu0 %1386
      %1388 = vrot.lane.b32.xlu0 %v953, 88
      %v1389 = vpop.permute.xlu0 %1388
      %vm1390 = vcmask 719872
      %v1391 = vsel %vm1390, %v1363, %v1365
      %v1392 = vsel %vm1390, %v1365, %v1367
      %v1393 = vsel %vm1390, %v1367, %v1369
      %v1394 = vsel %vm1390, %v1369, %v1371
      %v1395 = vsel %vm1390, %v1371, %v1373
      %v1396 = vsel %vm1390, %v1373, %v1375
      %v1397 = vsel %vm1390, %v1377, %v1379
      %v1398 = vsel %vm1390, %v1379, %v1381
      %v1399 = vsel %vm1390, %v1381, %v1383
      %v1400 = vsel %vm1390, %v1383, %v1385
      %v1401 = vsel %vm1390, %v1385, %v1387
      %v1402 = vsel %vm1390, %v1387, %v1389
      %v1410 = vsel %vm460, %v1361, 0
      %v1413 = vsel %vm375, %v1397, 0
      %v1416 = vsel %vm375, %v1398, 0
      %v1419 = vsel %vm375, %v1399, 0
      %v1422 = vsel %vm375, %v1400, 0
      %v1425 = vsel %vm375, %v1401, 0
      %v1428 = vsel %vm375, %v1402, 0
      %1430 = vmatprep.subr.bf16.mxu0 0
      %1431 = vmatpush1.bf16.msra.mxu0 0
      %1432 = vmatprep.subr.bf16.mxu0 0
      %1433 = vmatpush1.bf16.msra.mxu0 0
      %1434 = vmatprep.subr.bf16.mxu0 0
      %1435 = vmatpush1.bf16.msra.mxu0 0
      %1436 = vmatprep.subr.bf16.mxu0 0
      %1437 = vmatpush1.bf16.msra.mxu0 0
      %1438 = vmatprep.subr.bf16.mxu0 0
      %1439 = vmatpush1.bf16.msra.mxu0 0
      %1440 = vmatprep.subr.bf16.mxu0 0
      %1441 = vmatpush1.bf16.msra.mxu0 0
      %1442 = vmatprep.subr.bf16.mxu0 %v1416
      %1443 = vmatpush1.bf16.msra.mxu0 %v1413
      %1444 = vmatprep.subr.bf16.mxu0 %v1392
      %1445 = vmatpush1.bf16.msra.mxu0 %v1391
      %1446 = vmatprep.subr.bf16.mxu0 0
      %1447 = vmatpush2.bf16.msra.mxu0 0
      %1448 = vmatprep.subr.bf16.mxu0 0
      %1449 = vmatpush2.bf16.msra.mxu0 0
      %1450 = vmatprep.subr.bf16.mxu0 0
      %1451 = vmatpush2.bf16.msra.mxu0 0
      %1452 = vmatprep.subr.bf16.mxu0 0
      %1453 = vmatpush2.bf16.msra.mxu0 0
      %1454 = vmatprep.subr.bf16.mxu0 0
      %1455 = vmatpush2.bf16.msra.mxu0 0
      %1456 = vmatprep.subr.bf16.mxu0 0
      %1457 = vmatpush2.bf16.msra.mxu0 0
      %1458 = vmatprep.subr.bf16.mxu0 0
      %1459 = vmatpush2.bf16.msra.mxu0 0
      %1460 = vmatprep.subr.bf16.mxu0 0
      %1461 = vmatpush2.bf16.msra.mxu0 0
      %1462 = vmatprep.mubr.bf16.mxu0 0
      %1463 = vmatmul.mubr.bf16.gmra.mxu0 %v1410
      %v1464 = vpop.f32.mrf.mxu0
      %v1465 = vadd.f32 0.0, %v1464
      %v1466 = vpop.f32.mrf.mxu0
      %v1467 = vadd.f32 0.0, %v1466
      %v1468 = vpop.f32.mrf.mxu0
      %v1469 = vpop.f32.mrf.mxu0
      %1470 = vdwg.mxu0
      %1471 = vmatprep.subr.bf16.mxu0 0
      %1472 = vmatpush1.bf16.msra.mxu0 0
      %1473 = vmatprep.subr.bf16.mxu0 0
      %1474 = vmatpush1.bf16.msra.mxu0 0
      %1475 = vmatprep.subr.bf16.mxu0 0
      %1476 = vmatpush1.bf16.msra.mxu0 0
      %1477 = vmatprep.subr.bf16.mxu0 0
      %1478 = vmatpush1.bf16.msra.mxu0 0
      %1479 = vmatprep.subr.bf16.mxu0 0
      %1480 = vmatpush1.bf16.msra.mxu0 0
      %1481 = vmatprep.subr.bf16.mxu0 0
      %1482 = vmatpush1.bf16.msra.mxu0 0
      %1483 = vmatprep.subr.bf16.mxu0 %v1422
      %1484 = vmatpush1.bf16.msra.mxu0 %v1419
      %1485 = vmatprep.subr.bf16.mxu0 %v1394
      %1486 = vmatpush1.bf16.msra.mxu0 %v1393
      %1487 = vmatprep.subr.bf16.mxu0 0
      %1488 = vmatpush2.bf16.msra.mxu0 0
      %1489 = vmatprep.subr.bf16.mxu0 0
      %1490 = vmatpush2.bf16.msra.mxu0 0
      %1491 = vmatprep.subr.bf16.mxu0 0
      %1492 = vmatpush2.bf16.msra.mxu0 0
      %1493 = vmatprep.subr.bf16.mxu0 0
      %1494 = vmatpush2.bf16.msra.mxu0 0
      %1495 = vmatprep.subr.bf16.mxu0 0
      %1496 = vmatpush2.bf16.msra.mxu0 0
      %1497 = vmatprep.subr.bf16.mxu0 0
      %1498 = vmatpush2.bf16.msra.mxu0 0
      %1499 = vmatprep.subr.bf16.mxu0 0
      %1500 = vmatpush2.bf16.msra.mxu0 0
      %1501 = vmatprep.subr.bf16.mxu0 0
      %1502 = vmatpush2.bf16.msra.mxu0 0
      %1503 = vmatprep.mubr.bf16.mxu0 0
      %1504 = vmatmul.mubr.bf16.gmra.mxu0 %v1410
      %v1505 = vpop.f32.mrf.mxu0
      %v1506 = vadd.f32 0.0, %v1505
      %v1507 = vpop.f32.mrf.mxu0
      %v1508 = vadd.f32 0.0, %v1507
      %v1509 = vpop.f32.mrf.mxu0
      %v1510 = vpop.f32.mrf.mxu0
      %1511 = vdwg.mxu0
      %1512 = vmatprep.subr.bf16.mxu0 0
      %1513 = vmatpush1.bf16.msra.mxu0 0
      %1514 = vmatprep.subr.bf16.mxu0 0
      %1515 = vmatpush1.bf16.msra.mxu0 0
      %1516 = vmatprep.subr.bf16.mxu0 0
      %1517 = vmatpush1.bf16.msra.mxu0 0
      %1518 = vmatprep.subr.bf16.mxu0 0
      %1519 = vmatpush1.bf16.msra.mxu0 0
      %1520 = vmatprep.subr.bf16.mxu0 0
      %1521 = vmatpush1.bf16.msra.mxu0 0
      %1522 = vmatprep.subr.bf16.mxu0 0
      %1523 = vmatpush1.bf16.msra.mxu0 0
      %1524 = vmatprep.subr.bf16.mxu0 %v1428
      %1525 = vmatpush1.bf16.msra.mxu0 %v1425
      %1526 = vmatprep.subr.bf16.mxu0 %v1396
      %1527 = vmatpush1.bf16.msra.mxu0 %v1395
      %1528 = vmatprep.subr.bf16.mxu0 0
      %1529 = vmatpush2.bf16.msra.mxu0 0
      %1530 = vmatprep.subr.bf16.mxu0 0
      %1531 = vmatpush2.bf16.msra.mxu0 0
      %1532 = vmatprep.subr.bf16.mxu0 0
      %1533 = vmatpush2.bf16.msra.mxu0 0
      %1534 = vmatprep.subr.bf16.mxu0 0
      %1535 = vmatpush2.bf16.msra.mxu0 0
      %1536 = vmatprep.subr.bf16.mxu0 0
      %1537 = vmatpush2.bf16.msra.mxu0 0
      %1538 = vmatprep.subr.bf16.mxu0 0
      %1539 = vmatpush2.bf16.msra.mxu0 0
      %1540 = vmatprep.subr.bf16.mxu0 0
      %1541 = vmatpush2.bf16.msra.mxu0 0
      %1542 = vmatprep.subr.bf16.mxu0 0
      %1543 = vmatpush2.bf16.msra.mxu0 0
      %1544 = vmatprep.mubr.bf16.mxu0 0
      %1545 = vmatmul.mubr.bf16.gmra.mxu0 %v1410
      %v1546 = vpop.f32.mrf.mxu0
      %v1547 = vadd.f32 0.0, %v1546
      %v1548 = vpop.f32.mrf.mxu0
      %v1549 = vadd.f32 0.0, %v1548
      %v1550 = vpop.f32.mrf.mxu0
      %v1551 = vpop.f32.mrf.mxu0
      %1552 = vdwg.mxu0
      %v1553 = vadd.f32 %v1354, %v1465
      %v1554 = vadd.f32 %v1355, %v1467
      %v1555 = vadd.f32 %v1356, %v1506
      %v1556 = vadd.f32 %v1357, %v1508
      %v1557 = vadd.f32 %v1358, %v1547
      %v1558 = vadd.f32 %v1359, %v1549
      %v1559 = vrot.slane %v325, 4
      %1560 = vrot.lane.b32.xlu0 %v1559, 127
      %v1561 = vpop.permute.xlu0 %1560
      %v1562 = vsel %vm347, %v950, %v1561
      %1563 = vrot.lane.b32.xlu0 %v325, 126
      %v1564 = vpop.permute.xlu0 %1563
      %v1565 = vsel %vm368, %v953, %v1564
      %v1567 = vsel %vm375, %v324, %v1562
      %v1570 = vsel %vm375, %v325, %v1561
      %s1571 = scalar_lea.vmem %s2, 24
      %v1572 = vld [vmem:[%s1571] sm:$0xf]
      %1575 = vrot.lane.b32.xlu0 %v386, 96
      %v1576 = vpop.permute.xlu0 %1575
      %1577 = vrot.lane.b32.xlu0 %v390, 96
      %v1578 = vpop.permute.xlu0 %1577
      %1579 = vrot.lane.b32.xlu0 %v394, 96
      %v1580 = vpop.permute.xlu0 %1579
      %1581 = vrot.lane.b32.xlu0 %v398, 96
      %v1582 = vpop.permute.xlu0 %1581
      %1583 = vrot.lane.b32.xlu0 %v956, 96
      %v1584 = vpop.permute.xlu0 %1583
      %1585 = vrot.lane.b32.xlu0 %v1567, 96
      %v1586 = vpop.permute.xlu0 %1585
      %1587 = vrot.lane.b32.xlu0 %v1570, 96
      %v1588 = vpop.permute.xlu0 %1587
      %1589 = vrot.lane.b32.xlu0 %v371, 96
      %v1590 = vpop.permute.xlu0 %1589
      %1591 = vrot.lane.b32.xlu0 %v372, 96
      %v1592 = vpop.permute.xlu0 %1591
      %1593 = vrot.lane.b32.xlu0 %v373, 96
      %v1594 = vpop.permute.xlu0 %1593
      %1595 = vrot.lane.b32.xlu0 %v374, 96
      %v1596 = vpop.permute.xlu0 %1595
      %1597 = vrot.lane.b32.xlu0 %v954, 96
      %v1598 = vpop.permute.xlu0 %1597
      %1599 = vrot.lane.b32.xlu0 %v1565, 96
      %v1600 = vpop.permute.xlu0 %1599
      %1601 = vrot.lane.b32.xlu0 %v1564, 96
      %v1602 = vpop.permute.xlu0 %1601
      %vm1603 = vcmask 785408
      %v1604 = vsel %vm1603, %v1576, %v1578
      %v1605 = vsel %vm1603, %v1578, %v1580
      %v1606 = vsel %vm1603, %v1580, %v1582
      %v1607 = vsel %vm1603, %v1582, %v1584
      %v1608 = vsel %vm1603, %v1584, %v1586
      %v1609 = vsel %vm1603, %v1586, %v1588
      %v1610 = vsel %vm1603, %v1590, %v1592
      %v1611 = vsel %vm1603, %v1592, %v1594
      %v1612 = vsel %vm1603, %v1594, %v1596
      %v1613 = vsel %vm1603, %v1596, %v1598
      %v1614 = vsel %vm1603, %v1598, %v1600
      %v1615 = vsel %vm1603, %v1600, %v1602
      %v1623 = vsel %vm460, %v1572, 0
      %v1626 = vsel %vm375, %v1610, 0
      %v1629 = vsel %vm375, %v1611, 0
      %v1632 = vsel %vm375, %v1612, 0
      %v1635 = vsel %vm375, %v1613, 0
      %v1638 = vsel %vm375, %v1614, 0
      %v1641 = vsel %vm375, %v1615, 0
      %1643 = vmatprep.subr.bf16.mxu0 0
      %1644 = vmatpush1.bf16.msra.mxu0 0
      %1645 = vmatprep.subr.bf16.mxu0 0
      %1646 = vmatpush1.bf16.msra.mxu0 0
      %1647 = vmatprep.subr.bf16.mxu0 0
      %1648 = vmatpush1.bf16.msra.mxu0 0
      %1649 = vmatprep.subr.bf16.mxu0 0
      %1650 = vmatpush1.bf16.msra.mxu0 0
      %1651 = vmatprep.subr.bf16.mxu0 0
      %1652 = vmatpush1.bf16.msra.mxu0 0
      %1653 = vmatprep.subr.bf16.mxu0 0
      %1654 = vmatpush1.bf16.msra.mxu0 0
      %1655 = vmatprep.subr.bf16.mxu0 %v1629
      %1656 = vmatpush1.bf16.msra.mxu0 %v1626
      %1657 = vmatprep.subr.bf16.mxu0 %v1605
      %1658 = vmatpush1.bf16.msra.mxu0 %v1604
      %1659 = vmatprep.subr.bf16.mxu0 0
      %1660 = vmatpush2.bf16.msra.mxu0 0
      %1661 = vmatprep.subr.bf16.mxu0 0
      %1662 = vmatpush2.bf16.msra.mxu0 0
      %1663 = vmatprep.subr.bf16.mxu0 0
      %1664 = vmatpush2.bf16.msra.mxu0 0
      %1665 = vmatprep.subr.bf16.mxu0 0
      %1666 = vmatpush2.bf16.msra.mxu0 0
      %1667 = vmatprep.subr.bf16.mxu0 0
      %1668 = vmatpush2.bf16.msra.mxu0 0
      %1669 = vmatprep.subr.bf16.mxu0 0
      %1670 = vmatpush2.bf16.msra.mxu0 0
      %1671 = vmatprep.subr.bf16.mxu0 0
      %1672 = vmatpush2.bf16.msra.mxu0 0
      %1673 = vmatprep.subr.bf16.mxu0 0
      %1674 = vmatpush2.bf16.msra.mxu0 0
      %1675 = vmatprep.mubr.bf16.mxu0 0
      %1676 = vmatmul.mubr.bf16.gmra.mxu0 %v1623
      %v1677 = vpop.f32.mrf.mxu0
      %v1678 = vadd.f32 0.0, %v1677
      %v1679 = vpop.f32.mrf.mxu0
      %v1680 = vadd.f32 0.0, %v1679
      %v1681 = vpop.f32.mrf.mxu0
      %v1682 = vpop.f32.mrf.mxu0
      %1683 = vdwg.mxu0
      %1684 = vmatprep.subr.bf16.mxu0 0
      %1685 = vmatpush1.bf16.msra.mxu0 0
      %1686 = vmatprep.subr.bf16.mxu0 0
      %1687 = vmatpush1.bf16.msra.mxu0 0
      %1688 = vmatprep.subr.bf16.mxu0 0
      %1689 = vmatpush1.bf16.msra.mxu0 0
      %1690 = vmatprep.subr.bf16.mxu0 0
      %1691 = vmatpush1.bf16.msra.mxu0 0
      %1692 = vmatprep.subr.bf16.mxu0 0
      %1693 = vmatpush1.bf16.msra.mxu0 0
      %1694 = vmatprep.subr.bf16.mxu0 0
      %1695 = vmatpush1.bf16.msra.mxu0 0
      %1696 = vmatprep.subr.bf16.mxu0 %v1635
      %1697 = vmatpush1.bf16.msra.mxu0 %v1632
      %1698 = vmatprep.subr.bf16.mxu0 %v1607
      %1699 = vmatpush1.bf16.msra.mxu0 %v1606
      %1700 = vmatprep.subr.bf16.mxu0 0
      %1701 = vmatpush2.bf16.msra.mxu0 0
      %1702 = vmatprep.subr.bf16.mxu0 0
      %1703 = vmatpush2.bf16.msra.mxu0 0
      %1704 = vmatprep.subr.bf16.mxu0 0
      %1705 = vmatpush2.bf16.msra.mxu0 0
      %1706 = vmatprep.subr.bf16.mxu0 0
      %1707 = vmatpush2.bf16.msra.mxu0 0
      %1708 = vmatprep.subr.bf16.mxu0 0
      %1709 = vmatpush2.bf16.msra.mxu0 0
      %1710 = vmatprep.subr.bf16.mxu0 0
      %1711 = vmatpush2.bf16.msra.mxu0 0
      %1712 = vmatprep.subr.bf16.mxu0 0
      %1713 = vmatpush2.bf16.msra.mxu0 0
      %1714 = vmatprep.subr.bf16.mxu0 0
      %1715 = vmatpush2.bf16.msra.mxu0 0
      %1716 = vmatprep.mubr.bf16.mxu0 0
      %1717 = vmatmul.mubr.bf16.gmra.mxu0 %v1623
      %v1718 = vpop.f32.mrf.mxu0
      %v1719 = vadd.f32 0.0, %v1718
      %v1720 = vpop.f32.mrf.mxu0
      %v1721 = vadd.f32 0.0, %v1720
      %v1722 = vpop.f32.mrf.mxu0
      %v1723 = vpop.f32.mrf.mxu0
      %1724 = vdwg.mxu0
      %1725 = vmatprep.subr.bf16.mxu0 0
      %1726 = vmatpush1.bf16.msra.mxu0 0
      %1727 = vmatprep.subr.bf16.mxu0 0
      %1728 = vmatpush1.bf16.msra.mxu0 0
      %1729 = vmatprep.subr.bf16.mxu0 0
      %1730 = vmatpush1.bf16.msra.mxu0 0
      %1731 = vmatprep.subr.bf16.mxu0 0
      %1732 = vmatpush1.bf16.msra.mxu0 0
      %1733 = vmatprep.subr.bf16.mxu0 0
      %1734 = vmatpush1.bf16.msra.mxu0 0
      %1735 = vmatprep.subr.bf16.mxu0 0
      %1736 = vmatpush1.bf16.msra.mxu0 0
      %1737 = vmatprep.subr.bf16.mxu0 %v1641
      %1738 = vmatpush1.bf16.msra.mxu0 %v1638
      %1739 = vmatprep.subr.bf16.mxu0 %v1609
      %1740 = vmatpush1.bf16.msra.mxu0 %v1608
      %1741 = vmatprep.subr.bf16.mxu0 0
      %1742 = vmatpush2.bf16.msra.mxu0 0
      %1743 = vmatprep.subr.bf16.mxu0 0
      %1744 = vmatpush2.bf16.msra.mxu0 0
      %1745 = vmatprep.subr.bf16.mxu0 0
      %1746 = vmatpush2.bf16.msra.mxu0 0
      %1747 = vmatprep.subr.bf16.mxu0 0
      %1748 = vmatpush2.bf16.msra.mxu0 0
      %1749 = vmatprep.subr.bf16.mxu0 0
      %1750 = vmatpush2.bf16.msra.mxu0 0
      %1751 = vmatprep.subr.bf16.mxu0 0
      %1752 = vmatpush2.bf16.msra.mxu0 0
      %1753 = vmatprep.subr.bf16.mxu0 0
      %1754 = vmatpush2.bf16.msra.mxu0 0
      %1755 = vmatprep.subr.bf16.mxu0 0
      %1756 = vmatpush2.bf16.msra.mxu0 0
      %1757 = vmatprep.mubr.bf16.mxu0 0
      %1758 = vmatmul.mubr.bf16.gmra.mxu0 %v1623
      %v1759 = vpop.f32.mrf.mxu0
      %v1760 = vadd.f32 0.0, %v1759
      %v1761 = vpop.f32.mrf.mxu0
      %v1762 = vadd.f32 0.0, %v1761
      %v1763 = vpop.f32.mrf.mxu0
      %v1764 = vpop.f32.mrf.mxu0
      %1765 = vdwg.mxu0
      %v1766 = vadd.f32 %v1553, %v1678
      %v1767 = vadd.f32 %v1554, %v1680
      %v1768 = vadd.f32 %v1555, %v1719
      %v1769 = vadd.f32 %v1556, %v1721
      %v1770 = vadd.f32 %v1557, %v1760
      %v1771 = vadd.f32 %v1558, %v1762
      %s1772 = scalar_lea.vmem %s2, 28
      %v1773 = vld [vmem:[%s1772] sm:$0xf]
      %1774 = vrot.lane.b32.xlu0 %v386, 84
      %v1775 = vpop.permute.xlu0 %1774
      %1776 = vrot.lane.b32.xlu0 %v390, 84
      %v1777 = vpop.permute.xlu0 %1776
      %1778 = vrot.lane.b32.xlu0 %v394, 84
      %v1779 = vpop.permute.xlu0 %1778
      %1780 = vrot.lane.b32.xlu0 %v398, 84
      %v1781 = vpop.permute.xlu0 %1780
      %1782 = vrot.lane.b32.xlu0 %v956, 84
      %v1783 = vpop.permute.xlu0 %1782
      %1784 = vrot.lane.b32.xlu0 %v1567, 84
      %v1785 = vpop.permute.xlu0 %1784
      %1786 = vrot.lane.b32.xlu0 %v1570, 84
      %v1787 = vpop.permute.xlu0 %1786
      %1788 = vrot.lane.b32.xlu0 %v371, 84
      %v1789 = vpop.permute.xlu0 %1788
      %1790 = vrot.lane.b32.xlu0 %v372, 84
      %v1791 = vpop.permute.xlu0 %1790
      %1792 = vrot.lane.b32.xlu0 %v373, 84
      %v1793 = vpop.permute.xlu0 %1792
      %1794 = vrot.lane.b32.xlu0 %v374, 84
      %v1795 = vpop.permute.xlu0 %1794
      %1796 = vrot.lane.b32.xlu0 %v954, 84
      %v1797 = vpop.permute.xlu0 %1796
      %1798 = vrot.lane.b32.xlu0 %v1565, 84
      %v1799 = vpop.permute.xlu0 %1798
      %1800 = vrot.lane.b32.xlu0 %v1564, 84
      %v1801 = vpop.permute.xlu0 %1800
      %vm1802 = vcmask 687104
      %v1803 = vsel %vm1802, %v1775, %v1777
      %v1804 = vsel %vm1802, %v1777, %v1779
      %v1805 = vsel %vm1802, %v1779, %v1781
      %v1806 = vsel %vm1802, %v1781, %v1783
      %v1807 = vsel %vm1802, %v1783, %v1785
      %v1808 = vsel %vm1802, %v1785, %v1787
      %v1809 = vsel %vm1802, %v1789, %v1791
      %v1810 = vsel %vm1802, %v1791, %v1793
      %v1811 = vsel %vm1802, %v1793, %v1795
      %v1812 = vsel %vm1802, %v1795, %v1797
      %v1813 = vsel %vm1802, %v1797, %v1799
      %v1814 = vsel %vm1802, %v1799, %v1801
      %v1822 = vsel %vm460, %v1773, 0
      %v1825 = vsel %vm375, %v1809, 0
      %v1828 = vsel %vm375, %v1810, 0
      %v1831 = vsel %vm375, %v1811, 0
      %v1834 = vsel %vm375, %v1812, 0
      %v1837 = vsel %vm375, %v1813, 0
      %v1840 = vsel %vm375, %v1814, 0
      %1842 = vmatprep.subr.bf16.mxu0 0
      %1843 = vmatpush1.bf16.msra.mxu0 0
      %1844 = vmatprep.subr.bf16.mxu0 0
      %1845 = vmatpush1.bf16.msra.mxu0 0
      %1846 = vmatprep.subr.bf16.mxu0 0
      %1847 = vmatpush1.bf16.msra.mxu0 0
      %1848 = vmatprep.subr.bf16.mxu0 0
      %1849 = vmatpush1.bf16.msra.mxu0 0
      %1850 = vmatprep.subr.bf16.mxu0 0
      %1851 = vmatpush1.bf16.msra.mxu0 0
      %1852 = vmatprep.subr.bf16.mxu0 0
      %1853 = vmatpush1.bf16.msra.mxu0 0
      %1854 = vmatprep.subr.bf16.mxu0 %v1828
      %1855 = vmatpush1.bf16.msra.mxu0 %v1825
      %1856 = vmatprep.subr.bf16.mxu0 %v1804
      %1857 = vmatpush1.bf16.msra.mxu0 %v1803
      %1858 = vmatprep.subr.bf16.mxu0 0
      %1859 = vmatpush2.bf16.msra.mxu0 0
      %1860 = vmatprep.subr.bf16.mxu0 0
      %1861 = vmatpush2.bf16.msra.mxu0 0
      %1862 = vmatprep.subr.bf16.mxu0 0
      %1863 = vmatpush2.bf16.msra.mxu0 0
      %1864 = vmatprep.subr.bf16.mxu0 0
      %1865 = vmatpush2.bf16.msra.mxu0 0
      %1866 = vmatprep.subr.bf16.mxu0 0
      %1867 = vmatpush2.bf16.msra.mxu0 0
      %1868 = vmatprep.subr.bf16.mxu0 0
      %1869 = vmatpush2.bf16.msra.mxu0 0
      %1870 = vmatprep.subr.bf16.mxu0 0
      %1871 = vmatpush2.bf16.msra.mxu0 0
      %1872 = vmatprep.subr.bf16.mxu0 0
      %1873 = vmatpush2.bf16.msra.mxu0 0
      %1874 = vmatprep.mubr.bf16.mxu0 0
      %1875 = vmatmul.mubr.bf16.gmra.mxu0 %v1822
      %v1876 = vpop.f32.mrf.mxu0
      %v1877 = vadd.f32 0.0, %v1876
      %v1878 = vpop.f32.mrf.mxu0
      %v1879 = vadd.f32 0.0, %v1878
      %v1880 = vpop.f32.mrf.mxu0
      %v1881 = vpop.f32.mrf.mxu0
      %1882 = vdwg.mxu0
      %1883 = vmatprep.subr.bf16.mxu0 0
      %1884 = vmatpush1.bf16.msra.mxu0 0
      %1885 = vmatprep.subr.bf16.mxu0 0
      %1886 = vmatpush1.bf16.msra.mxu0 0
      %1887 = vmatprep.subr.bf16.mxu0 0
      %1888 = vmatpush1.bf16.msra.mxu0 0
      %1889 = vmatprep.subr.bf16.mxu0 0
      %1890 = vmatpush1.bf16.msra.mxu0 0
      %1891 = vmatprep.subr.bf16.mxu0 0
      %1892 = vmatpush1.bf16.msra.mxu0 0
      %1893 = vmatprep.subr.bf16.mxu0 0
      %1894 = vmatpush1.bf16.msra.mxu0 0
      %1895 = vmatprep.subr.bf16.mxu0 %v1834
      %1896 = vmatpush1.bf16.msra.mxu0 %v1831
      %1897 = vmatprep.subr.bf16.mxu0 %v1806
      %1898 = vmatpush1.bf16.msra.mxu0 %v1805
      %1899 = vmatprep.subr.bf16.mxu0 0
      %1900 = vmatpush2.bf16.msra.mxu0 0
      %1901 = vmatprep.subr.bf16.mxu0 0
      %1902 = vmatpush2.bf16.msra.mxu0 0
      %1903 = vmatprep.subr.bf16.mxu0 0
      %1904 = vmatpush2.bf16.msra.mxu0 0
      %1905 = vmatprep.subr.bf16.mxu0 0
      %1906 = vmatpush2.bf16.msra.mxu0 0
      %1907 = vmatprep.subr.bf16.mxu0 0
      %1908 = vmatpush2.bf16.msra.mxu0 0
      %1909 = vmatprep.subr.bf16.mxu0 0
      %1910 = vmatpush2.bf16.msra.mxu0 0
      %1911 = vmatprep.subr.bf16.mxu0 0
      %1912 = vmatpush2.bf16.msra.mxu0 0
      %1913 = vmatprep.subr.bf16.mxu0 0
      %1914 = vmatpush2.bf16.msra.mxu0 0
      %1915 = vmatprep.mubr.bf16.mxu0 0
      %1916 = vmatmul.mubr.bf16.gmra.mxu0 %v1822
      %v1917 = vpop.f32.mrf.mxu0
      %v1918 = vadd.f32 0.0, %v1917
      %v1919 = vpop.f32.mrf.mxu0
      %v1920 = vadd.f32 0.0, %v1919
      %v1921 = vpop.f32.mrf.mxu0
      %v1922 = vpop.f32.mrf.mxu0
      %1923 = vdwg.mxu0
      %1924 = vmatprep.subr.bf16.mxu0 0
      %1925 = vmatpush1.bf16.msra.mxu0 0
      %1926 = vmatprep.subr.bf16.mxu0 0
      %1927 = vmatpush1.bf16.msra.mxu0 0
      %1928 = vmatprep.subr.bf16.mxu0 0
      %1929 = vmatpush1.bf16.msra.mxu0 0
      %1930 = vmatprep.subr.bf16.mxu0 0
      %1931 = vmatpush1.bf16.msra.mxu0 0
      %1932 = vmatprep.subr.bf16.mxu0 0
      %1933 = vmatpush1.bf16.msra.mxu0 0
      %1934 = vmatprep.subr.bf16.mxu0 0
      %1935 = vmatpush1.bf16.msra.mxu0 0
      %1936 = vmatprep.subr.bf16.mxu0 %v1840
      %1937 = vmatpush1.bf16.msra.mxu0 %v1837
      %1938 = vmatprep.subr.bf16.mxu0 %v1808
      %1939 = vmatpush1.bf16.msra.mxu0 %v1807
      %1940 = vmatprep.subr.bf16.mxu0 0
      %1941 = vmatpush2.bf16.msra.mxu0 0
      %1942 = vmatprep.subr.bf16.mxu0 0
      %1943 = vmatpush2.bf16.msra.mxu0 0
      %1944 = vmatprep.subr.bf16.mxu0 0
      %1945 = vmatpush2.bf16.msra.mxu0 0
      %1946 = vmatprep.subr.bf16.mxu0 0
      %1947 = vmatpush2.bf16.msra.mxu0 0
      %1948 = vmatprep.subr.bf16.mxu0 0
      %1949 = vmatpush2.bf16.msra.mxu0 0
      %1950 = vmatprep.subr.bf16.mxu0 0
      %1951 = vmatpush2.bf16.msra.mxu0 0
      %1952 = vmatprep.subr.bf16.mxu0 0
      %1953 = vmatpush2.bf16.msra.mxu0 0
      %1954 = vmatprep.subr.bf16.mxu0 0
      %1955 = vmatpush2.bf16.msra.mxu0 0
      %1956 = vmatprep.mubr.bf16.mxu0 0
      %1957 = vmatmul.mubr.bf16.gmra.mxu0 %v1822
      %v1958 = vpop.f32.mrf.mxu0
      %v1959 = vadd.f32 0.0, %v1958
      %v1960 = vpop.f32.mrf.mxu0
      %v1961 = vadd.f32 0.0, %v1960
      %v1962 = vpop.f32.mrf.mxu0
      %v1963 = vpop.f32.mrf.mxu0
      %1964 = vdwg.mxu0
      %v1965 = vadd.f32 %v1766, %v1877
      %v1966 = vadd.f32 %v1767, %v1879
      %v1967 = vadd.f32 %v1768, %v1918
      %v1968 = vadd.f32 %v1769, %v1920
      %v1969 = vadd.f32 %v1770, %v1959
      %v1970 = vadd.f32 %v1771, %v1961
      %s1971 = scalar_lea.vmem %s2, 32
      %v1972 = vld [vmem:[%s1971] sm:$0xf]
      %1973 = vrot.lane.b32.xlu0 %v386, 72
      %v1974 = vpop.permute.xlu0 %1973
      %1975 = vrot.lane.b32.xlu0 %v390, 72
      %v1976 = vpop.permute.xlu0 %1975
      %1977 = vrot.lane.b32.xlu0 %v394, 72
      %v1978 = vpop.permute.xlu0 %1977
      %1979 = vrot.lane.b32.xlu0 %v398, 72
      %v1980 = vpop.permute.xlu0 %1979
      %1981 = vrot.lane.b32.xlu0 %v956, 72
      %v1982 = vpop.permute.xlu0 %1981
      %1983 = vrot.lane.b32.xlu0 %v1567, 72
      %v1984 = vpop.permute.xlu0 %1983
      %1985 = vrot.lane.b32.xlu0 %v1570, 72
      %v1986 = vpop.permute.xlu0 %1985
      %1987 = vrot.lane.b32.xlu0 %v371, 72
      %v1988 = vpop.permute.xlu0 %1987
      %1989 = vrot.lane.b32.xlu0 %v372, 72
      %v1990 = vpop.permute.xlu0 %1989
      %1991 = vrot.lane.b32.xlu0 %v373, 72
      %v1992 = vpop.permute.xlu0 %1991
      %1993 = vrot.lane.b32.xlu0 %v374, 72
      %v1994 = vpop.permute.xlu0 %1993
      %1995 = vrot.lane.b32.xlu0 %v954, 72
      %v1996 = vpop.permute.xlu0 %1995
      %1997 = vrot.lane.b32.xlu0 %v1565, 72
      %v1998 = vpop.permute.xlu0 %1997
      %1999 = vrot.lane.b32.xlu0 %v1564, 72
      %v2000 = vpop.permute.xlu0 %1999
      %vm2001 = vcmask 588800
      %v2002 = vsel %vm2001, %v1974, %v1976
      %v2003 = vsel %vm2001, %v1976, %v1978
      %v2004 = vsel %vm2001, %v1978, %v1980
      %v2005 = vsel %vm2001, %v1980, %v1982
      %v2006 = vsel %vm2001, %v1982, %v1984
      %v2007 = vsel %vm2001, %v1984, %v1986
      %v2008 = vsel %vm2001, %v1988, %v1990
      %v2009 = vsel %vm2001, %v1990, %v1992
      %v2010 = vsel %vm2001, %v1992, %v1994
      %v2011 = vsel %vm2001, %v1994, %v1996
      %v2012 = vsel %vm2001, %v1996, %v1998
      %v2013 = vsel %vm2001, %v1998, %v2000
      %v2021 = vsel %vm460, %v1972, 0
      %v2024 = vsel %vm375, %v2008, 0
      %v2027 = vsel %vm375, %v2009, 0
      %v2030 = vsel %vm375, %v2010, 0
      %v2033 = vsel %vm375, %v2011, 0
      %v2036 = vsel %vm375, %v2012, 0
      %v2039 = vsel %vm375, %v2013, 0
      %2041 = vmatprep.subr.bf16.mxu0 0
      %2042 = vmatpush1.bf16.msra.mxu0 0
      %2043 = vmatprep.subr.bf16.mxu0 0
      %2044 = vmatpush1.bf16.msra.mxu0 0
      %2045 = vmatprep.subr.bf16.mxu0 0
      %2046 = vmatpush1.bf16.msra.mxu0 0
      %2047 = vmatprep.subr.bf16.mxu0 0
      %2048 = vmatpush1.bf16.msra.mxu0 0
      %2049 = vmatprep.subr.bf16.mxu0 0
      %2050 = vmatpush1.bf16.msra.mxu0 0
      %2051 = vmatprep.subr.bf16.mxu0 0
      %2052 = vmatpush1.bf16.msra.mxu0 0
      %2053 = vmatprep.subr.bf16.mxu0 %v2027
      %2054 = vmatpush1.bf16.msra.mxu0 %v2024
      %2055 = vmatprep.subr.bf16.mxu0 %v2003
      %2056 = vmatpush1.bf16.msra.mxu0 %v2002
      %2057 = vmatprep.subr.bf16.mxu0 0
      %2058 = vmatpush2.bf16.msra.mxu0 0
      %2059 = vmatprep.subr.bf16.mxu0 0
      %2060 = vmatpush2.bf16.msra.mxu0 0
      %2061 = vmatprep.subr.bf16.mxu0 0
      %2062 = vmatpush2.bf16.msra.mxu0 0
      %2063 = vmatprep.subr.bf16.mxu0 0
      %2064 = vmatpush2.bf16.msra.mxu0 0
      %2065 = vmatprep.subr.bf16.mxu0 0
      %2066 = vmatpush2.bf16.msra.mxu0 0
      %2067 = vmatprep.subr.bf16.mxu0 0
      %2068 = vmatpush2.bf16.msra.mxu0 0
      %2069 = vmatprep.subr.bf16.mxu0 0
      %2070 = vmatpush2.bf16.msra.mxu0 0
      %2071 = vmatprep.subr.bf16.mxu0 0
      %2072 = vmatpush2.bf16.msra.mxu0 0
      %2073 = vmatprep.mubr.bf16.mxu0 0
      %2074 = vmatmul.mubr.bf16.gmra.mxu0 %v2021
      %v2075 = vpop.f32.mrf.mxu0
      %v2076 = vadd.f32 0.0, %v2075
      %v2077 = vpop.f32.mrf.mxu0
      %v2078 = vadd.f32 0.0, %v2077
      %v2079 = vpop.f32.mrf.mxu0
      %v2080 = vpop.f32.mrf.mxu0
      %2081 = vdwg.mxu0
      %2082 = vmatprep.subr.bf16.mxu0 0
      %2083 = vmatpush1.bf16.msra.mxu0 0
      %2084 = vmatprep.subr.bf16.mxu0 0
      %2085 = vmatpush1.bf16.msra.mxu0 0
      %2086 = vmatprep.subr.bf16.mxu0 0
      %2087 = vmatpush1.bf16.msra.mxu0 0
      %2088 = vmatprep.subr.bf16.mxu0 0
      %2089 = vmatpush1.bf16.msra.mxu0 0
      %2090 = vmatprep.subr.bf16.mxu0 0
      %2091 = vmatpush1.bf16.msra.mxu0 0
      %2092 = vmatprep.subr.bf16.mxu0 0
      %2093 = vmatpush1.bf16.msra.mxu0 0
      %2094 = vmatprep.subr.bf16.mxu0 %v2033
      %2095 = vmatpush1.bf16.msra.mxu0 %v2030
      %2096 = vmatprep.subr.bf16.mxu0 %v2005
      %2097 = vmatpush1.bf16.msra.mxu0 %v2004
      %2098 = vmatprep.subr.bf16.mxu0 0
      %2099 = vmatpush2.bf16.msra.mxu0 0
      %2100 = vmatprep.subr.bf16.mxu0 0
      %2101 = vmatpush2.bf16.msra.mxu0 0
      %2102 = vmatprep.subr.bf16.mxu0 0
      %2103 = vmatpush2.bf16.msra.mxu0 0
      %2104 = vmatprep.subr.bf16.mxu0 0
      %2105 = vmatpush2.bf16.msra.mxu0 0
      %2106 = vmatprep.subr.bf16.mxu0 0
      %2107 = vmatpush2.bf16.msra.mxu0 0
      %2108 = vmatprep.subr.bf16.mxu0 0
      %2109 = vmatpush2.bf16.msra.mxu0 0
      %2110 = vmatprep.subr.bf16.mxu0 0
      %2111 = vmatpush2.bf16.msra.mxu0 0
      %2112 = vmatprep.subr.bf16.mxu0 0
      %2113 = vmatpush2.bf16.msra.mxu0 0
      %2114 = vmatprep.mubr.bf16.mxu0 0
      %2115 = vmatmul.mubr.bf16.gmra.mxu0 %v2021
      %v2116 = vpop.f32.mrf.mxu0
      %v2117 = vadd.f32 0.0, %v2116
      %v2118 = vpop.f32.mrf.mxu0
      %v2119 = vadd.f32 0.0, %v2118
      %v2120 = vpop.f32.mrf.mxu0
      %v2121 = vpop.f32.mrf.mxu0
      %2122 = vdwg.mxu0
      %2123 = vmatprep.subr.bf16.mxu0 0
      %2124 = vmatpush1.bf16.msra.mxu0 0
      %2125 = vmatprep.subr.bf16.mxu0 0
      %2126 = vmatpush1.bf16.msra.mxu0 0
      %2127 = vmatprep.subr.bf16.mxu0 0
      %2128 = vmatpush1.bf16.msra.mxu0 0
      %2129 = vmatprep.subr.bf16.mxu0 0
      %2130 = vmatpush1.bf16.msra.mxu0 0
      %2131 = vmatprep.subr.bf16.mxu0 0
      %2132 = vmatpush1.bf16.msra.mxu0 0
      %2133 = vmatprep.subr.bf16.mxu0 0
      %2134 = vmatpush1.bf16.msra.mxu0 0
      %2135 = vmatprep.subr.bf16.mxu0 %v2039
      %2136 = vmatpush1.bf16.msra.mxu0 %v2036
      %2137 = vmatprep.subr.bf16.mxu0 %v2007
      %2138 = vmatpush1.bf16.msra.mxu0 %v2006
      %2139 = vmatprep.subr.bf16.mxu0 0
      %2140 = vmatpush2.bf16.msra.mxu0 0
      %2141 = vmatprep.subr.bf16.mxu0 0
      %2142 = vmatpush2.bf16.msra.mxu0 0
      %2143 = vmatprep.subr.bf16.mxu0 0
      %2144 = vmatpush2.bf16.msra.mxu0 0
      %2145 = vmatprep.subr.bf16.mxu0 0
      %2146 = vmatpush2.bf16.msra.mxu0 0
      %2147 = vmatprep.subr.bf16.mxu0 0
      %2148 = vmatpush2.bf16.msra.mxu0 0
      %2149 = vmatprep.subr.bf16.mxu0 0
      %2150 = vmatpush2.bf16.msra.mxu0 0
      %2151 = vmatprep.subr.bf16.mxu0 0
      %2152 = vmatpush2.bf16.msra.mxu0 0
      %2153 = vmatprep.subr.bf16.mxu0 0
      %2154 = vmatpush2.bf16.msra.mxu0 0
      %2155 = vmatprep.mubr.bf16.mxu0 0
      %2156 = vmatmul.mubr.bf16.gmra.mxu0 %v2021
      %v2157 = vpop.f32.mrf.mxu0
      %v2158 = vadd.f32 0.0, %v2157
      %v2159 = vpop.f32.mrf.mxu0
      %v2160 = vadd.f32 0.0, %v2159
      %v2161 = vpop.f32.mrf.mxu0
      %v2162 = vpop.f32.mrf.mxu0
      %2163 = vdwg.mxu0
      %v2164 = vadd.f32 %v1965, %v2076
      %v2165 = vadd.f32 %v1966, %v2078
      %v2166 = vadd.f32 %v1967, %v2117
      %v2167 = vadd.f32 %v1968, %v2119
      %v2168 = vadd.f32 %v1969, %v2158
      %v2169 = vadd.f32 %v1970, %v2160
      %v2170 = vld [vmem:[%s3] sm:$0xff]
      %2172 = vset.pattern.permute.xlu0 0
      %2173 = vperm.xlu0 %2172, %v2170
      %v2174 = vpop.permute.xlu0 %2173
      %v2176 = vadd.f32 %v2164, %v2174
      %v2177 = vadd.f32 %v2165, %v2174
      %v2178 = vadd.f32 %v2166, %v2174
      %v2179 = vadd.f32 %v2167, %v2174
      %v2180 = vadd.f32 %v2168, %v2174
      %v2181 = vadd.f32 %v2169, %v2174
      %v2182 = vrot.slane %v2176, 4
      %v2183 = vadd.f32 %v2176, %v2182
      %v2184 = vrot.slane %v2183, 2
      %v2185 = vadd.f32 %v2183, %v2184
      %v2186 = vrot.slane %v2185, 1
      %v2187 = vadd.f32 %v2185, %v2186
      %v2188 = vrot.slane %v2177, 4
      %v2189 = vadd.f32 %v2177, %v2188
      %v2190 = vrot.slane %v2189, 2
      %v2191 = vadd.f32 %v2189, %v2190
      %v2192 = vrot.slane %v2191, 1
      %v2193 = vadd.f32 %v2191, %v2192
      %v2194 = vrot.slane %v2178, 4
      %v2195 = vadd.f32 %v2178, %v2194
      %v2196 = vrot.slane %v2195, 2
      %v2197 = vadd.f32 %v2195, %v2196
      %v2198 = vrot.slane %v2197, 1
      %v2199 = vadd.f32 %v2197, %v2198
      %v2200 = vrot.slane %v2179, 4
      %v2201 = vadd.f32 %v2179, %v2200
      %v2202 = vrot.slane %v2201, 2
      %v2203 = vadd.f32 %v2201, %v2202
      %v2204 = vrot.slane %v2203, 1
      %v2205 = vadd.f32 %v2203, %v2204
      %v2206 = vrot.slane %v2180, 4
      %v2207 = vadd.f32 %v2180, %v2206
      %v2208 = vrot.slane %v2207, 2
      %v2209 = vadd.f32 %v2207, %v2208
      %v2210 = vrot.slane %v2209, 1
      %v2211 = vadd.f32 %v2209, %v2210
      %v2212 = vrot.slane %v2181, 4
      %v2213 = vadd.f32 %v2181, %v2212
      %v2214 = vrot.slane %v2213, 2
      %v2215 = vadd.f32 %v2213, %v2214
      %v2216 = vrot.slane %v2215, 1
      %v2217 = vadd.f32 %v2215, %v2216
      %v2218 = vrcp.pop 8.0
      %v2219 = vmul.f32 %v2187, %v2218
      %v2220 = vmul.f32 %v2193, %v2218
      %v2221 = vmul.f32 %v2199, %v2218
      %v2222 = vmul.f32 %v2205, %v2218
      %v2223 = vmul.f32 %v2211, %v2218
      %v2224 = vmul.f32 %v2217, %v2218
      %v2225 = vsub.f32 %v2176, %v2219
      %v2226 = vsub.f32 %v2177, %v2220
      %v2227 = vsub.f32 %v2178, %v2221
      %v2228 = vsub.f32 %v2179, %v2222
      %v2229 = vsub.f32 %v2180, %v2223
      %v2230 = vsub.f32 %v2181, %v2224
      %v2231 = vmul.f32 %v2225, %v2225
      %v2232 = vmul.f32 %v2226, %v2226
      %v2233 = vmul.f32 %v2227, %v2227
      %v2234 = vmul.f32 %v2228, %v2228
      %v2235 = vmul.f32 %v2229, %v2229
      %v2236 = vmul.f32 %v2230, %v2230
      %v2237 = vrot.slane %v2231, 4
      %v2238 = vadd.f32 %v2231, %v2237
      %v2239 = vrot.slane %v2238, 2
      %v2240 = vadd.f32 %v2238, %v2239
      %v2241 = vrot.slane %v2240, 1
      %v2242 = vadd.f32 %v2240, %v2241
      %v2243 = vrot.slane %v2232, 4
      %v2244 = vadd.f32 %v2232, %v2243
      %v2245 = vrot.slane %v2244, 2
      %v2246 = vadd.f32 %v2244, %v2245
      %v2247 = vrot.slane %v2246, 1
      %v2248 = vadd.f32 %v2246, %v2247
      %v2249 = vrot.slane %v2233, 4
      %v2250 = vadd.f32 %v2233, %v2249
      %v2251 = vrot.slane %v2250, 2
      %v2252 = vadd.f32 %v2250, %v2251
      %v2253 = vrot.slane %v2252, 1
      %v2254 = vadd.f32 %v2252, %v2253
      %v2255 = vrot.slane %v2234, 4
      %v2256 = vadd.f32 %v2234, %v2255
      %v2257 = vrot.slane %v2256, 2
      %v2258 = vadd.f32 %v2256, %v2257
      %v2259 = vrot.slane %v2258, 1
      %v2260 = vadd.f32 %v2258, %v2259
      %v2261 = vrot.slane %v2235, 4
      %v2262 = vadd.f32 %v2235, %v2261
      %v2263 = vrot.slane %v2262, 2
      %v2264 = vadd.f32 %v2262, %v2263
      %v2265 = vrot.slane %v2264, 1
      %v2266 = vadd.f32 %v2264, %v2265
      %v2267 = vrot.slane %v2236, 4
      %v2268 = vadd.f32 %v2236, %v2267
      %v2269 = vrot.slane %v2268, 2
      %v2270 = vadd.f32 %v2268, %v2269
      %v2271 = vrot.slane %v2270, 1
      %v2272 = vadd.f32 %v2270, %v2271
      %v2273 = vmul.f32 %v2242, %v2218
      %v2274 = vmul.f32 %v2248, %v2218
      %v2275 = vmul.f32 %v2254, %v2218
      %v2276 = vmul.f32 %v2260, %v2218
      %v2277 = vmul.f32 %v2266, %v2218
      %v2278 = vmul.f32 %v2272, %v2218
      %v2279 = vadd.f32 %v2273, 1e-05
      %v2280 = vadd.f32 %v2274, 1e-05
      %v2281 = vadd.f32 %v2275, 1e-05
      %v2282 = vadd.f32 %v2276, 1e-05
      %v2283 = vadd.f32 %v2277, 1e-05
      %v2284 = vadd.f32 %v2278, 1e-05
      %v2285 = vrsqrt.pop %v2279
      %v2286 = vrsqrt.pop %v2280
      %v2287 = vrsqrt.pop %v2281
      %v2288 = vrsqrt.pop %v2282
      %v2289 = vrsqrt.pop %v2283
      %v2290 = vrsqrt.pop %v2284
      %v2291 = vmul.f32 %v2225, %v2285
      %v2292 = vmul.f32 %v2226, %v2286
      %v2293 = vmul.f32 %v2227, %v2287
      %v2294 = vmul.f32 %v2228, %v2288
      %v2295 = vmul.f32 %v2229, %v2289
      %v2296 = vmul.f32 %v2230, %v2290
      %2297 = vset.pattern.permute.xlu0 1
      %2298 = vperm.xlu0 %2297, %v2170
      %v2299 = vpop.permute.xlu0 %2298
      %v2301 = vmul.f32 %v2291, %v2299
      %v2302 = vmul.f32 %v2292, %v2299
      %v2303 = vmul.f32 %v2293, %v2299
      %v2304 = vmul.f32 %v2294, %v2299
      %v2305 = vmul.f32 %v2295, %v2299
      %v2306 = vmul.f32 %v2296, %v2299
      %2307 = vset.pattern.permute.xlu0 2
      %2308 = vperm.xlu0 %2307, %v2170
      %v2309 = vpop.permute.xlu0 %2308
      %v2311 = vadd.f32 %v2301, %v2309
      %v2312 = vadd.f32 %v2302, %v2309
      %v2313 = vadd.f32 %v2303, %v2309
      %v2314 = vadd.f32 %v2304, %v2309
      %v2315 = vadd.f32 %v2305, %v2309
      %v2316 = vadd.f32 %v2306, %v2309
      %vm2317 = vcmp.ge.f32.partialorder %v2311, 0.0
      %vm2318 = vcmp.ge.f32.partialorder %v2312, 0.0
      %vm2319 = vcmp.ge.f32.partialorder %v2313, 0.0
      %vm2320 = vcmp.ge.f32.partialorder %v2314, 0.0
      %vm2321 = vcmp.ge.f32.partialorder %v2315, 0.0
      %vm2322 = vcmp.ge.f32.partialorder %v2316, 0.0
      %2323 = vset.pattern.permute.xlu0 3
      %2324 = vperm.xlu0 %2323, %v2170
      %v2325 = vpop.permute.xlu0 %2324
      %v2327 = vmul.f32 %v2325, %v2311
      %v2328 = vmul.f32 %v2325, %v2312
      %v2329 = vmul.f32 %v2325, %v2313
      %v2330 = vmul.f32 %v2325, %v2314
      %v2331 = vmul.f32 %v2325, %v2315
      %v2332 = vmul.f32 %v2325, %v2316
      %v2333 = vsel %vm2317, %v2311, %v2327
      %v2334 = vsel %vm2318, %v2312, %v2328
      %v2335 = vsel %vm2319, %v2313, %v2329
      %v2336 = vsel %vm2320, %v2314, %v2330
      %v2337 = vsel %vm2321, %v2315, %v2331
      %v2338 = vsel %vm2322, %v2316, %v2332
      %v2339 = vld [vmem:[%s289] sm:$0x3f]
      %v2340 = vunpack.c.l.bf16 %v2339
      %v2341 = vunpack.c.h.bf16 %v2339
      %v2344 = vlaneseq
      %v2345 = vshrl.u32 %v2344, 7
      %v2346 = vsub.s32 0, %v2345
      %v2347 = vrot.slane %v2340, %v2346
      %v2348 = vlaneseq
      %v2349 = vshrl.u32 %v2348, 7
      %v2350 = vsub.s32 2, %v2349
      %v2351 = vrot.slane %v2340, %v2350
      %v2352 = vlaneseq
      %v2353 = vshrl.u32 %v2352, 7
      %v2354 = vsub.s32 4, %v2353
      %v2355 = vrot.slane %v2340, %v2354
      %v2356 = vlaneseq
      %v2357 = vshrl.u32 %v2356, 7
      %v2358 = vsub.s32 6, %v2357
      %v2359 = vrot.slane %v2340, %v2358
      %v2360 = vlaneseq
      %v2361 = vshrl.u32 %v2360, 7
      %v2362 = vsub.s32 0, %v2361
      %v2363 = vrot.slane %v2341, %v2362
      %v2364 = vlaneseq
      %v2365 = vshrl.u32 %v2364, 7
      %v2366 = vsub.s32 2, %v2365
      %v2367 = vrot.slane %v2341, %v2366
      %v2374 = vlaneseq
      %v2375 = vshrl.u32 %v2374, 7
      %v2376 = vsub.s32 0, %v2375
      %v2377 = vrot.slane %v2347, %v2376
      %v2378 = vlaneseq
      %v2379 = vshrl.u32 %v2378, 7
      %v2380 = vsub.s32 0, %v2379
      %v2381 = vrot.slane %v2351, %v2380
      %v2382 = vlaneseq
      %v2383 = vshrl.u32 %v2382, 7
      %v2384 = vsub.s32 0, %v2383
      %v2385 = vrot.slane %v2355, %v2384
      %v2386 = vlaneseq
      %v2387 = vshrl.u32 %v2386, 7
      %v2388 = vsub.s32 0, %v2387
      %v2389 = vrot.slane %v2359, %v2388
      %v2390 = vlaneseq
      %v2391 = vshrl.u32 %v2390, 7
      %v2392 = vsub.s32 0, %v2391
      %v2393 = vrot.slane %v2363, %v2392
      %v2394 = vlaneseq
      %v2395 = vshrl.u32 %v2394, 7
      %v2396 = vsub.s32 0, %v2395
      %v2397 = vrot.slane %v2367, %v2396
      %v2398 = vmul.f32 %v2333, %v2377
      %v2399 = vmul.f32 %v2334, %v2381
      %v2400 = vmul.f32 %v2335, %v2385
      %v2401 = vmul.f32 %v2336, %v2389
      %v2402 = vmul.f32 %v2337, %v2393
      %v2403 = vmul.f32 %v2338, %v2397
      %2404 = vst [vmem:[%s295] sm:$0xff] %v2398
      %2405 = vst [vmem:[%s295 + $0x8] sm:$0xff] %v2399
      %2406 = vst [vmem:[%s295 + $0x10] sm:$0xff] %v2400
      %2407 = vst [vmem:[%s295 + $0x18] sm:$0xff] %v2401
      %2408 = vst [vmem:[%s295 + $0x20] sm:$0xff] %v2402
      %2409 = vst [vmem:[%s295 + $0x28] sm:$0xff] %v2403
      %s2410 = smul.u32 6, %s16
      %p2411 = scmp.lt.s32.totalorder %s2410, 29
      %s2412 = scalar_select %p2411, %s2410, 29
      %s2413 = smul.addr %s2412, 8
      %s2414 = scalar_lea.vmem %s5, %s2413
      // Predicated region
      $region41: #{_lambda_.3} parent=39 // pred_check
        %p2415 = pneg %p162
      $region42: #{_lambda_.3} parent=39 // pred_check_branch
        %2417 = sbr.rel (%p2415) target = $region44
      $region43: #{_lambda_.3} parent=39 // pred_region
        %s2418 = smul.u32 6, %s16
      $region44: #{_lambda_.3} parent=39 // pred_fallthru
        _
    $region40: #{_lambda_.3} parent=5 // pred_fallthru
      _
    %p2419 = scmp.le.s32.totalorder 2, %s11
    // Predicated region
    $region45: #{_lambda_.3} parent=5 // pred_check
      %p2420 = pneg %p2419
    $region46: #{_lambda_.3} parent=5 // pred_check_branch
      %2422 = sbr.rel (%p2420) target = $region48
    $region47: #{_lambda_.3} parent=5 // pred_region
      %s2423 = ssub.s32 %s11, 2
      // Predicated region
      $region49: #{_lambda_.3} parent=47 // pred_check
        %p2424 = pneg %p168
      $region50: #{_lambda_.3} parent=47 // pred_check_branch
        %2426 = sbr.rel (%p2424) target = $region52
      $region51: #{_lambda_.3} parent=47 // pred_region
        %s2427 = smul.u32 6, %s17
        %p2428 = scmp.lt.s32.totalorder %s2427, 29
        %s2429 = scalar_select %p2428, %s2427, 29
        %s2430 = smul.addr %s2429, 8
        %s2431 = scalar_lea.vmem %s5, %s2430
      $region52: #{_lambda_.3} parent=47 // pred_fallthru
        _
    $region48: #{_lambda_.3} parent=5 // pred_fallthru
      _
  $region6: #{_lambda_.3} parent=0 // loop_footer
    %s15 = sadd.s32 1, %s11
  $region7: #{_lambda_.3} parent=0 // loop_footer_branch
    %10 = sbr.rel target = $region3
  $region8: #{_lambda_.3} parent=0 // loop_exit
    _

</llo_original>
